<compile_context>
chip_gen: v7x
topology: tpu7x:2x2x1
jax: 0.10.0
libtpu: 0.0.40
codegen_flags: <defaults>
</compile_context>

<pallas_src>
import functools
import math

import jax
import jax.numpy as jnp
from jax import lax
from jax.experimental import pallas as pl
from jax.experimental.pallas import tpu as pltpu


SCALE = math.sqrt(0.5)  # torch.sqrt(torch.FloatTensor([0.5])) -> plain Python float


def _round_up(x, m):
    return ((x + m - 1) // m) * m


# -----------------------------------------------------------------------------
# Fused full-forward kernel (BC batch elements per grid step)
# -----------------------------------------------------------------------------
def _decoder_feedback_kernel(
    emb_ref, enc_conved_ref, enc_comb_ref, pred_conved_ref, pred_comb_ref,
    emb2hid_w_ref, emb2hid_b_ref,
    conv_w_ref, conv_b_ref,
    h2e_w_ref, h2e_b_ref,
    e2h_w_ref, e2h_b_ref,
    pe2h_w_ref, pe2h_b_ref,
    hid2emb_w_ref, hid2emb_b_ref,
    out_w_ref, out_b_ref,
    out_ref, attn_ref,
    *, n_layers, K, T, BC, H, pad_value, scale):
    f32 = jnp.float32
    bf16 = jnp.bfloat16
    BT = BC * T
    T_pad = attn_ref.shape[-1]

    # bf16 MXU feed, f32 accumulate
    def mm(a, b):
        return jnp.dot(a.astype(bf16), b.astype(bf16), preferred_element_type=f32)

    # contract last dims (A @ B^T without materializing a transpose)
    def mm_t(a, b):
        return lax.dot_general(a.astype(bf16), b.astype(bf16),
                               (((1,), (1,)), ((), ())),
                               preferred_element_type=f32)

    def softmax_last(e):
        e = e - jnp.max(e, axis=-1, keepdims=True)
        p = jnp.exp(e)
        return p * pl.reciprocal(jnp.sum(p, axis=-1, keepdims=True), approx=True)

    embedded = emb_ref[...].astype(f32)                               # [BT, E]

    # Per-batch-element context tensors, hoisted out of the layer loop and pre-cast
    # to bf16 once (they only ever feed MXU ops).
    enc_cv = [enc_conved_ref[b].astype(bf16) for b in range(BC)]      # [Te, E]
    enc_cb = [enc_comb_ref[b].astype(bf16) for b in range(BC)]        # [Te, E]
    prd_cv = [pred_conved_ref[b].astype(bf16) for b in range(BC)]     # [T, E]
    prd_cb = [pred_comb_ref[b].astype(bf16) for b in range(BC)]       # [T, E]

    # Causal-conv helpers (built once). With batch folding, rows of different batch
    # elements are adjacent, so shifted taps must be re-masked to pad_value for the
    # first (kernel_size-1) rows of every batch element (not just the first one).
    need_mask = (K > 1) and (BC > 1)
    if need_mask:
        row_t = lax.broadcasted_iota(jnp.int32, (BT, H), 0) % T       # token index within batch elem
    if K > 1:
        pad_rows = jnp.full((K - 1, H), pad_value, f32)               # PyTorch fill_(pad_idx)

    # emb2hid
    conv_in = mm(embedded, emb2hid_w_ref[...]) + emb2hid_b_ref[...]   # [BT, H] f32

    for l in range(n_layers):
        # ---- causal Conv1d (left pad = pad_idx) + GLU, fused im2col matmul ---------
        if K > 1:
            padded = jnp.concatenate([pad_rows, conv_in], axis=0)     # [BT+K-1, H]
            taps = []
            for j in range(K):
                s = K - 1 - j                                         # tap j pairs with shift s
                tap = padded[j:j + BT, :]                             # static slice, no FLOPs
                if s > 0 and need_mask:
                    tap = jnp.where(row_t < s, pad_value, tap)        # fix cross-batch leakage
                taps.append(tap)
            im2col = jnp.concatenate(taps, axis=1)                    # [BT, K*H]
        else:
            im2col = conv_in
        conv_out = mm(im2col, conv_w_ref[l]) + conv_b_ref[l]          # [BT, 2H] f32
        a = conv_out[:, :H]
        g = conv_out[:, H:]
        conved = a * pl.reciprocal(1.0 + jnp.exp(-g), approx=True)    # GLU -> [BT, H]

        # ---- AttentionFeedback ------------------------------------------------------
        conved_emb = mm(conved, h2e_w_ref[l]) + h2e_b_ref[l]          # [BT, E]
        combined = (embedded + conved_emb) * scale                    # [BT, E] f32

        att_enc_parts = []
        p_att_parts = []
        for b in range(BC):
            comb_b = combined[b * T:(b + 1) * T, :]                   # [T, E]

            # encoder attention
            energy = mm_t(comb_b, enc_cv[b])                          # [T, Te]
            attention = softmax_last(energy)
            att_enc_parts.append(mm(attention, enc_cb[b]))            # [T, E]

            # prediction-feedback attention
            p_energy = mm_t(comb_b, prd_cv[b])                        # [T, T]
            p_attention = softmax_last(p_energy)
            p_att_parts.append(mm(p_attention, prd_cb[b]))            # [T, E]

            if l == n_layers - 1:                                     # only last layer is returned
                if T_pad > T:                                         # lane-dense (padded) store
                    p_attention = jnp.concatenate(
                        [p_attention, jnp.zeros((T, T_pad - T), f32)], axis=1)
                attn_ref[b] = p_attention.astype(attn_ref.dtype)

        att_enc = att_enc_parts[0] if BC == 1 else jnp.concatenate(att_enc_parts, axis=0)
        p_att = p_att_parts[0] if BC == 1 else jnp.concatenate(p_att_parts, axis=0)

        att_h = mm(att_enc, e2h_w_ref[l]) + e2h_b_ref[l]              # [BT, H]
        attented_combined = (conved + att_h) * scale
        p_h = mm(p_att, pe2h_w_ref[l]) + pe2h_b_ref[l]                # [BT, H]
        p_side = (conved + p_h) * scale

        attn_out = attented_combined + p_side                         # AttentionFeedback output
        conv_in = (attn_out + conv_in) * scale                        # DecoderBlockFeedback residual

    # final hid2emb + (V-padded, lane-dense) output projection
    conved_final = mm(conv_in, hid2emb_w_ref[...]) + hid2emb_b_ref[...]   # [BT, E]
    logits = mm(conved_final, out_w_ref[...]) + out_b_ref[...]            # [BT, V_pad]
    out_ref[...] = logits.astype(out_ref.dtype)


# -----------------------------------------------------------------------------
# Full DecoderFeedback forward (eval mode: dropout = identity)
# -----------------------------------------------------------------------------
def decoder_feedback_forward(params, x, encoder_conved, encoder_combined,
                             pred_conved, pred_combined, *, kernel_size, pad_idx):
    # TODO(synk): css.DecoderEmbedder source unavailable; approximated as
    # token-embedding + positional-embedding lookup (dropout is identity in eval).
    positions = jnp.arange(x.shape[1])
    embedded = (params["tok_emb"][x] + params["pos_emb"][positions][None, :, :]).astype(jnp.float32)

    B, T, E = embedded.shape
    Te = encoder_conved.shape[1]
    H = params["emb2hid_w"].shape[1]
    V = params["out_w"].shape[1]
    L = len(params["layers"])
    K = kernel_size
    assert L >= 1, "DecoderFeedback requires n_layers >= 1 (attention output comes from the last layer)"

    # Batch chunking: 2 parallel chunks when B is even so both v7x TensorCores get work;
    # each chunk folds BC batch elements into [BC*T, .] matmuls so the (serial) grid on
    # v5e/v6e stays short and the MXU sees more rows per push.
    NC = 2 if (B >= 2 and B % 2 == 0) else 1
    BC = B // NC

    V_pad = _round_up(V, 128)   # lane-dense logits store (pad via zero weight columns)
    T_pad = _round_up(T, 128)   # lane-dense attention store (zero-padded, sliced outside)

    bf16, f32 = jnp.bfloat16, jnp.float32
    layers = params["layers"]
    # conv weights: [K, H, 2H] per layer -> [K*H, 2H] so the fused im2col matmul works.
    conv_w = jnp.stack([lp["conv_w"].reshape(K * H, 2 * H) for lp in layers]).astype(bf16)
    conv_b = jnp.stack([lp["conv_b"].reshape(1, 2 * H) for lp in layers]).astype(f32)
    h2e_w = jnp.stack([lp["h2e_w"] for lp in layers]).astype(bf16)
    h2e_b = jnp.stack([lp["h2e_b"].reshape(1, E) for lp in layers]).astype(f32)
    e2h_w = jnp.stack([lp["e2h_w"] for lp in layers]).astype(bf16)
    e2h_b = jnp.stack([lp["e2h_b"].reshape(1, H) for lp in layers]).astype(f32)
    pe2h_w = jnp.stack([lp["pe2h_w"] for lp in layers]).astype(bf16)
    pe2h_b = jnp.stack([lp["pe2h_b"].reshape(1, H) for lp in layers]).astype(f32)

    out_w = params["out_w"].astype(bf16)
    out_b = params["out_b"].reshape(1, V).astype(f32)
    if V_pad > V:
        out_w = jnp.pad(out_w, ((0, 0), (0, V_pad - V)))
        out_b = jnp.pad(out_b, ((0, 0), (0, V_pad - V)))

    embedded2d = embedded.reshape(B * T, E)   # token-flattened view (free XLA reshape)

    chunk2 = lambda r, c: pl.BlockSpec((r, c), lambda i: (i, 0))
    chunk3 = lambda d0, d1, d2: pl.BlockSpec((d0, d1, d2), lambda i: (i, 0, 0))
    shared2 = lambda r, c: pl.BlockSpec((r, c), lambda i: (0, 0))
    shared3 = lambda d0, d1, d2: pl.BlockSpec((d0, d1, d2), lambda i: (0, 0, 0))
    # NOTE: at production E/H/V, mark the shared weight specs single-buffered and set
    # vmem_limit_bytes (esp. on v7x's 64 MiB VMEM); irrelevant at these toy sizes.

    kernel = functools.partial(
        _decoder_feedback_kernel, n_layers=L, K=K, T=T, BC=BC, H=H,
        pad_value=float(pad_idx), scale=SCALE)

    logits2d, attention_pad = pl.pallas_call(
        kernel,
        out_shape=(jax.ShapeDtypeStruct((B * T, V_pad), jnp.float32),   # lane-dense logits slab
                   jax.ShapeDtypeStruct((B, T, T_pad), jnp.float32)),   # last-layer p_attention (padded)
        grid=(NC,),
        in_specs=[
            chunk2(BC * T, E),         # embedded (token-flattened)
            chunk3(BC, Te, E),         # encoder_conved
            chunk3(BC, Te, E),         # encoder_combined
            chunk3(BC, T, E),          # pred_conved
            chunk3(BC, T, E),          # pred_combined
            shared2(E, H), shared2(1, H),                      # emb2hid
            shared3(L, K * H, 2 * H), shared3(L, 1, 2 * H),    # conv (im2col layout) + bias
            shared3(L, H, E), shared3(L, 1, E),                # attention_hid2emb
            shared3(L, E, H), shared3(L, 1, H),                # attention_emb2hid
            shared3(L, E, H), shared3(L, 1, H),                # p_attention_emb2hid
            shared2(H, E), shared2(1, E),                      # hid2emb
            shared2(E, V_pad), shared2(1, V_pad),              # out (V padded to lane multiple)
        ],
        out_specs=(
            pl.BlockSpec((BC * T, V_pad), lambda i: (i, 0)),
            pl.BlockSpec((BC, T, T_pad), lambda i: (i, 0, 0)),
        ),
        compiler_params=pltpu.CompilerParams(dimension_semantics=("parallel",)),
    )(embedded2d, encoder_conved, encoder_combined, pred_conved, pred_combined,
      params["emb2hid_w"].astype(bf16), params["emb2hid_b"].reshape(1, H).astype(f32),
      conv_w, conv_b, h2e_w, h2e_b, e2h_w, e2h_b, pe2h_w, pe2h_b,
      params["hid2emb_w"].astype(bf16), params["hid2emb_b"].reshape(1, E).astype(f32),
      out_w, out_b)

    output = logits2d[:, :V].reshape(B, T, V)
    attention = attention_pad[:, :, :T]
    return output, attention


# -----------------------------------------------------------------------------
# Deterministic parameter construction + example run
# -----------------------------------------------------------------------------
def make_params(key, output_dim, emb_dim, hid_dim, n_layers, kernel_size, max_seq_len):
    def nrm(k, shape, s=0.1):
        return (s * jax.random.normal(k, shape)).astype(jnp.float32)

    keys = iter(jax.random.split(key, 8 + 8 * n_layers))
    params = {
        "tok_emb": nrm(next(keys), (output_dim, emb_dim)),
        "pos_emb": nrm(next(keys), (max_seq_len, emb_dim)),
        "emb2hid_w": nrm(next(keys), (emb_dim, hid_dim)),
        "emb2hid_b": nrm(next(keys), (hid_dim,)),
        "hid2emb_w": nrm(next(keys), (hid_dim, emb_dim)),
        "hid2emb_b": nrm(next(keys), (emb_dim,)),
        "out_w": nrm(next(keys), (emb_dim, output_dim)),
        "out_b": nrm(next(keys), (output_dim,)),
        "layers": [],
    }
    for _ in range(n_layers):
        params["layers"].append({
            # channel-last conv weight: [K, H, 2H] (= torch [2H, H, K] transposed)
            "conv_w": nrm(next(keys), (kernel_size, hid_dim, 2 * hid_dim)),
            "conv_b": nrm(next(keys), (2 * hid_dim,)),
            "h2e_w": nrm(next(keys), (hid_dim, emb_dim)),
            "h2e_b": nrm(next(keys), (emb_dim,)),
            "e2h_w": nrm(next(keys), (emb_dim, hid_dim)),
            "e2h_b": nrm(next(keys), (hid_dim,)),
            "pe2h_w": nrm(next(keys), (emb_dim, hid_dim)),
            "pe2h_b": nrm(next(keys), (hid_dim,)),
        })
    return params


if __name__ == "__main__":
    B, T_dec, T_enc = 4, 8, 16
    output_dim, emb_dim, hid_dim = 16, 32, 32
    n_layers, kernel_size, pad_idx, max_seq_len = 2, 3, 0, 100

    root = jax.random.PRNGKey(0)
    kp, kx, k1, k2, k3, k4 = jax.random.split(root, 6)

    params = make_params(kp, output_dim, emb_dim, hid_dim,
                         n_layers, kernel_size, max_seq_len)

    x = jax.random.randint(kx, (B, T_dec), 0, output_dim)
    encoder_conved = jax.random.normal(k1, (B, T_enc, emb_dim), jnp.float32)
    encoder_combined = jax.random.normal(k2, (B, T_enc, emb_dim), jnp.float32)
    pred_conved = jax.random.normal(k3, (B, T_dec, emb_dim), jnp.float32)
    pred_combined = jax.random.normal(k4, (B, T_dec, emb_dim), jnp.float32)

    fwd = jax.jit(functools.partial(decoder_feedback_forward,
                                    kernel_size=kernel_size, pad_idx=pad_idx))
    output, attention = fwd(params, x, encoder_conved, encoder_combined,
                            pred_conved, pred_combined)
    jax.block_until_ready((output, attention))

    assert output.shape == (B, T_dec, output_dim)
    assert attention.shape == (B, T_dec, T_dec)
    print("KERNEL_OK")
</pallas_src>

<mosaic_0001>
module attributes {stable_mosaic.version = 11 : i64} {
  func.func @_decoder_feedback_kernel(%arg0: i32, %arg1: memref<16x32xf32, #tpu.memory_space<vmem>>, %arg2: memref<2x16x32xf32, #tpu.memory_space<vmem>>, %arg3: memref<2x16x32xf32, #tpu.memory_space<vmem>>, %arg4: memref<2x8x32xf32, #tpu.memory_space<vmem>>, %arg5: memref<2x8x32xf32, #tpu.memory_space<vmem>>, %arg6: memref<32x32xbf16, #tpu.memory_space<vmem>>, %arg7: memref<1x32xf32, #tpu.memory_space<vmem>>, %arg8: memref<2x96x64xbf16, #tpu.memory_space<vmem>>, %arg9: memref<2x1x64xf32, #tpu.memory_space<vmem>>, %arg10: memref<2x32x32xbf16, #tpu.memory_space<vmem>>, %arg11: memref<2x1x32xf32, #tpu.memory_space<vmem>>, %arg12: memref<2x32x32xbf16, #tpu.memory_space<vmem>>, %arg13: memref<2x1x32xf32, #tpu.memory_space<vmem>>, %arg14: memref<2x32x32xbf16, #tpu.memory_space<vmem>>, %arg15: memref<2x1x32xf32, #tpu.memory_space<vmem>>, %arg16: memref<32x32xbf16, #tpu.memory_space<vmem>>, %arg17: memref<1x32xf32, #tpu.memory_space<vmem>>, %arg18: memref<32x128xbf16, #tpu.memory_space<vmem>>, %arg19: memref<1x128xf32, #tpu.memory_space<vmem>>, %arg20: memref<16x128xf32, #tpu.memory_space<vmem>>, %arg21: memref<2x8x128xf32, #tpu.memory_space<vmem>>) attributes {dimension_semantics = [#tpu.dimension_semantics<parallel>], iteration_bounds = array<i64: 2>, scalar_prefetch = 0 : i64, scratch_operands = 0 : i64, tpu.core_type = #tpu.core_type<tc>, window_params = [{transform_indices = @transform_0, window_bounds = array<i64: 16, 32>}, {transform_indices = @transform_1, window_bounds = array<i64: 2, 16, 32>}, {transform_indices = @transform_2, window_bounds = array<i64: 2, 16, 32>}, {transform_indices = @transform_3, window_bounds = array<i64: 2, 8, 32>}, {transform_indices = @transform_4, window_bounds = array<i64: 2, 8, 32>}, {pipeline_mode = #tpu.pipeline_mode<synchronous>, transform_indices = @transform_5, window_bounds = array<i64: 32, 32>}, {pipeline_mode = #tpu.pipeline_mode<synchronous>, transform_indices = @transform_6, window_bounds = array<i64: 1, 32>}, {pipeline_mode = #tpu.pipeline_mode<synchronous>, transform_indices = @transform_7, window_bounds = array<i64: 2, 96, 64>}, {pipeline_mode = #tpu.pipeline_mode<synchronous>, transform_indices = @transform_8, window_bounds = array<i64: 2, 1, 64>}, {pipeline_mode = #tpu.pipeline_mode<synchronous>, transform_indices = @transform_9, window_bounds = array<i64: 2, 32, 32>}, {pipeline_mode = #tpu.pipeline_mode<synchronous>, transform_indices = @transform_10, window_bounds = array<i64: 2, 1, 32>}, {pipeline_mode = #tpu.pipeline_mode<synchronous>, transform_indices = @transform_11, window_bounds = array<i64: 2, 32, 32>}, {pipeline_mode = #tpu.pipeline_mode<synchronous>, transform_indices = @transform_12, window_bounds = array<i64: 2, 1, 32>}, {pipeline_mode = #tpu.pipeline_mode<synchronous>, transform_indices = @transform_13, window_bounds = array<i64: 2, 32, 32>}, {pipeline_mode = #tpu.pipeline_mode<synchronous>, transform_indices = @transform_14, window_bounds = array<i64: 2, 1, 32>}, {pipeline_mode = #tpu.pipeline_mode<synchronous>, transform_indices = @transform_15, window_bounds = array<i64: 32, 32>}, {pipeline_mode = #tpu.pipeline_mode<synchronous>, transform_indices = @transform_16, window_bounds = array<i64: 1, 32>}, {pipeline_mode = #tpu.pipeline_mode<synchronous>, transform_indices = @transform_17, window_bounds = array<i64: 32, 128>}, {pipeline_mode = #tpu.pipeline_mode<synchronous>, transform_indices = @transform_18, window_bounds = array<i64: 1, 128>}, {transform_indices = @transform_19, window_bounds = array<i64: 16, 128>}, {transform_indices = @transform_20, window_bounds = array<i64: 2, 8, 128>}]} {
    %c0 = arith.constant 0 : index
    %c0_0 = arith.constant 0 : index
    %0 = vector.load %arg1[%c0, %c0_0] : memref<16x32xf32, #tpu.memory_space<vmem>>, vector<16x32xf32>
    %c0_1 = arith.constant 0 : index
    %c0_2 = arith.constant 0 : index
    %c0_3 = arith.constant 0 : index
    %1 = vector.load %arg2[%c0_1, %c0_2, %c0_3] : memref<2x16x32xf32, #tpu.memory_space<vmem>>, vector<1x16x32xf32>
    %2 = vector.shape_cast %1 : vector<1x16x32xf32> to vector<16x32xf32>
    %3 = arith.truncf %2 : vector<16x32xf32> to vector<16x32xbf16>
    %c1 = arith.constant 1 : index
    %c0_4 = arith.constant 0 : index
    %c0_5 = arith.constant 0 : index
    %4 = vector.load %arg2[%c1, %c0_4, %c0_5] : memref<2x16x32xf32, #tpu.memory_space<vmem>>, vector<1x16x32xf32>
    %5 = vector.shape_cast %4 : vector<1x16x32xf32> to vector<16x32xf32>
    %6 = arith.truncf %5 : vector<16x32xf32> to vector<16x32xbf16>
    %c0_6 = arith.constant 0 : index
    %c0_7 = arith.constant 0 : index
    %c0_8 = arith.constant 0 : index
    %7 = vector.load %arg3[%c0_6, %c0_7, %c0_8] : memref<2x16x32xf32, #tpu.memory_space<vmem>>, vector<1x16x32xf32>
    %8 = vector.shape_cast %7 : vector<1x16x32xf32> to vector<16x32xf32>
    %9 = arith.truncf %8 : vector<16x32xf32> to vector<16x32xbf16>
    %c1_9 = arith.constant 1 : index
    %c0_10 = arith.constant 0 : index
    %c0_11 = arith.constant 0 : index
    %10 = vector.load %arg3[%c1_9, %c0_10, %c0_11] : memref<2x16x32xf32, #tpu.memory_space<vmem>>, vector<1x16x32xf32>
    %11 = vector.shape_cast %10 : vector<1x16x32xf32> to vector<16x32xf32>
    %12 = arith.truncf %11 : vector<16x32xf32> to vector<16x32xbf16>
    %c0_12 = arith.constant 0 : index
    %c0_13 = arith.constant 0 : index
    %c0_14 = arith.constant 0 : index
    %13 = vector.load %arg4[%c0_12, %c0_13, %c0_14] : memref<2x8x32xf32, #tpu.memory_space<vmem>>, vector<1x8x32xf32>
    %14 = vector.shape_cast %13 : vector<1x8x32xf32> to vector<8x32xf32>
    %15 = arith.truncf %14 : vector<8x32xf32> to vector<8x32xbf16>
    %c1_15 = arith.constant 1 : index
    %c0_16 = arith.constant 0 : index
    %c0_17 = arith.constant 0 : index
    %16 = vector.load %arg4[%c1_15, %c0_16, %c0_17] : memref<2x8x32xf32, #tpu.memory_space<vmem>>, vector<1x8x32xf32>
    %17 = vector.shape_cast %16 : vector<1x8x32xf32> to vector<8x32xf32>
    %18 = arith.truncf %17 : vector<8x32xf32> to vector<8x32xbf16>
    %c0_18 = arith.constant 0 : index
    %c0_19 = arith.constant 0 : index
    %c0_20 = arith.constant 0 : index
    %19 = vector.load %arg5[%c0_18, %c0_19, %c0_20] : memref<2x8x32xf32, #tpu.memory_space<vmem>>, vector<1x8x32xf32>
    %20 = vector.shape_cast %19 : vector<1x8x32xf32> to vector<8x32xf32>
    %21 = arith.truncf %20 : vector<8x32xf32> to vector<8x32xbf16>
    %c1_21 = arith.constant 1 : index
    %c0_22 = arith.constant 0 : index
    %c0_23 = arith.constant 0 : index
    %22 = vector.load %arg5[%c1_21, %c0_22, %c0_23] : memref<2x8x32xf32, #tpu.memory_space<vmem>>, vector<1x8x32xf32>
    %23 = vector.shape_cast %22 : vector<1x8x32xf32> to vector<8x32xf32>
    %24 = arith.truncf %23 : vector<8x32xf32> to vector<8x32xbf16>
    %25 = tpu.iota {dimensions = array<i32: 0>} : vector<16x32xi32>
    %c8_i32 = arith.constant 8 : i32
    %c0_i32 = arith.constant 0 : i32
    %26 = arith.cmpi eq, %c8_i32, %c0_i32 : i32
    %c1_i32 = arith.constant 1 : i32
    %27 = arith.select %26, %c1_i32, %c8_i32 : i32
    %28 = vector.broadcast %27 : i32 to vector<16x32xi32>
    %29 = arith.remsi %25, %28 : vector<16x32xi32>
    %c0_i32_24 = arith.constant 0 : i32
    %30 = vector.broadcast %c0_i32_24 : i32 to vector<16x32xi32>
    %31 = arith.cmpi ne, %29, %30 : vector<16x32xi32>
    %c0_i32_25 = arith.constant 0 : i32
    %32 = vector.broadcast %c0_i32_25 : i32 to vector<16x32xi32>
    %33 = arith.cmpi slt, %29, %32 : vector<16x32xi32>
    %c0_i32_26 = arith.constant 0 : i32
    %34 = arith.cmpi slt, %27, %c0_i32_26 : i32
    %35 = vector.broadcast %34 : i1 to vector<16x32xi1>
    %36 = vector.broadcast %35 : vector<16x32xi1> to vector<16x32xi1>
    %37 = arith.xori %33, %36 : vector<16x32xi1>
    %38 = arith.andi %37, %31 : vector<16x32xi1>
    %39 = vector.broadcast %27 : i32 to vector<16x32xi32>
    %40 = arith.addi %29, %39 : vector<16x32xi32>
    %41 = arith.select %38, %40, %29 : vector<16x32xi1>, vector<16x32xi32>
    %cst = arith.constant 0.000000e+00 : f32
    %42 = vector.broadcast %cst : f32 to vector<2x32xf32>
    %c0_27 = arith.constant 0 : index
    %c0_28 = arith.constant 0 : index
    %43 = vector.load %arg6[%c0_27, %c0_28] : memref<32x32xbf16, #tpu.memory_space<vmem>>, vector<32x32xbf16>
    %44 = arith.truncf %0 : vector<16x32xf32> to vector<16x32xbf16>
    %cst_29 = arith.constant dense<0.000000e+00> : vector<16x32xf32>
    %45 = tpu.matmul %44, %43, %cst_29 {dimension_numbers = #tpu.dot_dimension_numbers<[1], [0], [0], [1], [0, 0, 1, 1], [], []>} : vector<16x32xbf16>, vector<32x32xbf16>, vector<16x32xf32> -> vector<16x32xf32>
    %c0_30 = arith.constant 0 : index
    %c0_31 = arith.constant 0 : index
    %46 = vector.load %arg7[%c0_30, %c0_31] : memref<1x32xf32, #tpu.memory_space<vmem>>, vector<1x32xf32>
    %47 = vector.broadcast %46 : vector<1x32xf32> to vector<16x32xf32>
    %48 = arith.addf %45, %47 : vector<16x32xf32>
    %49 = tpu.concatenate %42, %48 in 0 : vector<2x32xf32>, vector<16x32xf32> -> vector<18x32xf32>
    %50 = vector.extract_strided_slice %49 {offsets = [0, 0], sizes = [16, 32], strides = [1, 1]} : vector<18x32xf32> to vector<16x32xf32>
    %c2_i32 = arith.constant 2 : i32
    %51 = vector.broadcast %c2_i32 : i32 to vector<16x32xi32>
    %52 = arith.cmpi slt, %41, %51 : vector<16x32xi32>
    %cst_32 = arith.constant 0.000000e+00 : f32
    %53 = vector.broadcast %cst_32 : f32 to vector<16x32xf32>
    %54 = arith.select %52, %53, %50 : vector<16x32xi1>, vector<16x32xf32>
    %55 = vector.extract_strided_slice %49 {offsets = [1, 0], sizes = [16, 32], strides = [1, 1]} : vector<18x32xf32> to vector<16x32xf32>
    %c1_i32_33 = arith.constant 1 : i32
    %56 = vector.broadcast %c1_i32_33 : i32 to vector<16x32xi32>
    %57 = arith.cmpi slt, %41, %56 : vector<16x32xi32>
    %cst_34 = arith.constant 0.000000e+00 : f32
    %58 = vector.broadcast %cst_34 : f32 to vector<16x32xf32>
    %59 = arith.select %57, %58, %55 : vector<16x32xi1>, vector<16x32xf32>
    %60 = vector.extract_strided_slice %49 {offsets = [2, 0], sizes = [16, 32], strides = [1, 1]} : vector<18x32xf32> to vector<16x32xf32>
    %61 = tpu.concatenate %54, %59, %60 in 1 : vector<16x32xf32>, vector<16x32xf32>, vector<16x32xf32> -> vector<16x96xf32>
    %c0_35 = arith.constant 0 : index
    %c0_36 = arith.constant 0 : index
    %c0_37 = arith.constant 0 : index
    %62 = vector.load %arg8[%c0_35, %c0_36, %c0_37] : memref<2x96x64xbf16, #tpu.memory_space<vmem>>, vector<1x96x64xbf16>
    %63 = vector.shape_cast %62 : vector<1x96x64xbf16> to vector<96x64xbf16>
    %64 = arith.truncf %61 : vector<16x96xf32> to vector<16x96xbf16>
    %cst_38 = arith.constant dense<0.000000e+00> : vector<16x64xf32>
    %65 = tpu.matmul %64, %63, %cst_38 {dimension_numbers = #tpu.dot_dimension_numbers<[1], [0], [0], [1], [0, 0, 1, 1], [], []>} : vector<16x96xbf16>, vector<96x64xbf16>, vector<16x64xf32> -> vector<16x64xf32>
    %c0_39 = arith.constant 0 : index
    %c0_40 = arith.constant 0 : index
    %c0_41 = arith.constant 0 : index
    %66 = vector.load %arg9[%c0_39, %c0_40, %c0_41] : memref<2x1x64xf32, #tpu.memory_space<vmem>>, vector<1x1x64xf32>
    %67 = vector.shape_cast %66 : vector<1x1x64xf32> to vector<1x64xf32>
    %68 = vector.broadcast %67 : vector<1x64xf32> to vector<16x64xf32>
    %69 = arith.addf %65, %68 : vector<16x64xf32>
    %70 = vector.extract_strided_slice %69 {offsets = [0, 0], sizes = [16, 32], strides = [1, 1]} : vector<16x64xf32> to vector<16x32xf32>
    %71 = vector.extract_strided_slice %69 {offsets = [0, 32], sizes = [16, 32], strides = [1, 1]} : vector<16x64xf32> to vector<16x32xf32>
    %cst_42 = arith.constant 0.000000e+00 : f32
    %72 = vector.broadcast %cst_42 : f32 to vector<16x32xf32>
    %73 = arith.subf %72, %71 : vector<16x32xf32>
    %74 = math.exp %73 : vector<16x32xf32>
    %cst_43 = arith.constant 1.000000e+00 : f32
    %75 = vector.broadcast %cst_43 : f32 to vector<16x32xf32>
    %76 = arith.addf %75, %74 : vector<16x32xf32>
    %77 = tpu.reciprocal %76 {approx = true} : vector<16x32xf32> -> vector<16x32xf32>
    %78 = arith.mulf %70, %77 : vector<16x32xf32>
    %c0_44 = arith.constant 0 : index
    %c0_45 = arith.constant 0 : index
    %c0_46 = arith.constant 0 : index
    %79 = vector.load %arg10[%c0_44, %c0_45, %c0_46] : memref<2x32x32xbf16, #tpu.memory_space<vmem>>, vector<1x32x32xbf16>
    %80 = vector.shape_cast %79 : vector<1x32x32xbf16> to vector<32x32xbf16>
    %81 = arith.truncf %78 : vector<16x32xf32> to vector<16x32xbf16>
    %cst_47 = arith.constant dense<0.000000e+00> : vector<16x32xf32>
    %82 = tpu.matmul %81, %80, %cst_47 {dimension_numbers = #tpu.dot_dimension_numbers<[1], [0], [0], [1], [0, 0, 1, 1], [], []>} : vector<16x32xbf16>, vector<32x32xbf16>, vector<16x32xf32> -> vector<16x32xf32>
    %c0_48 = arith.constant 0 : index
    %c0_49 = arith.constant 0 : index
    %c0_50 = arith.constant 0 : index
    %83 = vector.load %arg11[%c0_48, %c0_49, %c0_50] : memref<2x1x32xf32, #tpu.memory_space<vmem>>, vector<1x1x32xf32>
    %84 = vector.shape_cast %83 : vector<1x1x32xf32> to vector<1x32xf32>
    %85 = vector.broadcast %84 : vector<1x32xf32> to vector<16x32xf32>
    %86 = arith.addf %82, %85 : vector<16x32xf32>
    %87 = arith.addf %0, %86 : vector<16x32xf32>
    %cst_51 = arith.constant 0.707106769 : f32
    %88 = vector.broadcast %cst_51 : f32 to vector<16x32xf32>
    %89 = arith.mulf %87, %88 : vector<16x32xf32>
    %90 = vector.extract_strided_slice %89 {offsets = [0, 0], sizes = [8, 32], strides = [1, 1]} : vector<16x32xf32> to vector<8x32xf32>
    %91 = arith.truncf %90 : vector<8x32xf32> to vector<8x32xbf16>
    %cst_52 = arith.constant dense<0.000000e+00> : vector<8x16xf32>
    %92 = tpu.matmul %91, %3, %cst_52 {dimension_numbers = #tpu.dot_dimension_numbers<[1], [1], [0], [0], [0, 0, 1, 0], [], []>} : vector<8x32xbf16>, vector<16x32xbf16>, vector<8x16xf32> -> vector<8x16xf32>
    %cst_53 = arith.constant dense<0xFF800000> : vector<8xf32>
    %93 = vector.multi_reduction <maximumf>, %92, %cst_53 [1] : vector<8x16xf32> to vector<8xf32>
    %94 = vector.shape_cast %93 : vector<8xf32> to vector<8x1xf32>
    %95 = vector.broadcast %94 : vector<8x1xf32> to vector<8x16xf32>
    %96 = arith.subf %92, %95 : vector<8x16xf32>
    %97 = math.exp %96 : vector<8x16xf32>
    %cst_54 = arith.constant dense<0.000000e+00> : vector<8xf32>
    %98 = vector.multi_reduction <add>, %97, %cst_54 [1] : vector<8x16xf32> to vector<8xf32>
    %99 = vector.shape_cast %98 : vector<8xf32> to vector<8x1xf32>
    %100 = tpu.reciprocal %99 {approx = true} : vector<8x1xf32> -> vector<8x1xf32>
    %101 = vector.broadcast %100 : vector<8x1xf32> to vector<8x16xf32>
    %102 = arith.mulf %97, %101 : vector<8x16xf32>
    %103 = arith.truncf %102 : vector<8x16xf32> to vector<8x16xbf16>
    %cst_55 = arith.constant dense<0.000000e+00> : vector<8x32xf32>
    %104 = tpu.matmul %103, %9, %cst_55 {dimension_numbers = #tpu.dot_dimension_numbers<[1], [0], [0], [1], [0, 0, 1, 1], [], []>} : vector<8x16xbf16>, vector<16x32xbf16>, vector<8x32xf32> -> vector<8x32xf32>
    %105 = arith.truncf %90 : vector<8x32xf32> to vector<8x32xbf16>
    %cst_56 = arith.constant dense<0.000000e+00> : vector<8x8xf32>
    %106 = tpu.matmul %105, %15, %cst_56 {dimension_numbers = #tpu.dot_dimension_numbers<[1], [1], [0], [0], [0, 0, 1, 0], [], []>} : vector<8x32xbf16>, vector<8x32xbf16>, vector<8x8xf32> -> vector<8x8xf32>
    %cst_57 = arith.constant dense<0xFF800000> : vector<8xf32>
    %107 = vector.multi_reduction <maximumf>, %106, %cst_57 [1] : vector<8x8xf32> to vector<8xf32>
    %108 = vector.shape_cast %107 : vector<8xf32> to vector<8x1xf32>
    %109 = vector.broadcast %108 : vector<8x1xf32> to vector<8x8xf32>
    %110 = arith.subf %106, %109 : vector<8x8xf32>
    %111 = math.exp %110 : vector<8x8xf32>
    %cst_58 = arith.constant dense<0.000000e+00> : vector<8xf32>
    %112 = vector.multi_reduction <add>, %111, %cst_58 [1] : vector<8x8xf32> to vector<8xf32>
    %113 = vector.shape_cast %112 : vector<8xf32> to vector<8x1xf32>
    %114 = tpu.reciprocal %113 {approx = true} : vector<8x1xf32> -> vector<8x1xf32>
    %115 = vector.broadcast %114 : vector<8x1xf32> to vector<8x8xf32>
    %116 = arith.mulf %111, %115 : vector<8x8xf32>
    %117 = arith.truncf %116 : vector<8x8xf32> to vector<8x8xbf16>
    %cst_59 = arith.constant dense<0.000000e+00> : vector<8x32xf32>
    %118 = tpu.matmul %117, %21, %cst_59 {dimension_numbers = #tpu.dot_dimension_numbers<[1], [0], [0], [1], [0, 0, 1, 1], [], []>} : vector<8x8xbf16>, vector<8x32xbf16>, vector<8x32xf32> -> vector<8x32xf32>
    %119 = vector.extract_strided_slice %89 {offsets = [8, 0], sizes = [8, 32], strides = [1, 1]} : vector<16x32xf32> to vector<8x32xf32>
    %120 = arith.truncf %119 : vector<8x32xf32> to vector<8x32xbf16>
    %cst_60 = arith.constant dense<0.000000e+00> : vector<8x16xf32>
    %121 = tpu.matmul %120, %6, %cst_60 {dimension_numbers = #tpu.dot_dimension_numbers<[1], [1], [0], [0], [0, 0, 1, 0], [], []>} : vector<8x32xbf16>, vector<16x32xbf16>, vector<8x16xf32> -> vector<8x16xf32>
    %cst_61 = arith.constant dense<0xFF800000> : vector<8xf32>
    %122 = vector.multi_reduction <maximumf>, %121, %cst_61 [1] : vector<8x16xf32> to vector<8xf32>
    %123 = vector.shape_cast %122 : vector<8xf32> to vector<8x1xf32>
    %124 = vector.broadcast %123 : vector<8x1xf32> to vector<8x16xf32>
    %125 = arith.subf %121, %124 : vector<8x16xf32>
    %126 = math.exp %125 : vector<8x16xf32>
    %cst_62 = arith.constant dense<0.000000e+00> : vector<8xf32>
    %127 = vector.multi_reduction <add>, %126, %cst_62 [1] : vector<8x16xf32> to vector<8xf32>
    %128 = vector.shape_cast %127 : vector<8xf32> to vector<8x1xf32>
    %129 = tpu.reciprocal %128 {approx = true} : vector<8x1xf32> -> vector<8x1xf32>
    %130 = vector.broadcast %129 : vector<8x1xf32> to vector<8x16xf32>
    %131 = arith.mulf %126, %130 : vector<8x16xf32>
    %132 = arith.truncf %131 : vector<8x16xf32> to vector<8x16xbf16>
    %cst_63 = arith.constant dense<0.000000e+00> : vector<8x32xf32>
    %133 = tpu.matmul %132, %12, %cst_63 {dimension_numbers = #tpu.dot_dimension_numbers<[1], [0], [0], [1], [0, 0, 1, 1], [], []>} : vector<8x16xbf16>, vector<16x32xbf16>, vector<8x32xf32> -> vector<8x32xf32>
    %134 = arith.truncf %119 : vector<8x32xf32> to vector<8x32xbf16>
    %cst_64 = arith.constant dense<0.000000e+00> : vector<8x8xf32>
    %135 = tpu.matmul %134, %18, %cst_64 {dimension_numbers = #tpu.dot_dimension_numbers<[1], [1], [0], [0], [0, 0, 1, 0], [], []>} : vector<8x32xbf16>, vector<8x32xbf16>, vector<8x8xf32> -> vector<8x8xf32>
    %cst_65 = arith.constant dense<0xFF800000> : vector<8xf32>
    %136 = vector.multi_reduction <maximumf>, %135, %cst_65 [1] : vector<8x8xf32> to vector<8xf32>
    %137 = vector.shape_cast %136 : vector<8xf32> to vector<8x1xf32>
    %138 = vector.broadcast %137 : vector<8x1xf32> to vector<8x8xf32>
    %139 = arith.subf %135, %138 : vector<8x8xf32>
    %140 = math.exp %139 : vector<8x8xf32>
    %cst_66 = arith.constant dense<0.000000e+00> : vector<8xf32>
    %141 = vector.multi_reduction <add>, %140, %cst_66 [1] : vector<8x8xf32> to vector<8xf32>
    %142 = vector.shape_cast %141 : vector<8xf32> to vector<8x1xf32>
    %143 = tpu.reciprocal %142 {approx = true} : vector<8x1xf32> -> vector<8x1xf32>
    %144 = vector.broadcast %143 : vector<8x1xf32> to vector<8x8xf32>
    %145 = arith.mulf %140, %144 : vector<8x8xf32>
    %146 = arith.truncf %145 : vector<8x8xf32> to vector<8x8xbf16>
    %cst_67 = arith.constant dense<0.000000e+00> : vector<8x32xf32>
    %147 = tpu.matmul %146, %24, %cst_67 {dimension_numbers = #tpu.dot_dimension_numbers<[1], [0], [0], [1], [0, 0, 1, 1], [], []>} : vector<8x8xbf16>, vector<8x32xbf16>, vector<8x32xf32> -> vector<8x32xf32>
    %148 = tpu.concatenate %104, %133 in 0 : vector<8x32xf32>, vector<8x32xf32> -> vector<16x32xf32>
    %149 = tpu.concatenate %118, %147 in 0 : vector<8x32xf32>, vector<8x32xf32> -> vector<16x32xf32>
    %c0_68 = arith.constant 0 : index
    %c0_69 = arith.constant 0 : index
    %c0_70 = arith.constant 0 : index
    %150 = vector.load %arg12[%c0_68, %c0_69, %c0_70] : memref<2x32x32xbf16, #tpu.memory_space<vmem>>, vector<1x32x32xbf16>
    %151 = vector.shape_cast %150 : vector<1x32x32xbf16> to vector<32x32xbf16>
    %152 = arith.truncf %148 : vector<16x32xf32> to vector<16x32xbf16>
    %cst_71 = arith.constant dense<0.000000e+00> : vector<16x32xf32>
    %153 = tpu.matmul %152, %151, %cst_71 {dimension_numbers = #tpu.dot_dimension_numbers<[1], [0], [0], [1], [0, 0, 1, 1], [], []>} : vector<16x32xbf16>, vector<32x32xbf16>, vector<16x32xf32> -> vector<16x32xf32>
    %c0_72 = arith.constant 0 : index
    %c0_73 = arith.constant 0 : index
    %c0_74 = arith.constant 0 : index
    %154 = vector.load %arg13[%c0_72, %c0_73, %c0_74] : memref<2x1x32xf32, #tpu.memory_space<vmem>>, vector<1x1x32xf32>
    %155 = vector.shape_cast %154 : vector<1x1x32xf32> to vector<1x32xf32>
    %156 = vector.broadcast %155 : vector<1x32xf32> to vector<16x32xf32>
    %157 = arith.addf %153, %156 : vector<16x32xf32>
    %158 = arith.addf %78, %157 : vector<16x32xf32>
    %cst_75 = arith.constant 0.707106769 : f32
    %159 = vector.broadcast %cst_75 : f32 to vector<16x32xf32>
    %160 = arith.mulf %158, %159 : vector<16x32xf32>
    %c0_76 = arith.constant 0 : index
    %c0_77 = arith.constant 0 : index
    %c0_78 = arith.constant 0 : index
    %161 = vector.load %arg14[%c0_76, %c0_77, %c0_78] : memref<2x32x32xbf16, #tpu.memory_space<vmem>>, vector<1x32x32xbf16>
    %162 = vector.shape_cast %161 : vector<1x32x32xbf16> to vector<32x32xbf16>
    %163 = arith.truncf %149 : vector<16x32xf32> to vector<16x32xbf16>
    %cst_79 = arith.constant dense<0.000000e+00> : vector<16x32xf32>
    %164 = tpu.matmul %163, %162, %cst_79 {dimension_numbers = #tpu.dot_dimension_numbers<[1], [0], [0], [1], [0, 0, 1, 1], [], []>} : vector<16x32xbf16>, vector<32x32xbf16>, vector<16x32xf32> -> vector<16x32xf32>
    %c0_80 = arith.constant 0 : index
    %c0_81 = arith.constant 0 : index
    %c0_82 = arith.constant 0 : index
    %165 = vector.load %arg15[%c0_80, %c0_81, %c0_82] : memref<2x1x32xf32, #tpu.memory_space<vmem>>, vector<1x1x32xf32>
    %166 = vector.shape_cast %165 : vector<1x1x32xf32> to vector<1x32xf32>
    %167 = vector.broadcast %166 : vector<1x32xf32> to vector<16x32xf32>
    %168 = arith.addf %164, %167 : vector<16x32xf32>
    %169 = arith.addf %78, %168 : vector<16x32xf32>
    %cst_83 = arith.constant 0.707106769 : f32
    %170 = vector.broadcast %cst_83 : f32 to vector<16x32xf32>
    %171 = arith.mulf %169, %170 : vector<16x32xf32>
    %172 = arith.addf %160, %171 : vector<16x32xf32>
    %173 = arith.addf %172, %48 : vector<16x32xf32>
    %cst_84 = arith.constant 0.707106769 : f32
    %174 = vector.broadcast %cst_84 : f32 to vector<16x32xf32>
    %175 = arith.mulf %173, %174 : vector<16x32xf32>
    %176 = tpu.concatenate %42, %175 in 0 : vector<2x32xf32>, vector<16x32xf32> -> vector<18x32xf32>
    %177 = vector.extract_strided_slice %176 {offsets = [0, 0], sizes = [16, 32], strides = [1, 1]} : vector<18x32xf32> to vector<16x32xf32>
    %c2_i32_85 = arith.constant 2 : i32
    %178 = vector.broadcast %c2_i32_85 : i32 to vector<16x32xi32>
    %179 = arith.cmpi slt, %41, %178 : vector<16x32xi32>
    %cst_86 = arith.constant 0.000000e+00 : f32
    %180 = vector.broadcast %cst_86 : f32 to vector<16x32xf32>
    %181 = arith.select %179, %180, %177 : vector<16x32xi1>, vector<16x32xf32>
    %182 = vector.extract_strided_slice %176 {offsets = [1, 0], sizes = [16, 32], strides = [1, 1]} : vector<18x32xf32> to vector<16x32xf32>
    %c1_i32_87 = arith.constant 1 : i32
    %183 = vector.broadcast %c1_i32_87 : i32 to vector<16x32xi32>
    %184 = arith.cmpi slt, %41, %183 : vector<16x32xi32>
    %cst_88 = arith.constant 0.000000e+00 : f32
    %185 = vector.broadcast %cst_88 : f32 to vector<16x32xf32>
    %186 = arith.select %184, %185, %182 : vector<16x32xi1>, vector<16x32xf32>
    %187 = vector.extract_strided_slice %176 {offsets = [2, 0], sizes = [16, 32], strides = [1, 1]} : vector<18x32xf32> to vector<16x32xf32>
    %188 = tpu.concatenate %181, %186, %187 in 1 : vector<16x32xf32>, vector<16x32xf32>, vector<16x32xf32> -> vector<16x96xf32>
    %c1_89 = arith.constant 1 : index
    %c0_90 = arith.constant 0 : index
    %c0_91 = arith.constant 0 : index
    %189 = vector.load %arg8[%c1_89, %c0_90, %c0_91] : memref<2x96x64xbf16, #tpu.memory_space<vmem>>, vector<1x96x64xbf16>
    %190 = vector.shape_cast %189 : vector<1x96x64xbf16> to vector<96x64xbf16>
    %191 = arith.truncf %188 : vector<16x96xf32> to vector<16x96xbf16>
    %cst_92 = arith.constant dense<0.000000e+00> : vector<16x64xf32>
    %192 = tpu.matmul %191, %190, %cst_92 {dimension_numbers = #tpu.dot_dimension_numbers<[1], [0], [0], [1], [0, 0, 1, 1], [], []>} : vector<16x96xbf16>, vector<96x64xbf16>, vector<16x64xf32> -> vector<16x64xf32>
    %c1_93 = arith.constant 1 : index
    %c0_94 = arith.constant 0 : index
    %c0_95 = arith.constant 0 : index
    %193 = vector.load %arg9[%c1_93, %c0_94, %c0_95] : memref<2x1x64xf32, #tpu.memory_space<vmem>>, vector<1x1x64xf32>
    %194 = vector.shape_cast %193 : vector<1x1x64xf32> to vector<1x64xf32>
    %195 = vector.broadcast %194 : vector<1x64xf32> to vector<16x64xf32>
    %196 = arith.addf %192, %195 : vector<16x64xf32>
    %197 = vector.extract_strided_slice %196 {offsets = [0, 0], sizes = [16, 32], strides = [1, 1]} : vector<16x64xf32> to vector<16x32xf32>
    %198 = vector.extract_strided_slice %196 {offsets = [0, 32], sizes = [16, 32], strides = [1, 1]} : vector<16x64xf32> to vector<16x32xf32>
    %cst_96 = arith.constant 0.000000e+00 : f32
    %199 = vector.broadcast %cst_96 : f32 to vector<16x32xf32>
    %200 = arith.subf %199, %198 : vector<16x32xf32>
    %201 = math.exp %200 : vector<16x32xf32>
    %cst_97 = arith.constant 1.000000e+00 : f32
    %202 = vector.broadcast %cst_97 : f32 to vector<16x32xf32>
    %203 = arith.addf %202, %201 : vector<16x32xf32>
    %204 = tpu.reciprocal %203 {approx = true} : vector<16x32xf32> -> vector<16x32xf32>
    %205 = arith.mulf %197, %204 : vector<16x32xf32>
    %c1_98 = arith.constant 1 : index
    %c0_99 = arith.constant 0 : index
    %c0_100 = arith.constant 0 : index
    %206 = vector.load %arg10[%c1_98, %c0_99, %c0_100] : memref<2x32x32xbf16, #tpu.memory_space<vmem>>, vector<1x32x32xbf16>
    %207 = vector.shape_cast %206 : vector<1x32x32xbf16> to vector<32x32xbf16>
    %208 = arith.truncf %205 : vector<16x32xf32> to vector<16x32xbf16>
    %cst_101 = arith.constant dense<0.000000e+00> : vector<16x32xf32>
    %209 = tpu.matmul %208, %207, %cst_101 {dimension_numbers = #tpu.dot_dimension_numbers<[1], [0], [0], [1], [0, 0, 1, 1], [], []>} : vector<16x32xbf16>, vector<32x32xbf16>, vector<16x32xf32> -> vector<16x32xf32>
    %c1_102 = arith.constant 1 : index
    %c0_103 = arith.constant 0 : index
    %c0_104 = arith.constant 0 : index
    %210 = vector.load %arg11[%c1_102, %c0_103, %c0_104] : memref<2x1x32xf32, #tpu.memory_space<vmem>>, vector<1x1x32xf32>
    %211 = vector.shape_cast %210 : vector<1x1x32xf32> to vector<1x32xf32>
    %212 = vector.broadcast %211 : vector<1x32xf32> to vector<16x32xf32>
    %213 = arith.addf %209, %212 : vector<16x32xf32>
    %214 = arith.addf %0, %213 : vector<16x32xf32>
    %cst_105 = arith.constant 0.707106769 : f32
    %215 = vector.broadcast %cst_105 : f32 to vector<16x32xf32>
    %216 = arith.mulf %214, %215 : vector<16x32xf32>
    %217 = vector.extract_strided_slice %216 {offsets = [0, 0], sizes = [8, 32], strides = [1, 1]} : vector<16x32xf32> to vector<8x32xf32>
    %218 = arith.truncf %217 : vector<8x32xf32> to vector<8x32xbf16>
    %cst_106 = arith.constant dense<0.000000e+00> : vector<8x16xf32>
    %219 = tpu.matmul %218, %3, %cst_106 {dimension_numbers = #tpu.dot_dimension_numbers<[1], [1], [0], [0], [0, 0, 1, 0], [], []>} : vector<8x32xbf16>, vector<16x32xbf16>, vector<8x16xf32> -> vector<8x16xf32>
    %cst_107 = arith.constant dense<0xFF800000> : vector<8xf32>
    %220 = vector.multi_reduction <maximumf>, %219, %cst_107 [1] : vector<8x16xf32> to vector<8xf32>
    %221 = vector.shape_cast %220 : vector<8xf32> to vector<8x1xf32>
    %222 = vector.broadcast %221 : vector<8x1xf32> to vector<8x16xf32>
    %223 = arith.subf %219, %222 : vector<8x16xf32>
    %224 = math.exp %223 : vector<8x16xf32>
    %cst_108 = arith.constant dense<0.000000e+00> : vector<8xf32>
    %225 = vector.multi_reduction <add>, %224, %cst_108 [1] : vector<8x16xf32> to vector<8xf32>
    %226 = vector.shape_cast %225 : vector<8xf32> to vector<8x1xf32>
    %227 = tpu.reciprocal %226 {approx = true} : vector<8x1xf32> -> vector<8x1xf32>
    %228 = vector.broadcast %227 : vector<8x1xf32> to vector<8x16xf32>
    %229 = arith.mulf %224, %228 : vector<8x16xf32>
    %230 = arith.truncf %229 : vector<8x16xf32> to vector<8x16xbf16>
    %cst_109 = arith.constant dense<0.000000e+00> : vector<8x32xf32>
    %231 = tpu.matmul %230, %9, %cst_109 {dimension_numbers = #tpu.dot_dimension_numbers<[1], [0], [0], [1], [0, 0, 1, 1], [], []>} : vector<8x16xbf16>, vector<16x32xbf16>, vector<8x32xf32> -> vector<8x32xf32>
    %232 = arith.truncf %217 : vector<8x32xf32> to vector<8x32xbf16>
    %cst_110 = arith.constant dense<0.000000e+00> : vector<8x8xf32>
    %233 = tpu.matmul %232, %15, %cst_110 {dimension_numbers = #tpu.dot_dimension_numbers<[1], [1], [0], [0], [0, 0, 1, 0], [], []>} : vector<8x32xbf16>, vector<8x32xbf16>, vector<8x8xf32> -> vector<8x8xf32>
    %cst_111 = arith.constant dense<0xFF800000> : vector<8xf32>
    %234 = vector.multi_reduction <maximumf>, %233, %cst_111 [1] : vector<8x8xf32> to vector<8xf32>
    %235 = vector.shape_cast %234 : vector<8xf32> to vector<8x1xf32>
    %236 = vector.broadcast %235 : vector<8x1xf32> to vector<8x8xf32>
    %237 = arith.subf %233, %236 : vector<8x8xf32>
    %238 = math.exp %237 : vector<8x8xf32>
    %cst_112 = arith.constant dense<0.000000e+00> : vector<8xf32>
    %239 = vector.multi_reduction <add>, %238, %cst_112 [1] : vector<8x8xf32> to vector<8xf32>
    %240 = vector.shape_cast %239 : vector<8xf32> to vector<8x1xf32>
    %241 = tpu.reciprocal %240 {approx = true} : vector<8x1xf32> -> vector<8x1xf32>
    %242 = vector.broadcast %241 : vector<8x1xf32> to vector<8x8xf32>
    %243 = arith.mulf %238, %242 : vector<8x8xf32>
    %244 = arith.truncf %243 : vector<8x8xf32> to vector<8x8xbf16>
    %cst_113 = arith.constant dense<0.000000e+00> : vector<8x32xf32>
    %245 = tpu.matmul %244, %21, %cst_113 {dimension_numbers = #tpu.dot_dimension_numbers<[1], [0], [0], [1], [0, 0, 1, 1], [], []>} : vector<8x8xbf16>, vector<8x32xbf16>, vector<8x32xf32> -> vector<8x32xf32>
    %cst_114 = arith.constant 0.000000e+00 : f32
    %246 = vector.broadcast %cst_114 : f32 to vector<8x120xf32>
    %247 = tpu.concatenate %243, %246 in 1 : vector<8x8xf32>, vector<8x120xf32> -> vector<8x128xf32>
    %c0_115 = arith.constant 0 : index
    %c0_116 = arith.constant 0 : index
    %c0_117 = arith.constant 0 : index
    %248 = vector.load %arg21[%c0_115, %c0_116, %c0_117] : memref<2x8x128xf32, #tpu.memory_space<vmem>>, vector<1x8x128xf32>
    %249 = vector.shape_cast %248 : vector<1x8x128xf32> to vector<8x128xf32>
    %250 = vector.shape_cast %247 : vector<8x128xf32> to vector<1x8x128xf32>
    tpu.vector_store %arg21[%c0_115, %c0_116, %c0_117], %250 {strides = array<i32>} : memref<2x8x128xf32, #tpu.memory_space<vmem>>, vector<1x8x128xf32>,
    %251 = vector.extract_strided_slice %216 {offsets = [8, 0], sizes = [8, 32], strides = [1, 1]} : vector<16x32xf32> to vector<8x32xf32>
    %252 = arith.truncf %251 : vector<8x32xf32> to vector<8x32xbf16>
    %cst_118 = arith.constant dense<0.000000e+00> : vector<8x16xf32>
    %253 = tpu.matmul %252, %6, %cst_118 {dimension_numbers = #tpu.dot_dimension_numbers<[1], [1], [0], [0], [0, 0, 1, 0], [], []>} : vector<8x32xbf16>, vector<16x32xbf16>, vector<8x16xf32> -> vector<8x16xf32>
    %cst_119 = arith.constant dense<0xFF800000> : vector<8xf32>
    %254 = vector.multi_reduction <maximumf>, %253, %cst_119 [1] : vector<8x16xf32> to vector<8xf32>
    %255 = vector.shape_cast %254 : vector<8xf32> to vector<8x1xf32>
    %256 = vector.broadcast %255 : vector<8x1xf32> to vector<8x16xf32>
    %257 = arith.subf %253, %256 : vector<8x16xf32>
    %258 = math.exp %257 : vector<8x16xf32>
    %cst_120 = arith.constant dense<0.000000e+00> : vector<8xf32>
    %259 = vector.multi_reduction <add>, %258, %cst_120 [1] : vector<8x16xf32> to vector<8xf32>
    %260 = vector.shape_cast %259 : vector<8xf32> to vector<8x1xf32>
    %261 = tpu.reciprocal %260 {approx = true} : vector<8x1xf32> -> vector<8x1xf32>
    %262 = vector.broadcast %261 : vector<8x1xf32> to vector<8x16xf32>
    %263 = arith.mulf %258, %262 : vector<8x16xf32>
    %264 = arith.truncf %263 : vector<8x16xf32> to vector<8x16xbf16>
    %cst_121 = arith.constant dense<0.000000e+00> : vector<8x32xf32>
    %265 = tpu.matmul %264, %12, %cst_121 {dimension_numbers = #tpu.dot_dimension_numbers<[1], [0], [0], [1], [0, 0, 1, 1], [], []>} : vector<8x16xbf16>, vector<16x32xbf16>, vector<8x32xf32> -> vector<8x32xf32>
    %266 = arith.truncf %251 : vector<8x32xf32> to vector<8x32xbf16>
    %cst_122 = arith.constant dense<0.000000e+00> : vector<8x8xf32>
    %267 = tpu.matmul %266, %18, %cst_122 {dimension_numbers = #tpu.dot_dimension_numbers<[1], [1], [0], [0], [0, 0, 1, 0], [], []>} : vector<8x32xbf16>, vector<8x32xbf16>, vector<8x8xf32> -> vector<8x8xf32>
    %cst_123 = arith.constant dense<0xFF800000> : vector<8xf32>
    %268 = vector.multi_reduction <maximumf>, %267, %cst_123 [1] : vector<8x8xf32> to vector<8xf32>
    %269 = vector.shape_cast %268 : vector<8xf32> to vector<8x1xf32>
    %270 = vector.broadcast %269 : vector<8x1xf32> to vector<8x8xf32>
    %271 = arith.subf %267, %270 : vector<8x8xf32>
    %272 = math.exp %271 : vector<8x8xf32>
    %cst_124 = arith.constant dense<0.000000e+00> : vector<8xf32>
    %273 = vector.multi_reduction <add>, %272, %cst_124 [1] : vector<8x8xf32> to vector<8xf32>
    %274 = vector.shape_cast %273 : vector<8xf32> to vector<8x1xf32>
    %275 = tpu.reciprocal %274 {approx = true} : vector<8x1xf32> -> vector<8x1xf32>
    %276 = vector.broadcast %275 : vector<8x1xf32> to vector<8x8xf32>
    %277 = arith.mulf %272, %276 : vector<8x8xf32>
    %278 = arith.truncf %277 : vector<8x8xf32> to vector<8x8xbf16>
    %cst_125 = arith.constant dense<0.000000e+00> : vector<8x32xf32>
    %279 = tpu.matmul %278, %24, %cst_125 {dimension_numbers = #tpu.dot_dimension_numbers<[1], [0], [0], [1], [0, 0, 1, 1], [], []>} : vector<8x8xbf16>, vector<8x32xbf16>, vector<8x32xf32> -> vector<8x32xf32>
    %cst_126 = arith.constant 0.000000e+00 : f32
    %280 = vector.broadcast %cst_126 : f32 to vector<8x120xf32>
    %281 = tpu.concatenate %277, %280 in 1 : vector<8x8xf32>, vector<8x120xf32> -> vector<8x128xf32>
    %c1_127 = arith.constant 1 : index
    %c0_128 = arith.constant 0 : index
    %c0_129 = arith.constant 0 : index
    %282 = vector.load %arg21[%c1_127, %c0_128, %c0_129] : memref<2x8x128xf32, #tpu.memory_space<vmem>>, vector<1x8x128xf32>
    %283 = vector.shape_cast %282 : vector<1x8x128xf32> to vector<8x128xf32>
    %284 = vector.shape_cast %281 : vector<8x128xf32> to vector<1x8x128xf32>
    tpu.vector_store %arg21[%c1_127, %c0_128, %c0_129], %284 {strides = array<i32>} : memref<2x8x128xf32, #tpu.memory_space<vmem>>, vector<1x8x128xf32>,
    %285 = tpu.concatenate %231, %265 in 0 : vector<8x32xf32>, vector<8x32xf32> -> vector<16x32xf32>
    %286 = tpu.concatenate %245, %279 in 0 : vector<8x32xf32>, vector<8x32xf32> -> vector<16x32xf32>
    %c1_130 = arith.constant 1 : index
    %c0_131 = arith.constant 0 : index
    %c0_132 = arith.constant 0 : index
    %287 = vector.load %arg12[%c1_130, %c0_131, %c0_132] : memref<2x32x32xbf16, #tpu.memory_space<vmem>>, vector<1x32x32xbf16>
    %288 = vector.shape_cast %287 : vector<1x32x32xbf16> to vector<32x32xbf16>
    %289 = arith.truncf %285 : vector<16x32xf32> to vector<16x32xbf16>
    %cst_133 = arith.constant dense<0.000000e+00> : vector<16x32xf32>
    %290 = tpu.matmul %289, %288, %cst_133 {dimension_numbers = #tpu.dot_dimension_numbers<[1], [0], [0], [1], [0, 0, 1, 1], [], []>} : vector<16x32xbf16>, vector<32x32xbf16>, vector<16x32xf32> -> vector<16x32xf32>
    %c1_134 = arith.constant 1 : index
    %c0_135 = arith.constant 0 : index
    %c0_136 = arith.constant 0 : index
    %291 = vector.load %arg13[%c1_134, %c0_135, %c0_136] : memref<2x1x32xf32, #tpu.memory_space<vmem>>, vector<1x1x32xf32>
    %292 = vector.shape_cast %291 : vector<1x1x32xf32> to vector<1x32xf32>
    %293 = vector.broadcast %292 : vector<1x32xf32> to vector<16x32xf32>
    %294 = arith.addf %290, %293 : vector<16x32xf32>
    %295 = arith.addf %205, %294 : vector<16x32xf32>
    %cst_137 = arith.constant 0.707106769 : f32
    %296 = vector.broadcast %cst_137 : f32 to vector<16x32xf32>
    %297 = arith.mulf %295, %296 : vector<16x32xf32>
    %c1_138 = arith.constant 1 : index
    %c0_139 = arith.constant 0 : index
    %c0_140 = arith.constant 0 : index
    %298 = vector.load %arg14[%c1_138, %c0_139, %c0_140] : memref<2x32x32xbf16, #tpu.memory_space<vmem>>, vector<1x32x32xbf16>
    %299 = vector.shape_cast %298 : vector<1x32x32xbf16> to vector<32x32xbf16>
    %300 = arith.truncf %286 : vector<16x32xf32> to vector<16x32xbf16>
    %cst_141 = arith.constant dense<0.000000e+00> : vector<16x32xf32>
    %301 = tpu.matmul %300, %299, %cst_141 {dimension_numbers = #tpu.dot_dimension_numbers<[1], [0], [0], [1], [0, 0, 1, 1], [], []>} : vector<16x32xbf16>, vector<32x32xbf16>, vector<16x32xf32> -> vector<16x32xf32>
    %c1_142 = arith.constant 1 : index
    %c0_143 = arith.constant 0 : index
    %c0_144 = arith.constant 0 : index
    %302 = vector.load %arg15[%c1_142, %c0_143, %c0_144] : memref<2x1x32xf32, #tpu.memory_space<vmem>>, vector<1x1x32xf32>
    %303 = vector.shape_cast %302 : vector<1x1x32xf32> to vector<1x32xf32>
    %304 = vector.broadcast %303 : vector<1x32xf32> to vector<16x32xf32>
    %305 = arith.addf %301, %304 : vector<16x32xf32>
    %306 = arith.addf %205, %305 : vector<16x32xf32>
    %cst_145 = arith.constant 0.707106769 : f32
    %307 = vector.broadcast %cst_145 : f32 to vector<16x32xf32>
    %308 = arith.mulf %306, %307 : vector<16x32xf32>
    %309 = arith.addf %297, %308 : vector<16x32xf32>
    %310 = arith.addf %309, %175 : vector<16x32xf32>
    %cst_146 = arith.constant 0.707106769 : f32
    %311 = vector.broadcast %cst_146 : f32 to vector<16x32xf32>
    %312 = arith.mulf %310, %311 : vector<16x32xf32>
    %c0_147 = arith.constant 0 : index
    %c0_148 = arith.constant 0 : index
    %313 = vector.load %arg16[%c0_147, %c0_148] : memref<32x32xbf16, #tpu.memory_space<vmem>>, vector<32x32xbf16>
    %314 = arith.truncf %312 : vector<16x32xf32> to vector<16x32xbf16>
    %cst_149 = arith.constant dense<0.000000e+00> : vector<16x32xf32>
    %315 = tpu.matmul %314, %313, %cst_149 {dimension_numbers = #tpu.dot_dimension_numbers<[1], [0], [0], [1], [0, 0, 1, 1], [], []>} : vector<16x32xbf16>, vector<32x32xbf16>, vector<16x32xf32> -> vector<16x32xf32>
    %c0_150 = arith.constant 0 : index
    %c0_151 = arith.constant 0 : index
    %316 = vector.load %arg17[%c0_150, %c0_151] : memref<1x32xf32, #tpu.memory_space<vmem>>, vector<1x32xf32>
    %317 = vector.broadcast %316 : vector<1x32xf32> to vector<16x32xf32>
    %318 = arith.addf %315, %317 : vector<16x32xf32>
    %c0_152 = arith.constant 0 : index
    %c0_153 = arith.constant 0 : index
    %319 = vector.load %arg18[%c0_152, %c0_153] : memref<32x128xbf16, #tpu.memory_space<vmem>>, vector<32x128xbf16>
    %320 = arith.truncf %318 : vector<16x32xf32> to vector<16x32xbf16>
    %cst_154 = arith.constant dense<0.000000e+00> : vector<16x128xf32>
    %321 = tpu.matmul %320, %319, %cst_154 {dimension_numbers = #tpu.dot_dimension_numbers<[1], [0], [0], [1], [0, 0, 1, 1], [], []>} : vector<16x32xbf16>, vector<32x128xbf16>, vector<16x128xf32> -> vector<16x128xf32>
    %c0_155 = arith.constant 0 : index
    %c0_156 = arith.constant 0 : index
    %322 = vector.load %arg19[%c0_155, %c0_156] : memref<1x128xf32, #tpu.memory_space<vmem>>, vector<1x128xf32>
    %323 = vector.broadcast %322 : vector<1x128xf32> to vector<16x128xf32>
    %324 = arith.addf %321, %323 : vector<16x128xf32>
    %c0_157 = arith.constant 0 : index
    %c0_158 = arith.constant 0 : index
    %325 = vector.load %arg20[%c0_157, %c0_158] : memref<16x128xf32, #tpu.memory_space<vmem>>, vector<16x128xf32>
    tpu.vector_store %arg20[%c0_157, %c0_158], %324 {strides = array<i32>} : memref<16x128xf32, #tpu.memory_space<vmem>>, vector<16x128xf32>,
    return
  }
  func.func @transform_0(%arg0: i32) -> (i32, i32) {
    %c0_i32 = arith.constant 0 : i32
    %c0_i32_0 = arith.constant 0 : i32
    return %arg0, %c0_i32 : i32, i32
  }
  func.func @transform_1(%arg0: i32) -> (i32, i32, i32) {
    %c0_i32 = arith.constant 0 : i32
    %c0_i32_0 = arith.constant 0 : i32
    %c0_i32_1 = arith.constant 0 : i32
    return %arg0, %c0_i32, %c0_i32_0 : i32, i32, i32
  }
  func.func @transform_2(%arg0: i32) -> (i32, i32, i32) {
    %c0_i32 = arith.constant 0 : i32
    %c0_i32_0 = arith.constant 0 : i32
    %c0_i32_1 = arith.constant 0 : i32
    return %arg0, %c0_i32, %c0_i32_0 : i32, i32, i32
  }
  func.func @transform_3(%arg0: i32) -> (i32, i32, i32) {
    %c0_i32 = arith.constant 0 : i32
    %c0_i32_0 = arith.constant 0 : i32
    %c0_i32_1 = arith.constant 0 : i32
    return %arg0, %c0_i32, %c0_i32_0 : i32, i32, i32
  }
  func.func @transform_4(%arg0: i32) -> (i32, i32, i32) {
    %c0_i32 = arith.constant 0 : i32
    %c0_i32_0 = arith.constant 0 : i32
    %c0_i32_1 = arith.constant 0 : i32
    return %arg0, %c0_i32, %c0_i32_0 : i32, i32, i32
  }
  func.func @transform_5(%arg0: i32) -> (i32, i32) {
    %c0_i32 = arith.constant 0 : i32
    %c0_i32_0 = arith.constant 0 : i32
    %c0_i32_1 = arith.constant 0 : i32
    return %c0_i32, %c0_i32_0 : i32, i32
  }
  func.func @transform_6(%arg0: i32) -> (i32, i32) {
    %c0_i32 = arith.constant 0 : i32
    %c0_i32_0 = arith.constant 0 : i32
    %c0_i32_1 = arith.constant 0 : i32
    return %c0_i32, %c0_i32_0 : i32, i32
  }
  func.func @transform_7(%arg0: i32) -> (i32, i32, i32) {
    %c0_i32 = arith.constant 0 : i32
    %c0_i32_0 = arith.constant 0 : i32
    %c0_i32_1 = arith.constant 0 : i32
    %c0_i32_2 = arith.constant 0 : i32
    return %c0_i32, %c0_i32_0, %c0_i32_1 : i32, i32, i32
  }
  func.func @transform_8(%arg0: i32) -> (i32, i32, i32) {
    %c0_i32 = arith.constant 0 : i32
    %c0_i32_0 = arith.constant 0 : i32
    %c0_i32_1 = arith.constant 0 : i32
    %c0_i32_2 = arith.constant 0 : i32
    return %c0_i32, %c0_i32_0, %c0_i32_1 : i32, i32, i32
  }
  func.func @transform_9(%arg0: i32) -> (i32, i32, i32) {
    %c0_i32 = arith.constant 0 : i32
    %c0_i32_0 = arith.constant 0 : i32
    %c0_i32_1 = arith.constant 0 : i32
    %c0_i32_2 = arith.constant 0 : i32
    return %c0_i32, %c0_i32_0, %c0_i32_1 : i32, i32, i32
  }
  func.func @transform_10(%arg0: i32) -> (i32, i32, i32) {
    %c0_i32 = arith.constant 0 : i32
    %c0_i32_0 = arith.constant 0 : i32
    %c0_i32_1 = arith.constant 0 : i32
    %c0_i32_2 = arith.constant 0 : i32
    return %c0_i32, %c0_i32_0, %c0_i32_1 : i32, i32, i32
  }
  func.func @transform_11(%arg0: i32) -> (i32, i32, i32) {
    %c0_i32 = arith.constant 0 : i32
    %c0_i32_0 = arith.constant 0 : i32
    %c0_i32_1 = arith.constant 0 : i32
    %c0_i32_2 = arith.constant 0 : i32
    return %c0_i32, %c0_i32_0, %c0_i32_1 : i32, i32, i32
  }
  func.func @transform_12(%arg0: i32) -> (i32, i32, i32) {
    %c0_i32 = arith.constant 0 : i32
    %c0_i32_0 = arith.constant 0 : i32
    %c0_i32_1 = arith.constant 0 : i32
    %c0_i32_2 = arith.constant 0 : i32
    return %c0_i32, %c0_i32_0, %c0_i32_1 : i32, i32, i32
  }
  func.func @transform_13(%arg0: i32) -> (i32, i32, i32) {
    %c0_i32 = arith.constant 0 : i32
    %c0_i32_0 = arith.constant 0 : i32
    %c0_i32_1 = arith.constant 0 : i32
    %c0_i32_2 = arith.constant 0 : i32
    return %c0_i32, %c0_i32_0, %c0_i32_1 : i32, i32, i32
  }
  func.func @transform_14(%arg0: i32) -> (i32, i32, i32) {
    %c0_i32 = arith.constant 0 : i32
    %c0_i32_0 = arith.constant 0 : i32
    %c0_i32_1 = arith.constant 0 : i32
    %c0_i32_2 = arith.constant 0 : i32
    return %c0_i32, %c0_i32_0, %c0_i32_1 : i32, i32, i32
  }
  func.func @transform_15(%arg0: i32) -> (i32, i32) {
    %c0_i32 = arith.constant 0 : i32
    %c0_i32_0 = arith.constant 0 : i32
    %c0_i32_1 = arith.constant 0 : i32
    return %c0_i32, %c0_i32_0 : i32, i32
  }
  func.func @transform_16(%arg0: i32) -> (i32, i32) {
    %c0_i32 = arith.constant 0 : i32
    %c0_i32_0 = arith.constant 0 : i32
    %c0_i32_1 = arith.constant 0 : i32
    return %c0_i32, %c0_i32_0 : i32, i32
  }
  func.func @transform_17(%arg0: i32) -> (i32, i32) {
    %c0_i32 = arith.constant 0 : i32
    %c0_i32_0 = arith.constant 0 : i32
    %c0_i32_1 = arith.constant 0 : i32
    return %c0_i32, %c0_i32_0 : i32, i32
  }
  func.func @transform_18(%arg0: i32) -> (i32, i32) {
    %c0_i32 = arith.constant 0 : i32
    %c0_i32_0 = arith.constant 0 : i32
    %c0_i32_1 = arith.constant 0 : i32
    return %c0_i32, %c0_i32_0 : i32, i32
  }
  func.func @transform_19(%arg0: i32) -> (i32, i32) {
    %c0_i32 = arith.constant 0 : i32
    %c0_i32_0 = arith.constant 0 : i32
    return %arg0, %c0_i32 : i32, i32
  }
  func.func @transform_20(%arg0: i32) -> (i32, i32, i32) {
    %c0_i32 = arith.constant 0 : i32
    %c0_i32_0 = arith.constant 0 : i32
    %c0_i32_1 = arith.constant 0 : i32
    return %arg0, %c0_i32, %c0_i32_0 : i32, i32, i32
  }
}

</mosaic_0001>

<llo_original>
// kernel: decoder_feedback_forward.1
$region0: #{decoder_feedback_forward.1}
  #allocation0 [shape = 'u32[]', space=smem, size = 0x4, offset = 0x4, fixed_abs, tag = 'smem constant byte address 0x4 - core index']
  #allocation1 [shape = 'u32[144,128]{1,0:T(1,128)}', space=vmem, size = 0x12000, scoped, tag = 'internal scratch']
  %s0 = inlined_call_operand.vmem [shape: f32[32,32], index: 0, kind: input, shape index: {}]
  %s1 = inlined_call_operand.vmem [shape: f32[4,16,32], index: 1, kind: input, shape index: {}]
  %s2 = inlined_call_operand.vmem [shape: f32[4,16,32], index: 2, kind: input, shape index: {}]
  %s3 = inlined_call_operand.vmem [shape: f32[4,8,32], index: 3, kind: input, shape index: {}]
  %s4 = inlined_call_operand.vmem [shape: f32[4,8,32], index: 4, kind: input, shape index: {}]
  %s5 = inlined_call_operand.vmem [shape: bf16[32,32], index: 5, kind: input, shape index: {}]
  %s6 = inlined_call_operand.vmem [shape: f32[1,32], index: 6, kind: input, shape index: {}]
  %s7 = inlined_call_operand.vmem [shape: bf16[2,96,64], index: 7, kind: input, shape index: {}]
  %s8 = inlined_call_operand.vmem [shape: f32[2,1,64], index: 8, kind: input, shape index: {}]
  %s9 = inlined_call_operand.vmem [shape: bf16[2,32,32], index: 9, kind: input, shape index: {}]
  %s10 = inlined_call_operand.vmem [shape: f32[2,1,32], index: 10, kind: input, shape index: {}]
  %s11 = inlined_call_operand.vmem [shape: bf16[2,32,32], index: 11, kind: input, shape index: {}]
  %s12 = inlined_call_operand.vmem [shape: f32[2,1,32], index: 12, kind: input, shape index: {}]
  %s13 = inlined_call_operand.vmem [shape: bf16[2,32,32], index: 13, kind: input, shape index: {}]
  %s14 = inlined_call_operand.vmem [shape: f32[2,1,32], index: 14, kind: input, shape index: {}]
  %s15 = inlined_call_operand.vmem [shape: bf16[32,32], index: 15, kind: input, shape index: {}]
  %s16 = inlined_call_operand.vmem [shape: f32[1,32], index: 16, kind: input, shape index: {}]
  %s17 = inlined_call_operand.vmem [shape: bf16[32,128], index: 17, kind: input, shape index: {}]
  %s18 = inlined_call_operand.vmem [shape: f32[1,128], index: 18, kind: input, shape index: {}]
  %s19 = inlined_call_operand.vmem [shape: f32[32,128], index: 19, kind: output, shape index: {0}]
  %s20 = inlined_call_operand.hbm [shape: f32[4,8,128], index: 20, kind: output, shape index: {1}]
  %21 = xla_tuple %s19, %s20
  %s22 = sld [smem:[#allocation0]]
  $region117: #{decoder_feedback_forward.1} parent=0
    _
  %s24 = ssub.s32 1, %s22
  %s25 = scalar_select 0, %s24, %s22
  $region1: #{decoder_feedback_forward.1} parent=0
    #allocation2 [shape = 'u8[16384]{0}', space=vmem, size = 0x4000, scoped, tag = 'output window, operand 1']
    #allocation3 [shape = 's32[2]{0}', space=sflag, size = 0x8, scoped, tag = 'scoped memory for decoder_feedback_forward.1']
    %26 = vsyncpa [#allocation3], 0
    %s27 = scalar_lea.sflag [#allocation3], 1
    %28 = vsyncpa %s27, 0
    loop: start=0, step=1, limit=4
    $region2: #{decoder_feedback_forward.1} parent=1 // loop_pre_header
      _
    $region3: #{decoder_feedback_forward.1} parent=1 // loop_header
      %s30 = sphi 0, %s34
      %p31 = scmp.ge.s32.totalorder %s30, 4
      %s40 = sphi 0, %s42
      %s43 = sphi 0, %s40
      %s44 = sphi 0, %s43
      %s60 = sphi 0, %s44
      %s66 = sphi 0, %s68
      %s69 = sphi 0, %s66
      %s70 = sphi 0, %s69
      %s86 = sphi 0, %s70
      %s92 = sphi 0, %s94
      %s95 = sphi 0, %s92
      %s96 = sphi 0, %s95
      %s112 = sphi 0, %s96
      %s118 = sphi 0, %s120
      %s121 = sphi 0, %s118
      %s122 = sphi 0, %s121
      %s138 = sphi 0, %s122
      %s144 = sphi 0, %s146
      %s147 = sphi 0, %s144
      %s148 = sphi 0, %s147
      %s164 = sphi 0, %s148
      %s168 = sphi 0, %s168
      %s170 = sphi 0, %s168
      %s171 = sphi 0, %s170
      %s185 = sphi 0, %s171
      %s189 = sphi 0, %s189
      %s191 = sphi 0, %s189
      %s192 = sphi 0, %s191
      %s206 = sphi 0, %s192
      %s210 = sphi 0, %s210
      %s212 = sphi 0, %s210
      %s213 = sphi 0, %s212
      %s227 = sphi 0, %s213
      %s231 = sphi 0, %s231
      %s233 = sphi 0, %s231
      %s234 = sphi 0, %s233
      %s248 = sphi 0, %s234
      %s252 = sphi 0, %s252
      %s254 = sphi 0, %s252
      %s255 = sphi 0, %s254
      %s269 = sphi 0, %s255
      %s273 = sphi 0, %s273
      %s275 = sphi 0, %s273
      %s276 = sphi 0, %s275
      %s290 = sphi 0, %s276
      %s294 = sphi 0, %s294
      %s296 = sphi 0, %s294
      %s297 = sphi 0, %s296
      %s311 = sphi 0, %s297
      %s315 = sphi 0, %s315
      %s317 = sphi 0, %s315
      %s318 = sphi 0, %s317
      %s332 = sphi 0, %s318
      %s336 = sphi 0, %s336
      %s338 = sphi 0, %s336
      %s339 = sphi 0, %s338
      %s353 = sphi 0, %s339
      %s357 = sphi 0, %s357
      %s359 = sphi 0, %s357
      %s360 = sphi 0, %s359
      %s374 = sphi 0, %s360
      %s378 = sphi 0, %s378
      %s380 = sphi 0, %s378
      %s381 = sphi 0, %s380
      %s395 = sphi 0, %s381
      %s399 = sphi 0, %s399
      %s401 = sphi 0, %s399
      %s402 = sphi 0, %s401
      %s416 = sphi 0, %s402
      %s420 = sphi 0, %s420
      %s422 = sphi 0, %s420
      %s423 = sphi 0, %s422
      %s437 = sphi 0, %s423
      %s441 = sphi 0, %s441
      %s443 = sphi 0, %s441
      %s444 = sphi 0, %s443
      %s458 = sphi 0, %s444
      %s464 = sphi 0, %s466
      %s467 = sphi 0, %s464
      %s468 = sphi 0, %s467
      %s484 = sphi 0, %s468
      %s490 = sphi 0, %s492
      %s493 = sphi 0, %s490
      %s494 = sphi 0, %s493
      %s510 = sphi 0, %s494
    $region4: #{decoder_feedback_forward.1} parent=1 // loop_header_branch
      %33 = sbr.rel (%p31) target = $region8
    $region5: #{decoder_feedback_forward.1} parent=1 // loop_body
      %s35 = ssub.s32 %s30, 1
      %s36 = ssub.s32 %s30, 2
      %s37 = sadd.s32 %s30, 1
      %s38 = ssub.s32 %s30, %s37
      %p39 = scmp.eq.s32.totalorder %s38, 0
      %s41 = sadd.s32 %s40, 1
      %s42 = scalar_select %p39, %s40, %s41
      %p45 = pneg %p39
      %p46 = scmp.eq.s32.totalorder %s30, 1
      %p47 = por %p45, %p46
      %p48 = scmp.ne.s32.totalorder %s40, %s43
      %p49 = scmp.eq.s32.totalorder %s30, 0
      %p50 = por %p48, %p49
      %p51 = scmp.ne.s32.totalorder %s40, %s43
      %p52 = scmp.eq.s32.totalorder %s35, 1
      %p53 = por %p51, %p52
      %p54 = scmp.ne.s32.totalorder %s43, %s44
      %p55 = scmp.eq.s32.totalorder %s35, 0
      %p56 = por %p54, %p55
      %p57 = scmp.ne.s32.totalorder %s43, %s44
      %p58 = scmp.eq.s32.totalorder %s36, 1
      %p59 = por %p57, %p58
      %p61 = scmp.ne.s32.totalorder %s44, %s60
      %p62 = scmp.eq.s32.totalorder %s36, 0
      %p63 = por %p61, %p62
      %s64 = ssub.s32 %s30, %s37
      %p65 = scmp.eq.s32.totalorder %s64, 0
      %s67 = sadd.s32 %s66, 1
      %s68 = scalar_select %p65, %s66, %s67
      %p71 = pneg %p65
      %p72 = scmp.eq.s32.totalorder %s30, 1
      %p73 = por %p71, %p72
      %p74 = scmp.ne.s32.totalorder %s66, %s69
      %p75 = scmp.eq.s32.totalorder %s30, 0
      %p76 = por %p74, %p75
      %p77 = scmp.ne.s32.totalorder %s66, %s69
      %p78 = scmp.eq.s32.totalorder %s35, 1
      %p79 = por %p77, %p78
      %p80 = scmp.ne.s32.totalorder %s69, %s70
      %p81 = scmp.eq.s32.totalorder %s35, 0
      %p82 = por %p80, %p81
      %p83 = scmp.ne.s32.totalorder %s69, %s70
      %p84 = scmp.eq.s32.totalorder %s36, 1
      %p85 = por %p83, %p84
      %p87 = scmp.ne.s32.totalorder %s70, %s86
      %p88 = scmp.eq.s32.totalorder %s36, 0
      %p89 = por %p87, %p88
      %s90 = ssub.s32 %s30, %s37
      %p91 = scmp.eq.s32.totalorder %s90, 0
      %s93 = sadd.s32 %s92, 1
      %s94 = scalar_select %p91, %s92, %s93
      %p97 = pneg %p91
      %p98 = scmp.eq.s32.totalorder %s30, 1
      %p99 = por %p97, %p98
      %p100 = scmp.ne.s32.totalorder %s92, %s95
      %p101 = scmp.eq.s32.totalorder %s30, 0
      %p102 = por %p100, %p101
      %p103 = scmp.ne.s32.totalorder %s92, %s95
      %p104 = scmp.eq.s32.totalorder %s35, 1
      %p105 = por %p103, %p104
      %p106 = scmp.ne.s32.totalorder %s95, %s96
      %p107 = scmp.eq.s32.totalorder %s35, 0
      %p108 = por %p106, %p107
      %p109 = scmp.ne.s32.totalorder %s95, %s96
      %p110 = scmp.eq.s32.totalorder %s36, 1
      %p111 = por %p109, %p110
      %p113 = scmp.ne.s32.totalorder %s96, %s112
      %p114 = scmp.eq.s32.totalorder %s36, 0
      %p115 = por %p113, %p114
      %s116 = ssub.s32 %s30, %s37
      %p117 = scmp.eq.s32.totalorder %s116, 0
      %s119 = sadd.s32 %s118, 1
      %s120 = scalar_select %p117, %s118, %s119
      %p123 = pneg %p117
      %p124 = scmp.eq.s32.totalorder %s30, 1
      %p125 = por %p123, %p124
      %p126 = scmp.ne.s32.totalorder %s118, %s121
      %p127 = scmp.eq.s32.totalorder %s30, 0
      %p128 = por %p126, %p127
      %p129 = scmp.ne.s32.totalorder %s118, %s121
      %p130 = scmp.eq.s32.totalorder %s35, 1
      %p131 = por %p129, %p130
      %p132 = scmp.ne.s32.totalorder %s121, %s122
      %p133 = scmp.eq.s32.totalorder %s35, 0
      %p134 = por %p132, %p133
      %p135 = scmp.ne.s32.totalorder %s121, %s122
      %p136 = scmp.eq.s32.totalorder %s36, 1
      %p137 = por %p135, %p136
      %p139 = scmp.ne.s32.totalorder %s122, %s138
      %p140 = scmp.eq.s32.totalorder %s36, 0
      %p141 = por %p139, %p140
      %s142 = ssub.s32 %s30, %s37
      %p143 = scmp.eq.s32.totalorder %s142, 0
      %s145 = sadd.s32 %s144, 1
      %s146 = scalar_select %p143, %s144, %s145
      %p149 = pneg %p143
      %p150 = scmp.eq.s32.totalorder %s30, 1
      %p151 = por %p149, %p150
      %p152 = scmp.ne.s32.totalorder %s144, %s147
      %p153 = scmp.eq.s32.totalorder %s30, 0
      %p154 = por %p152, %p153
      %p155 = scmp.ne.s32.totalorder %s144, %s147
      %p156 = scmp.eq.s32.totalorder %s35, 1
      %p157 = por %p155, %p156
      %p158 = scmp.ne.s32.totalorder %s147, %s148
      %p159 = scmp.eq.s32.totalorder %s35, 0
      %p160 = por %p158, %p159
      %p161 = scmp.ne.s32.totalorder %s147, %s148
      %p162 = scmp.eq.s32.totalorder %s36, 1
      %p163 = por %p161, %p162
      %p165 = scmp.ne.s32.totalorder %s148, %s164
      %p166 = scmp.eq.s32.totalorder %s36, 0
      %p167 = por %p165, %p166
      %s169 = sadd.s32 %s168, 1
      %p172 = scmp.eq.s32.totalorder %s30, 1
      %p173 = scmp.ne.s32.totalorder %s168, %s170
      %p174 = scmp.eq.s32.totalorder %s30, 0
      %p175 = por %p173, %p174
      %p176 = scmp.ne.s32.totalorder %s168, %s170
      %p177 = scmp.eq.s32.totalorder %s35, 1
      %p178 = por %p176, %p177
      %p179 = scmp.ne.s32.totalorder %s170, %s171
      %p180 = scmp.eq.s32.totalorder %s35, 0
      %p181 = por %p179, %p180
      %p182 = scmp.ne.s32.totalorder %s170, %s171
      %p183 = scmp.eq.s32.totalorder %s36, 1
      %p184 = por %p182, %p183
      %p186 = scmp.ne.s32.totalorder %s171, %s185
      %p187 = scmp.eq.s32.totalorder %s36, 0
      %p188 = por %p186, %p187
      %s190 = sadd.s32 %s189, 1
      %p193 = scmp.eq.s32.totalorder %s30, 1
      %p194 = scmp.ne.s32.totalorder %s189, %s191
      %p195 = scmp.eq.s32.totalorder %s30, 0
      %p196 = por %p194, %p195
      %p197 = scmp.ne.s32.totalorder %s189, %s191
      %p198 = scmp.eq.s32.totalorder %s35, 1
      %p199 = por %p197, %p198
      %p200 = scmp.ne.s32.totalorder %s191, %s192
      %p201 = scmp.eq.s32.totalorder %s35, 0
      %p202 = por %p200, %p201
      %p203 = scmp.ne.s32.totalorder %s191, %s192
      %p204 = scmp.eq.s32.totalorder %s36, 1
      %p205 = por %p203, %p204
      %p207 = scmp.ne.s32.totalorder %s192, %s206
      %p208 = scmp.eq.s32.totalorder %s36, 0
      %p209 = por %p207, %p208
      %s211 = sadd.s32 %s210, 1
      %p214 = scmp.eq.s32.totalorder %s30, 1
      %p215 = scmp.ne.s32.totalorder %s210, %s212
      %p216 = scmp.eq.s32.totalorder %s30, 0
      %p217 = por %p215, %p216
      %p218 = scmp.ne.s32.totalorder %s210, %s212
      %p219 = scmp.eq.s32.totalorder %s35, 1
      %p220 = por %p218, %p219
      %p221 = scmp.ne.s32.totalorder %s212, %s213
      %p222 = scmp.eq.s32.totalorder %s35, 0
      %p223 = por %p221, %p222
      %p224 = scmp.ne.s32.totalorder %s212, %s213
      %p225 = scmp.eq.s32.totalorder %s36, 1
      %p226 = por %p224, %p225
      %p228 = scmp.ne.s32.totalorder %s213, %s227
      %p229 = scmp.eq.s32.totalorder %s36, 0
      %p230 = por %p228, %p229
      %s232 = sadd.s32 %s231, 1
      %p235 = scmp.eq.s32.totalorder %s30, 1
      %p236 = scmp.ne.s32.totalorder %s231, %s233
      %p237 = scmp.eq.s32.totalorder %s30, 0
      %p238 = por %p236, %p237
      %p239 = scmp.ne.s32.totalorder %s231, %s233
      %p240 = scmp.eq.s32.totalorder %s35, 1
      %p241 = por %p239, %p240
      %p242 = scmp.ne.s32.totalorder %s233, %s234
      %p243 = scmp.eq.s32.totalorder %s35, 0
      %p244 = por %p242, %p243
      %p245 = scmp.ne.s32.totalorder %s233, %s234
      %p246 = scmp.eq.s32.totalorder %s36, 1
      %p247 = por %p245, %p246
      %p249 = scmp.ne.s32.totalorder %s234, %s248
      %p250 = scmp.eq.s32.totalorder %s36, 0
      %p251 = por %p249, %p250
      %s253 = sadd.s32 %s252, 1
      %p256 = scmp.eq.s32.totalorder %s30, 1
      %p257 = scmp.ne.s32.totalorder %s252, %s254
      %p258 = scmp.eq.s32.totalorder %s30, 0
      %p259 = por %p257, %p258
      %p260 = scmp.ne.s32.totalorder %s252, %s254
      %p261 = scmp.eq.s32.totalorder %s35, 1
      %p262 = por %p260, %p261
      %p263 = scmp.ne.s32.totalorder %s254, %s255
      %p264 = scmp.eq.s32.totalorder %s35, 0
      %p265 = por %p263, %p264
      %p266 = scmp.ne.s32.totalorder %s254, %s255
      %p267 = scmp.eq.s32.totalorder %s36, 1
      %p268 = por %p266, %p267
      %p270 = scmp.ne.s32.totalorder %s255, %s269
      %p271 = scmp.eq.s32.totalorder %s36, 0
      %p272 = por %p270, %p271
      %s274 = sadd.s32 %s273, 1
      %p277 = scmp.eq.s32.totalorder %s30, 1
      %p278 = scmp.ne.s32.totalorder %s273, %s275
      %p279 = scmp.eq.s32.totalorder %s30, 0
      %p280 = por %p278, %p279
      %p281 = scmp.ne.s32.totalorder %s273, %s275
      %p282 = scmp.eq.s32.totalorder %s35, 1
      %p283 = por %p281, %p282
      %p284 = scmp.ne.s32.totalorder %s275, %s276
      %p285 = scmp.eq.s32.totalorder %s35, 0
      %p286 = por %p284, %p285
      %p287 = scmp.ne.s32.totalorder %s275, %s276
      %p288 = scmp.eq.s32.totalorder %s36, 1
      %p289 = por %p287, %p288
      %p291 = scmp.ne.s32.totalorder %s276, %s290
      %p292 = scmp.eq.s32.totalorder %s36, 0
      %p293 = por %p291, %p292
      %s295 = sadd.s32 %s294, 1
      %p298 = scmp.eq.s32.totalorder %s30, 1
      %p299 = scmp.ne.s32.totalorder %s294, %s296
      %p300 = scmp.eq.s32.totalorder %s30, 0
      %p301 = por %p299, %p300
      %p302 = scmp.ne.s32.totalorder %s294, %s296
      %p303 = scmp.eq.s32.totalorder %s35, 1
      %p304 = por %p302, %p303
      %p305 = scmp.ne.s32.totalorder %s296, %s297
      %p306 = scmp.eq.s32.totalorder %s35, 0
      %p307 = por %p305, %p306
      %p308 = scmp.ne.s32.totalorder %s296, %s297
      %p309 = scmp.eq.s32.totalorder %s36, 1
      %p310 = por %p308, %p309
      %p312 = scmp.ne.s32.totalorder %s297, %s311
      %p313 = scmp.eq.s32.totalorder %s36, 0
      %p314 = por %p312, %p313
      %s316 = sadd.s32 %s315, 1
      %p319 = scmp.eq.s32.totalorder %s30, 1
      %p320 = scmp.ne.s32.totalorder %s315, %s317
      %p321 = scmp.eq.s32.totalorder %s30, 0
      %p322 = por %p320, %p321
      %p323 = scmp.ne.s32.totalorder %s315, %s317
      %p324 = scmp.eq.s32.totalorder %s35, 1
      %p325 = por %p323, %p324
      %p326 = scmp.ne.s32.totalorder %s317, %s318
      %p327 = scmp.eq.s32.totalorder %s35, 0
      %p328 = por %p326, %p327
      %p329 = scmp.ne.s32.totalorder %s317, %s318
      %p330 = scmp.eq.s32.totalorder %s36, 1
      %p331 = por %p329, %p330
      %p333 = scmp.ne.s32.totalorder %s318, %s332
      %p334 = scmp.eq.s32.totalorder %s36, 0
      %p335 = por %p333, %p334
      %s337 = sadd.s32 %s336, 1
      %p340 = scmp.eq.s32.totalorder %s30, 1
      %p341 = scmp.ne.s32.totalorder %s336, %s338
      %p342 = scmp.eq.s32.totalorder %s30, 0
      %p343 = por %p341, %p342
      %p344 = scmp.ne.s32.totalorder %s336, %s338
      %p345 = scmp.eq.s32.totalorder %s35, 1
      %p346 = por %p344, %p345
      %p347 = scmp.ne.s32.totalorder %s338, %s339
      %p348 = scmp.eq.s32.totalorder %s35, 0
      %p349 = por %p347, %p348
      %p350 = scmp.ne.s32.totalorder %s338, %s339
      %p351 = scmp.eq.s32.totalorder %s36, 1
      %p352 = por %p350, %p351
      %p354 = scmp.ne.s32.totalorder %s339, %s353
      %p355 = scmp.eq.s32.totalorder %s36, 0
      %p356 = por %p354, %p355
      %s358 = sadd.s32 %s357, 1
      %p361 = scmp.eq.s32.totalorder %s30, 1
      %p362 = scmp.ne.s32.totalorder %s357, %s359
      %p363 = scmp.eq.s32.totalorder %s30, 0
      %p364 = por %p362, %p363
      %p365 = scmp.ne.s32.totalorder %s357, %s359
      %p366 = scmp.eq.s32.totalorder %s35, 1
      %p367 = por %p365, %p366
      %p368 = scmp.ne.s32.totalorder %s359, %s360
      %p369 = scmp.eq.s32.totalorder %s35, 0
      %p370 = por %p368, %p369
      %p371 = scmp.ne.s32.totalorder %s359, %s360
      %p372 = scmp.eq.s32.totalorder %s36, 1
      %p373 = por %p371, %p372
      %p375 = scmp.ne.s32.totalorder %s360, %s374
      %p376 = scmp.eq.s32.totalorder %s36, 0
      %p377 = por %p375, %p376
      %s379 = sadd.s32 %s378, 1
      %p382 = scmp.eq.s32.totalorder %s30, 1
      %p383 = scmp.ne.s32.totalorder %s378, %s380
      %p384 = scmp.eq.s32.totalorder %s30, 0
      %p385 = por %p383, %p384
      %p386 = scmp.ne.s32.totalorder %s378, %s380
      %p387 = scmp.eq.s32.totalorder %s35, 1
      %p388 = por %p386, %p387
      %p389 = scmp.ne.s32.totalorder %s380, %s381
      %p390 = scmp.eq.s32.totalorder %s35, 0
      %p391 = por %p389, %p390
      %p392 = scmp.ne.s32.totalorder %s380, %s381
      %p393 = scmp.eq.s32.totalorder %s36, 1
      %p394 = por %p392, %p393
      %p396 = scmp.ne.s32.totalorder %s381, %s395
      %p397 = scmp.eq.s32.totalorder %s36, 0
      %p398 = por %p396, %p397
      %s400 = sadd.s32 %s399, 1
      %p403 = scmp.eq.s32.totalorder %s30, 1
      %p404 = scmp.ne.s32.totalorder %s399, %s401
      %p405 = scmp.eq.s32.totalorder %s30, 0
      %p406 = por %p404, %p405
      %p407 = scmp.ne.s32.totalorder %s399, %s401
      %p408 = scmp.eq.s32.totalorder %s35, 1
      %p409 = por %p407, %p408
      %p410 = scmp.ne.s32.totalorder %s401, %s402
      %p411 = scmp.eq.s32.totalorder %s35, 0
      %p412 = por %p410, %p411
      %p413 = scmp.ne.s32.totalorder %s401, %s402
      %p414 = scmp.eq.s32.totalorder %s36, 1
      %p415 = por %p413, %p414
      %p417 = scmp.ne.s32.totalorder %s402, %s416
      %p418 = scmp.eq.s32.totalorder %s36, 0
      %p419 = por %p417, %p418
      %s421 = sadd.s32 %s420, 1
      %p424 = scmp.eq.s32.totalorder %s30, 1
      %p425 = scmp.ne.s32.totalorder %s420, %s422
      %p426 = scmp.eq.s32.totalorder %s30, 0
      %p427 = por %p425, %p426
      %p428 = scmp.ne.s32.totalorder %s420, %s422
      %p429 = scmp.eq.s32.totalorder %s35, 1
      %p430 = por %p428, %p429
      %p431 = scmp.ne.s32.totalorder %s422, %s423
      %p432 = scmp.eq.s32.totalorder %s35, 0
      %p433 = por %p431, %p432
      %p434 = scmp.ne.s32.totalorder %s422, %s423
      %p435 = scmp.eq.s32.totalorder %s36, 1
      %p436 = por %p434, %p435
      %p438 = scmp.ne.s32.totalorder %s423, %s437
      %p439 = scmp.eq.s32.totalorder %s36, 0
      %p440 = por %p438, %p439
      %s442 = sadd.s32 %s441, 1
      %p445 = scmp.eq.s32.totalorder %s30, 1
      %p446 = scmp.ne.s32.totalorder %s441, %s443
      %p447 = scmp.eq.s32.totalorder %s30, 0
      %p448 = por %p446, %p447
      %p449 = scmp.ne.s32.totalorder %s441, %s443
      %p450 = scmp.eq.s32.totalorder %s35, 1
      %p451 = por %p449, %p450
      %p452 = scmp.ne.s32.totalorder %s443, %s444
      %p453 = scmp.eq.s32.totalorder %s35, 0
      %p454 = por %p452, %p453
      %p455 = scmp.ne.s32.totalorder %s443, %s444
      %p456 = scmp.eq.s32.totalorder %s36, 1
      %p457 = por %p455, %p456
      %p459 = scmp.ne.s32.totalorder %s444, %s458
      %p460 = scmp.eq.s32.totalorder %s36, 0
      %p461 = por %p459, %p460
      %s462 = ssub.s32 %s30, %s37
      %p463 = scmp.eq.s32.totalorder %s462, 0
      %s465 = sadd.s32 %s464, 1
      %s466 = scalar_select %p463, %s464, %s465
      %p469 = pneg %p463
      %p470 = scmp.eq.s32.totalorder %s30, 1
      %p471 = por %p469, %p470
      %p472 = scmp.ne.s32.totalorder %s464, %s467
      %p473 = scmp.eq.s32.totalorder %s30, 0
      %p474 = por %p472, %p473
      %p475 = scmp.ne.s32.totalorder %s464, %s467
      %p476 = scmp.eq.s32.totalorder %s35, 1
      %p477 = por %p475, %p476
      %p478 = scmp.ne.s32.totalorder %s467, %s468
      %p479 = scmp.eq.s32.totalorder %s35, 0
      %p480 = por %p478, %p479
      %p481 = scmp.ne.s32.totalorder %s467, %s468
      %p482 = scmp.eq.s32.totalorder %s36, 1
      %p483 = por %p481, %p482
      %p485 = scmp.ne.s32.totalorder %s468, %s484
      %p486 = scmp.eq.s32.totalorder %s36, 0
      %p487 = por %p485, %p486
      %s488 = ssub.s32 %s30, %s37
      %p489 = scmp.eq.s32.totalorder %s488, 0
      %s491 = sadd.s32 %s490, 1
      %s492 = scalar_select %p489, %s490, %s491
      %p495 = pneg %p489
      %p496 = scmp.eq.s32.totalorder %s30, 1
      %p497 = por %p495, %p496
      %p498 = scmp.ne.s32.totalorder %s490, %s493
      %p499 = scmp.eq.s32.totalorder %s30, 0
      %p500 = por %p498, %p499
      %p501 = scmp.ne.s32.totalorder %s490, %s493
      %p502 = scmp.eq.s32.totalorder %s35, 1
      %p503 = por %p501, %p502
      %p504 = scmp.ne.s32.totalorder %s493, %s494
      %p505 = scmp.eq.s32.totalorder %s35, 0
      %p506 = por %p504, %p505
      %p507 = scmp.ne.s32.totalorder %s493, %s494
      %p508 = scmp.eq.s32.totalorder %s36, 1
      %p509 = por %p507, %p508
      %p511 = scmp.ne.s32.totalorder %s494, %s510
      %p512 = scmp.eq.s32.totalorder %s36, 0
      %p513 = por %p511, %p512
      %p514 = scmp.le.s32.totalorder 1, %s30
      %p515 = scmp.lt.s32.totalorder %s30, 3
      %p516 = pnand %p514, %p515
      %p517 = pneg %p516
      // Predicated region
      $region9: #{decoder_feedback_forward.1} parent=5 // pred_check
        _
      $region10: #{decoder_feedback_forward.1} parent=5 // pred_check_branch
        %519 = sbr.rel (%p516) target = $region12
      $region11: #{decoder_feedback_forward.1} parent=5 // pred_region
        %s520 = ssub.s32 %s30, 1
        // Predicated region
        $region13: #{decoder_feedback_forward.1} parent=11 // pred_check
          %p521 = pneg %p181
        $region14: #{decoder_feedback_forward.1} parent=11 // pred_check_branch
          %523 = sbr.rel (%p521) target = $region16
        $region15: #{decoder_feedback_forward.1} parent=11 // pred_region
          _
        $region16: #{decoder_feedback_forward.1} parent=11 // pred_fallthru
          _
        // Predicated region
        $region17: #{decoder_feedback_forward.1} parent=11 // pred_check
          %p524 = pneg %p202
        $region18: #{decoder_feedback_forward.1} parent=11 // pred_check_branch
          %526 = sbr.rel (%p524) target = $region20
        $region19: #{decoder_feedback_forward.1} parent=11 // pred_region
          _
        $region20: #{decoder_feedback_forward.1} parent=11 // pred_fallthru
          _
        // Predicated region
        $region21: #{decoder_feedback_forward.1} parent=11 // pred_check
          %p527 = pneg %p223
        $region22: #{decoder_feedback_forward.1} parent=11 // pred_check_branch
          %529 = sbr.rel (%p527) target = $region24
        $region23: #{decoder_feedback_forward.1} parent=11 // pred_region
          _
        $region24: #{decoder_feedback_forward.1} parent=11 // pred_fallthru
          _
        // Predicated region
        $region25: #{decoder_feedback_forward.1} parent=11 // pred_check
          %p530 = pneg %p244
        $region26: #{decoder_feedback_forward.1} parent=11 // pred_check_branch
          %532 = sbr.rel (%p530) target = $region28
        $region27: #{decoder_feedback_forward.1} parent=11 // pred_region
          _
        $region28: #{decoder_feedback_forward.1} parent=11 // pred_fallthru
          _
        // Predicated region
        $region29: #{decoder_feedback_forward.1} parent=11 // pred_check
          %p533 = pneg %p265
        $region30: #{decoder_feedback_forward.1} parent=11 // pred_check_branch
          %535 = sbr.rel (%p533) target = $region32
        $region31: #{decoder_feedback_forward.1} parent=11 // pred_region
          _
        $region32: #{decoder_feedback_forward.1} parent=11 // pred_fallthru
          _
        // Predicated region
        $region33: #{decoder_feedback_forward.1} parent=11 // pred_check
          %p536 = pneg %p286
        $region34: #{decoder_feedback_forward.1} parent=11 // pred_check_branch
          %538 = sbr.rel (%p536) target = $region36
        $region35: #{decoder_feedback_forward.1} parent=11 // pred_region
          _
        $region36: #{decoder_feedback_forward.1} parent=11 // pred_fallthru
          _
        // Predicated region
        $region37: #{decoder_feedback_forward.1} parent=11 // pred_check
          %p539 = pneg %p307
        $region38: #{decoder_feedback_forward.1} parent=11 // pred_check_branch
          %541 = sbr.rel (%p539) target = $region40
        $region39: #{decoder_feedback_forward.1} parent=11 // pred_region
          _
        $region40: #{decoder_feedback_forward.1} parent=11 // pred_fallthru
          _
        // Predicated region
        $region41: #{decoder_feedback_forward.1} parent=11 // pred_check
          %p542 = pneg %p328
        $region42: #{decoder_feedback_forward.1} parent=11 // pred_check_branch
          %544 = sbr.rel (%p542) target = $region44
        $region43: #{decoder_feedback_forward.1} parent=11 // pred_region
          _
        $region44: #{decoder_feedback_forward.1} parent=11 // pred_fallthru
          _
        // Predicated region
        $region45: #{decoder_feedback_forward.1} parent=11 // pred_check
          %p545 = pneg %p349
        $region46: #{decoder_feedback_forward.1} parent=11 // pred_check_branch
          %547 = sbr.rel (%p545) target = $region48
        $region47: #{decoder_feedback_forward.1} parent=11 // pred_region
          _
        $region48: #{decoder_feedback_forward.1} parent=11 // pred_fallthru
          _
        // Predicated region
        $region49: #{decoder_feedback_forward.1} parent=11 // pred_check
          %p548 = pneg %p370
        $region50: #{decoder_feedback_forward.1} parent=11 // pred_check_branch
          %550 = sbr.rel (%p548) target = $region52
        $region51: #{decoder_feedback_forward.1} parent=11 // pred_region
          _
        $region52: #{decoder_feedback_forward.1} parent=11 // pred_fallthru
          _
        // Predicated region
        $region53: #{decoder_feedback_forward.1} parent=11 // pred_check
          %p551 = pneg %p391
        $region54: #{decoder_feedback_forward.1} parent=11 // pred_check_branch
          %553 = sbr.rel (%p551) target = $region56
        $region55: #{decoder_feedback_forward.1} parent=11 // pred_region
          _
        $region56: #{decoder_feedback_forward.1} parent=11 // pred_fallthru
          _
        // Predicated region
        $region57: #{decoder_feedback_forward.1} parent=11 // pred_check
          %p554 = pneg %p412
        $region58: #{decoder_feedback_forward.1} parent=11 // pred_check_branch
          %556 = sbr.rel (%p554) target = $region60
        $region59: #{decoder_feedback_forward.1} parent=11 // pred_region
          _
        $region60: #{decoder_feedback_forward.1} parent=11 // pred_fallthru
          _
        // Predicated region
        $region61: #{decoder_feedback_forward.1} parent=11 // pred_check
          %p557 = pneg %p433
        $region62: #{decoder_feedback_forward.1} parent=11 // pred_check_branch
          %559 = sbr.rel (%p557) target = $region64
        $region63: #{decoder_feedback_forward.1} parent=11 // pred_region
          _
        $region64: #{decoder_feedback_forward.1} parent=11 // pred_fallthru
          _
        // Predicated region
        $region65: #{decoder_feedback_forward.1} parent=11 // pred_check
          %p560 = pneg %p454
        $region66: #{decoder_feedback_forward.1} parent=11 // pred_check_branch
          %562 = sbr.rel (%p560) target = $region68
        $region67: #{decoder_feedback_forward.1} parent=11 // pred_region
          _
        $region68: #{decoder_feedback_forward.1} parent=11 // pred_fallthru
          _
      $region12: #{decoder_feedback_forward.1} parent=5 // pred_fallthru
        _
      %p563 = scmp.lt.s32.totalorder %s30, 2
      // Predicated region
      $region69: #{decoder_feedback_forward.1} parent=5 // pred_check
        %p564 = pneg %p563
      $region70: #{decoder_feedback_forward.1} parent=5 // pred_check_branch
        %566 = sbr.rel (%p564) target = $region72
      $region71: #{decoder_feedback_forward.1} parent=5 // pred_region
        // Predicated region
        $region73: #{decoder_feedback_forward.1} parent=71 // pred_check
          %p567 = pneg %p50
        $region74: #{decoder_feedback_forward.1} parent=71 // pred_check_branch
          %569 = sbr.rel (%p567) target = $region76
        $region75: #{decoder_feedback_forward.1} parent=71 // pred_region
          %s570 = smul.u32 2, %s30
          %p571 = scmp.lt.s32.totalorder %s570, 3
          %s572 = scalar_select %p571, %s570, 3
          %s573 = smul.addr %s572, 8
          %s574 = scalar_lea.vmem %s0, %s573
          %s575 = smul.u32 2, %s30
        $region76: #{decoder_feedback_forward.1} parent=71 // pred_fallthru
          _
        // Predicated region
        $region77: #{decoder_feedback_forward.1} parent=71 // pred_check
          %p576 = pneg %p76
        $region78: #{decoder_feedback_forward.1} parent=71 // pred_check_branch
          %578 = sbr.rel (%p576) target = $region80
        $region79: #{decoder_feedback_forward.1} parent=71 // pred_region
          %s579 = smul.u32 2, %s30
          %p580 = scmp.lt.s32.totalorder %s579, 3
          %s581 = scalar_select %p580, %s579, 3
          %s582 = smul.addr %s581, 2
          %s583 = smul.addr %s582, 8
          %s584 = scalar_lea.vmem %s1, %s583
          %s585 = smul.u32 2, %s30
        $region80: #{decoder_feedback_forward.1} parent=71 // pred_fallthru
          _
        // Predicated region
        $region81: #{decoder_feedback_forward.1} parent=71 // pred_check
          %p586 = pneg %p102
        $region82: #{decoder_feedback_forward.1} parent=71 // pred_check_branch
          %588 = sbr.rel (%p586) target = $region84
        $region83: #{decoder_feedback_forward.1} parent=71 // pred_region
          %s589 = smul.u32 2, %s30
          %p590 = scmp.lt.s32.totalorder %s589, 3
          %s591 = scalar_select %p590, %s589, 3
          %s592 = smul.addr %s591, 2
          %s593 = smul.addr %s592, 8
          %s594 = scalar_lea.vmem %s2, %s593
          %s595 = smul.u32 2, %s30
        $region84: #{decoder_feedback_forward.1} parent=71 // pred_fallthru
          _
        // Predicated region
        $region85: #{decoder_feedback_forward.1} parent=71 // pred_check
          %p596 = pneg %p128
        $region86: #{decoder_feedback_forward.1} parent=71 // pred_check_branch
          %598 = sbr.rel (%p596) target = $region88
        $region87: #{decoder_feedback_forward.1} parent=71 // pred_region
          %s599 = smul.u32 2, %s30
          %p600 = scmp.lt.s32.totalorder %s599, 3
          %s601 = scalar_select %p600, %s599, 3
          %s602 = smul.addr %s601, 8
          %s603 = scalar_lea.vmem %s3, %s602
          %s604 = smul.u32 2, %s30
        $region88: #{decoder_feedback_forward.1} parent=71 // pred_fallthru
          _
        // Predicated region
        $region89: #{decoder_feedback_forward.1} parent=71 // pred_check
          %p605 = pneg %p154
        $region90: #{decoder_feedback_forward.1} parent=71 // pred_check_branch
          %607 = sbr.rel (%p605) target = $region92
        $region91: #{decoder_feedback_forward.1} parent=71 // pred_region
          %s608 = smul.u32 2, %s30
          %p609 = scmp.lt.s32.totalorder %s608, 3
          %s610 = scalar_select %p609, %s608, 3
          %s611 = smul.addr %s610, 8
          %s612 = scalar_lea.vmem %s4, %s611
          %s613 = smul.u32 2, %s30
        $region92: #{decoder_feedback_forward.1} parent=71 // pred_fallthru
          _
      $region72: #{decoder_feedback_forward.1} parent=5 // pred_fallthru
        _
      %p614 = scmp.le.s32.totalorder 1, %s30
      %p615 = scmp.lt.s32.totalorder %s30, 3
      %p616 = pnand %p614, %p615
      %p617 = pneg %p616
      // Predicated region
      $region93: #{decoder_feedback_forward.1} parent=5 // pred_check
        _
      $region94: #{decoder_feedback_forward.1} parent=5 // pred_check_branch
        %619 = sbr.rel (%p616) target = $region96
      $region95: #{decoder_feedback_forward.1} parent=5 // pred_region
        %s620 = ssub.s32 %s30, 1
        %s621 = smul.u32 2, %s35
        %p622 = scmp.lt.s32.totalorder %s621, 3
        %s623 = scalar_select %p622, %s621, 3
        %s624 = smul.addr %s623, 8
        %s625 = scalar_lea.vmem %s0, %s624
        %p626 = pneg %p56
        %p627 = pneg %p53
        %s628 = smul.u32 2, %s35
        %p629 = scmp.lt.s32.totalorder %s628, 3
        %s630 = scalar_select %p629, %s628, 3
        %s631 = smul.addr %s630, 2
        %s632 = smul.addr %s631, 8
        %s633 = scalar_lea.vmem %s1, %s632
        %p634 = pneg %p82
        %p635 = pneg %p79
        %s636 = smul.u32 2, %s35
        %p637 = scmp.lt.s32.totalorder %s636, 3
        %s638 = scalar_select %p637, %s636, 3
        %s639 = smul.addr %s638, 2
        %s640 = smul.addr %s639, 8
        %s641 = scalar_lea.vmem %s2, %s640
        %p642 = pneg %p108
        %p643 = pneg %p105
        %s644 = smul.u32 2, %s35
        %p645 = scmp.lt.s32.totalorder %s644, 3
        %s646 = scalar_select %p645, %s644, 3
        %s647 = smul.addr %s646, 8
        %s648 = scalar_lea.vmem %s3, %s647
        %p649 = pneg %p134
        %p650 = pneg %p131
        %s651 = smul.u32 2, %s35
        %p652 = scmp.lt.s32.totalorder %s651, 3
        %s653 = scalar_select %p652, %s651, 3
        %s654 = smul.addr %s653, 8
        %s655 = scalar_lea.vmem %s4, %s654
        %p656 = pneg %p160
        %p657 = pneg %p157
        %p658 = pneg %p181
        %p659 = pneg %p178
        %p660 = pneg %p202
        %p661 = pneg %p199
        %p662 = pneg %p223
        %p663 = pneg %p220
        %p664 = pneg %p244
        %p665 = pneg %p241
        %p666 = pneg %p265
        %p667 = pneg %p262
        %p668 = pneg %p286
        %p669 = pneg %p283
        %p670 = pneg %p307
        %p671 = pneg %p304
        %p672 = pneg %p328
        %p673 = pneg %p325
        %p674 = pneg %p349
        %p675 = pneg %p346
        %p676 = pneg %p370
        %p677 = pneg %p367
        %p678 = pneg %p391
        %p679 = pneg %p388
        %p680 = pneg %p412
        %p681 = pneg %p409
        %p682 = pneg %p433
        %p683 = pneg %p430
        %p684 = pneg %p454
        %p685 = pneg %p451
        %p686 = pneg %p480
        %p687 = pneg %p477
        %s688 = smul.u32 2, %s35
        %p689 = scmp.lt.s32.totalorder %s688, 3
        %s690 = scalar_select %p689, %s688, 3
        %s691 = smul.addr %s690, 8
        %s692 = scalar_lea.vmem %s19, %s691
        %p693 = pneg %p506
        %p694 = pneg %p503
        %s695 = sand.u32 %s493, 1
        %s696 = scalar_lea.sflag [#allocation3], %s695
        %s697 = sand.u32 %s493, 1
        %s698 = smul.addr %s697, 16
        %s699 = scalar_lea.vmem [#allocation2], %s698
        %s700 = smul.u32 2, %s35
        %p701 = scmp.lt.s32.totalorder %s700, 3
        %s702 = scalar_select %p701, %s700, 3
        %s703 = smul.addr %s702, 8
        %s704 = scalar_lea.vmem %s0, %s703
        %s705 = smul.u32 2, %s35
        %s706 = smul.u32 2, %s35
        %p707 = scmp.lt.s32.totalorder %s706, 3
        %s708 = scalar_select %p707, %s706, 3
        %s709 = smul.addr %s708, 2
        %s710 = smul.addr %s709, 8
        %s711 = scalar_lea.vmem %s1, %s710
        %s712 = smul.u32 2, %s35
        %s713 = smul.u32 2, %s35
        %p714 = scmp.lt.s32.totalorder %s713, 3
        %s715 = scalar_select %p714, %s713, 3
        %s716 = smul.addr %s715, 2
        %s717 = smul.addr %s716, 8
        %s718 = scalar_lea.vmem %s2, %s717
        %s719 = smul.u32 2, %s35
        %s720 = smul.u32 2, %s35
        %p721 = scmp.lt.s32.totalorder %s720, 3
        %s722 = scalar_select %p721, %s720, 3
        %s723 = smul.addr %s722, 8
        %s724 = scalar_lea.vmem %s3, %s723
        %s725 = smul.u32 2, %s35
        %s726 = smul.u32 2, %s35
        %p727 = scmp.lt.s32.totalorder %s726, 3
        %s728 = scalar_select %p727, %s726, 3
        %s729 = smul.addr %s728, 8
        %s730 = scalar_lea.vmem %s4, %s729
        %s731 = smul.u32 2, %s35
        %s732 = smul.u32 2, %s35
        %p733 = scmp.lt.s32.totalorder %s732, 3
        %s734 = scalar_select %p733, %s732, 3
        %s735 = smul.addr %s734, 8
        %s736 = scalar_lea.vmem %s19, %s735
        %s737 = smul.u32 2, %s35
        %s738 = smul.u32 2, %s35
        %v740 = vld [vmem:[%s704] sm:$0xff]
        %v741 = vld [vmem:[%s704 + $0x8] sm:$0xff]
        %v742 = vld [vmem:[%s711] sm:$0xff]
        %v743 = vld [vmem:[%s711 + $0x8] sm:$0xff]
        %v744 = vpack.c.bf16 %v743, %v742
        %s745 = scalar_lea.vmem %s711, 16
        %v746 = vld [vmem:[%s745] sm:$0xff]
        %v747 = vld [vmem:[%s745 + $0x8] sm:$0xff]
        %v748 = vpack.c.bf16 %v747, %v746
        %v749 = vld [vmem:[%s718] sm:$0xff]
        %v750 = vld [vmem:[%s718 + $0x8] sm:$0xff]
        %v751 = vpack.c.bf16 %v750, %v749
        %s752 = scalar_lea.vmem %s718, 16
        %v753 = vld [vmem:[%s752] sm:$0xff]
        %v754 = vld [vmem:[%s752 + $0x8] sm:$0xff]
        %v755 = vpack.c.bf16 %v754, %v753
        %v756 = vld [vmem:[%s724] sm:$0xff]
        %v757 = vpack.c.bf16 %v756, %v756
        %s758 = scalar_lea.vmem %s724, 8
        %v759 = vld [vmem:[%s758] sm:$0xff]
        %v760 = vpack.c.bf16 %v759, %v759
        %v761 = vld [vmem:[%s730] sm:$0xff]
        %v762 = vpack.c.bf16 %v761, %v761
        %s763 = scalar_lea.vmem %s730, 8
        %v764 = vld [vmem:[%s763] sm:$0xff]
        %v765 = vpack.c.bf16 %v764, %v764
        %v766 = vlaneseq
        %v767 = vshrl.u32 %v766, 7
        %v768 = vadd.s32 %v767, 8
        %vm769 = vcmp.lt.s32.totalorder %v767, 0
        %v770 = vsub.s32 0, %v767
        %v771 = vsel %vm769, %v770, %v767
        %v772 = vshrl.u32 %v771, 3
        %v773 = vand.u32 %v771, 7
        %v774 = vsub.s32 0, %v773
        %v775 = vsel %vm769, %v774, %v773
        %vm776 = vcmp.lt.s32.totalorder %v768, 0
        %v777 = vsub.s32 0, %v768
        %v778 = vsel %vm776, %v777, %v768
        %v779 = vshrl.u32 %v778, 3
        %v780 = vand.u32 %v778, 7
        %v781 = vsub.s32 0, %v780
        %v782 = vsel %vm776, %v781, %v780
        %vm783 = vcmp.ne.s32.totalorder %v775, 0
        %vm784 = vcmp.ne.s32.totalorder %v782, 0
        %vm785 = vcmp.lt.s32.totalorder %v775, 0
        %vm786 = vcmp.lt.s32.totalorder %v782, 0
        %vm787 = vmand %vm785, %vm783
        %vm788 = vmand %vm786, %vm784
        %v789 = vadd.s32 %v775, 8
        %v790 = vadd.s32 %v782, 8
        %v791 = vsel %vm787, %v789, %v775
        %v792 = vsel %vm788, %v790, %v782
        %v793 = vld [vmem:[%s5] sm:$0xf]
        %v794 = vld [vmem:[%s5 + $0x4] sm:$0xf]
        %v795 = vld [vmem:[%s5 + $0x8] sm:$0xf]
        %v796 = vld [vmem:[%s5 + $0xc] sm:$0xf]
        %v797 = vpack.c.bf16 %v741, %v740
        %v798 = vld [vmem:[%s6] sm:$0x1]
        %v800 = vlaneseq
        %v801 = vshrl.u32 %v800, 7
        %v802 = vsub.s32 0, %v801
        %v803 = vrot.slane %v798, %v802
        %v809 = vunpack.c.l.b16 %v793
        %v810 = vunpack.c.l.b16 %v794
        %v811 = vunpack.c.l.b16 %v795
        %v812 = vunpack.c.l.b16 %v796
        %v813 = vpack.c.b16 %v810, %v809
        %v814 = vpack.c.b16 %v812, %v811
        %vm817 = vcmask 261120
        %v819 = vsel %vm817, %v797, 0
        %821 = vmatprep.subr.bf16.mxu0 0
        %822 = vmatpush1.bf16.msra.mxu0 %v813
        %823 = vmatprep.subr.bf16.mxu0 0
        %824 = vmatpush1.bf16.msra.mxu0 %v814
        %825 = vmatprep.subr.bf16.mxu0 0
        %826 = vmatpush1.bf16.msra.mxu0 0
        %827 = vmatprep.subr.bf16.mxu0 0
        %828 = vmatpush1.bf16.msra.mxu0 0
        %829 = vmatprep.subr.bf16.mxu0 0
        %830 = vmatpush1.bf16.msra.mxu0 0
        %831 = vmatprep.subr.bf16.mxu0 0
        %832 = vmatpush1.bf16.msra.mxu0 0
        %833 = vmatprep.subr.bf16.mxu0 0
        %834 = vmatpush1.bf16.msra.mxu0 0
        %835 = vmatprep.subr.bf16.mxu0 0
        %836 = vmatpush1.bf16.msra.mxu0 0
        %837 = vmatprep.subr.bf16.mxu0 0
        %838 = vmatpush1.bf16.msra.mxu0 0
        %839 = vmatprep.subr.bf16.mxu0 0
        %840 = vmatpush1.bf16.msra.mxu0 0
        %841 = vmatprep.subr.bf16.mxu0 0
        %842 = vmatpush1.bf16.msra.mxu0 0
        %843 = vmatprep.subr.bf16.mxu0 0
        %844 = vmatpush1.bf16.msra.mxu0 0
        %845 = vmatprep.subr.bf16.mxu0 0
        %846 = vmatpush1.bf16.msra.mxu0 0
        %847 = vmatprep.subr.bf16.mxu0 0
        %848 = vmatpush1.bf16.msra.mxu0 0
        %849 = vmatprep.subr.bf16.mxu0 0
        %850 = vmatpush1.bf16.msra.mxu0 0
        %851 = vmatprep.subr.bf16.mxu0 0
        %852 = vmatpush1.bf16.msra.mxu0 0
        %853 = vmatprep.mubr.bf16.mxu0 0
        %854 = vmatmul.mubr.bf16.gmra.mrb[0].mxu0 %v819
        %v855 = vpop.f32.mrb[0].mxu0
        %v856 = vadd.f32 %v803, %v855
        %v857 = vpop.f32.mrb[0].mxu0
        %v858 = vpop.f32.mrb[0].mxu0
        %v859 = vadd.f32 %v803, %v858
        %v860 = vpop.f32.mrb[0].mxu0
        %861 = vdwg.mxu0
        %vm864 = vcmask 1041408
        %v865 = vrot.slane %v856, 6
        %v866 = vrot.slane %v859, 6
        %v867 = vsel %vm864, %v865, %v866
        %v870 = vsel %vm864, 0.0, %v865
        %vm871 = vcmp.lt.s32.totalorder %v791, 2
        %vm872 = vcmp.lt.s32.totalorder %v792, 2
        %v873 = vsel %vm871, 0.0, %v870
        %v874 = vsel %vm872, 0.0, %v867
        %vm875 = vcmp.lt.s32.totalorder %v791, 1
        %vm876 = vcmp.lt.s32.totalorder %v792, 1
        %vm878 = vcmask 1046528
        %v879 = vrot.slane %v870, 1
        %v880 = vrot.slane %v867, 1
        %v881 = vsel %vm878, %v879, %v880
        %v882 = vrot.slane %v866, 1
        %v883 = vsel %vm878, %v880, %v882
        %v886 = vsel %vm875, 0.0, %v881
        %v887 = vsel %vm876, 0.0, %v883
        %890 = vrot.lane.b32.xlu0 %v886, 32
        %v891 = vpop.permute.xlu0 %890
        %892 = vrot.lane.b32.xlu0 %v887, 32
        %v893 = vpop.permute.xlu0 %892
        %vm896 = vcmask 1045504
        %v897 = vrot.slane %v870, 2
        %v898 = vrot.slane %v867, 2
        %v899 = vsel %vm896, %v897, %v898
        %v900 = vrot.slane %v866, 2
        %v901 = vsel %vm896, %v898, %v900
        %902 = vrot.lane.b32.xlu0 %v899, 64
        %v903 = vpop.permute.xlu0 %902
        %904 = vrot.lane.b32.xlu0 %v901, 64
        %v905 = vpop.permute.xlu0 %904
        %v908 = vsel %vm817, %v873, %v891
        %v909 = vsel %vm817, %v874, %v893
        %vm910 = vcmask 523264
        %v911 = vsel %vm910, %v908, %v903
        %v912 = vsel %vm910, %v909, %v905
        %v913 = vld [vmem:[%s7] sm:$0xf]
        %v914 = vld [vmem:[%s7 + $0x4] sm:$0xf]
        %v915 = vld [vmem:[%s7 + $0x8] sm:$0xf]
        %v916 = vld [vmem:[%s7 + $0xc] sm:$0xf]
        %v917 = vld [vmem:[%s7 + $0x10] sm:$0xf]
        %v918 = vld [vmem:[%s7 + $0x14] sm:$0xf]
        %v919 = vld [vmem:[%s7 + $0x18] sm:$0xf]
        %v920 = vld [vmem:[%s7 + $0x1c] sm:$0xf]
        %v921 = vld [vmem:[%s7 + $0x20] sm:$0xf]
        %v922 = vld [vmem:[%s7 + $0x24] sm:$0xf]
        %v923 = vld [vmem:[%s7 + $0x28] sm:$0xf]
        %v924 = vld [vmem:[%s7 + $0x2c] sm:$0xf]
        %v925 = vpack.c.bf16 %v912, %v911
        %v926 = vld [vmem:[%s8] sm:$0x1]
        %v928 = vlaneseq
        %v929 = vshrl.u32 %v928, 7
        %v930 = vsub.s32 0, %v929
        %v931 = vrot.slane %v926, %v930
        %v945 = vunpack.c.l.b16 %v913
        %v946 = vunpack.c.l.b16 %v914
        %v947 = vunpack.c.l.b16 %v915
        %v948 = vunpack.c.l.b16 %v916
        %v949 = vunpack.c.l.b16 %v917
        %v950 = vunpack.c.l.b16 %v918
        %v951 = vunpack.c.l.b16 %v919
        %v952 = vunpack.c.l.b16 %v920
        %v953 = vunpack.c.l.b16 %v921
        %v954 = vunpack.c.l.b16 %v922
        %v955 = vunpack.c.l.b16 %v923
        %v956 = vunpack.c.l.b16 %v924
        %v957 = vpack.c.b16 %v946, %v945
        %v958 = vpack.c.b16 %v948, %v947
        %v959 = vpack.c.b16 %v950, %v949
        %v960 = vpack.c.b16 %v952, %v951
        %v961 = vpack.c.b16 %v954, %v953
        %v962 = vpack.c.b16 %v956, %v955
        %vm969 = vcmask 785408
        %v971 = vsel %vm969, %v925, 0
        %973 = vmatprep.subr.bf16.mxu0 0
        %974 = vmatpush1.bf16.msra.mxu0 %v957
        %975 = vmatprep.subr.bf16.mxu0 0
        %976 = vmatpush1.bf16.msra.mxu0 %v958
        %977 = vmatprep.subr.bf16.mxu0 0
        %978 = vmatpush1.bf16.msra.mxu0 %v959
        %979 = vmatprep.subr.bf16.mxu0 0
        %980 = vmatpush1.bf16.msra.mxu0 %v960
        %981 = vmatprep.subr.bf16.mxu0 0
        %982 = vmatpush1.bf16.msra.mxu0 %v961
        %983 = vmatprep.subr.bf16.mxu0 0
        %984 = vmatpush1.bf16.msra.mxu0 %v962
        %985 = vmatprep.subr.bf16.mxu0 0
        %986 = vmatpush1.bf16.msra.mxu0 0
        %987 = vmatprep.subr.bf16.mxu0 0
        %988 = vmatpush1.bf16.msra.mxu0 0
        %989 = vmatprep.subr.bf16.mxu0 0
        %990 = vmatpush1.bf16.msra.mxu0 0
        %991 = vmatprep.subr.bf16.mxu0 0
        %992 = vmatpush1.bf16.msra.mxu0 0
        %993 = vmatprep.subr.bf16.mxu0 0
        %994 = vmatpush1.bf16.msra.mxu0 0
        %995 = vmatprep.subr.bf16.mxu0 0
        %996 = vmatpush1.bf16.msra.mxu0 0
        %997 = vmatprep.subr.bf16.mxu0 0
        %998 = vmatpush1.bf16.msra.mxu0 0
        %999 = vmatprep.subr.bf16.mxu0 0
        %1000 = vmatpush1.bf16.msra.mxu0 0
        %1001 = vmatprep.subr.bf16.mxu0 0
        %1002 = vmatpush1.bf16.msra.mxu0 0
        %1003 = vmatprep.subr.bf16.mxu0 0
        %1004 = vmatpush1.bf16.msra.mxu0 0
        %1005 = vmatprep.mubr.bf16.mxu0 0
        %1006 = vmatmul.mubr.bf16.gmra.mrb[0].mxu0 %v971
        %v1007 = vpop.f32.mrb[0].mxu0
        %v1008 = vadd.f32 %v931, %v1007
        %v1009 = vpop.f32.mrb[0].mxu0
        %v1010 = vpop.f32.mrb[0].mxu0
        %v1011 = vadd.f32 %v931, %v1010
        %v1012 = vpop.f32.mrb[0].mxu0
        %1013 = vdwg.mxu0
        %v1014 = vsub.f32 0.0, %v1008
        %v1015 = vsub.f32 0.0, %v1011
        %v1016 = vmul.f32 %v1014, 1.442695
        %v1017 = vpow.pop %v1016
        %v1018 = vmul.f32 %v1015, 1.442695
        %v1019 = vpow.pop %v1018
        %v1020 = vadd.f32 %v1017, 1.0
        %v1021 = vadd.f32 %v1019, 1.0
        %v1022 = vrcp.pop %v1020
        %v1023 = vrcp.pop %v1021
        %1026 = vrot.lane.b32.xlu0 %v1022, 96
        %v1027 = vpop.permute.xlu0 %1026
        %1028 = vrot.lane.b32.xlu0 %v1023, 96
        %v1029 = vpop.permute.xlu0 %1028
        %v1032 = vmul.f32 %v1008, %v1027
        %v1033 = vmul.f32 %v1011, %v1029
        %v1034 = vld [vmem:[%s9] sm:$0xf]
        %v1035 = vld [vmem:[%s9 + $0x4] sm:$0xf]
        %v1036 = vld [vmem:[%s9 + $0x8] sm:$0xf]
        %v1037 = vld [vmem:[%s9 + $0xc] sm:$0xf]
        %v1038 = vpack.c.bf16 %v1033, %v1032
        %v1039 = vld [vmem:[%s10] sm:$0x1]
        %v1041 = vlaneseq
        %v1042 = vshrl.u32 %v1041, 7
        %v1043 = vsub.s32 0, %v1042
        %v1044 = vrot.slane %v1039, %v1043
        %v1050 = vunpack.c.l.b16 %v1034
        %v1051 = vunpack.c.l.b16 %v1035
        %v1052 = vunpack.c.l.b16 %v1036
        %v1053 = vunpack.c.l.b16 %v1037
        %v1054 = vpack.c.b16 %v1051, %v1050
        %v1055 = vpack.c.b16 %v1053, %v1052
        %v1059 = vsel %vm817, %v1038, 0
        %1061 = vmatprep.subr.bf16.mxu0 0
        %1062 = vmatpush1.bf16.msra.mxu0 %v1054
        %1063 = vmatprep.subr.bf16.mxu0 0
        %1064 = vmatpush1.bf16.msra.mxu0 %v1055
        %1065 = vmatprep.subr.bf16.mxu0 0
        %1066 = vmatpush1.bf16.msra.mxu0 0
        %1067 = vmatprep.subr.bf16.mxu0 0
        %1068 = vmatpush1.bf16.msra.mxu0 0
        %1069 = vmatprep.subr.bf16.mxu0 0
        %1070 = vmatpush1.bf16.msra.mxu0 0
        %1071 = vmatprep.subr.bf16.mxu0 0
        %1072 = vmatpush1.bf16.msra.mxu0 0
        %1073 = vmatprep.subr.bf16.mxu0 0
        %1074 = vmatpush1.bf16.msra.mxu0 0
        %1075 = vmatprep.subr.bf16.mxu0 0
        %1076 = vmatpush1.bf16.msra.mxu0 0
        %1077 = vmatprep.subr.bf16.mxu0 0
        %1078 = vmatpush1.bf16.msra.mxu0 0
        %1079 = vmatprep.subr.bf16.mxu0 0
        %1080 = vmatpush1.bf16.msra.mxu0 0
        %1081 = vmatprep.subr.bf16.mxu0 0
        %1082 = vmatpush1.bf16.msra.mxu0 0
        %1083 = vmatprep.subr.bf16.mxu0 0
        %1084 = vmatpush1.bf16.msra.mxu0 0
        %1085 = vmatprep.subr.bf16.mxu0 0
        %1086 = vmatpush1.bf16.msra.mxu0 0
        %1087 = vmatprep.subr.bf16.mxu0 0
        %1088 = vmatpush1.bf16.msra.mxu0 0
        %1089 = vmatprep.subr.bf16.mxu0 0
        %1090 = vmatpush1.bf16.msra.mxu0 0
        %1091 = vmatprep.subr.bf16.mxu0 0
        %1092 = vmatpush1.bf16.msra.mxu0 0
        %1093 = vmatprep.mubr.bf16.mxu0 0
        %1094 = vmatmul.mubr.bf16.gmra.mrb[0].mxu0 %v1059
        %v1095 = vpop.f32.mrb[0].mxu0
        %v1096 = vadd.f32 %v1044, %v1095
        %v1097 = vpop.f32.mrb[0].mxu0
        %v1098 = vpop.f32.mrb[0].mxu0
        %v1099 = vadd.f32 %v1044, %v1098
        %v1100 = vpop.f32.mrb[0].mxu0
        %1101 = vdwg.mxu0
        %v1102 = vadd.f32 %v740, %v1096
        %v1103 = vadd.f32 %v741, %v1099
        %v1104 = vmul.f32 %v1102, 0.70710677
        %v1105 = vmul.f32 %v1103, 0.70710677
        %v1106 = vpack.c.bf16 %v1104, %v1104
        %v1108 = vsel %vm817, %v1106, 0
        %v1111 = vsel %vm817, %v744, 0
        %1113 = vmatprep.subr.bf16.mxu0 0
        %1114 = vmatpush1.bf16.xpose.msra.mxu0 %v1111
        %1115 = vmatprep.subr.bf16.mxu0 0
        %1116 = vmatpush1.bf16.xpose.msra.mxu0 0
        %1117 = vmatprep.subr.bf16.mxu0 0
        %1118 = vmatpush1.bf16.xpose.msra.mxu0 0
        %1119 = vmatprep.subr.bf16.mxu0 0
        %1120 = vmatpush1.bf16.xpose.msra.mxu0 0
        %1121 = vmatprep.subr.bf16.mxu0 0
        %1122 = vmatpush1.bf16.xpose.msra.mxu0 0
        %1123 = vmatprep.subr.bf16.mxu0 0
        %1124 = vmatpush1.bf16.xpose.msra.mxu0 0
        %1125 = vmatprep.subr.bf16.mxu0 0
        %1126 = vmatpush1.bf16.xpose.msra.mxu0 0
        %1127 = vmatprep.subr.bf16.mxu0 0
        %1128 = vmatpush1.bf16.xpose.msra.mxu0 0
        %1129 = vmatprep.subr.bf16.mxu0 0
        %1130 = vmatpush1.bf16.xpose.msra.mxu0 0
        %1131 = vmatprep.subr.bf16.mxu0 0
        %1132 = vmatpush1.bf16.xpose.msra.mxu0 0
        %1133 = vmatprep.subr.bf16.mxu0 0
        %1134 = vmatpush1.bf16.xpose.msra.mxu0 0
        %1135 = vmatprep.subr.bf16.mxu0 0
        %1136 = vmatpush1.bf16.xpose.msra.mxu0 0
        %1137 = vmatprep.subr.bf16.mxu0 0
        %1138 = vmatpush1.bf16.xpose.msra.mxu0 0
        %1139 = vmatprep.subr.bf16.mxu0 0
        %1140 = vmatpush1.bf16.xpose.msra.mxu0 0
        %1141 = vmatprep.subr.bf16.mxu0 0
        %1142 = vmatpush1.bf16.xpose.msra.mxu0 0
        %1143 = vmatprep.subr.bf16.mxu0 0
        %1144 = vmatpush1.bf16.xpose.msra.mxu0 0
        %1145 = vmatprep.mubr.bf16.mxu0 0
        %1146 = vmatmul.mubr.bf16.gmra.mrb[0].mxu0 %v1108
        %v1147 = vpop.f32.mrb[0].mxu0
        %v1148 = vadd.f32 0.0, %v1147
        %v1149 = vpop.f32.mrb[0].mxu0
        %v1150 = vpop.f32.mrb[0].mxu0
        %v1151 = vpop.f32.mrb[0].mxu0
        %1152 = vdwg.mxu0
        %vm1153 = vcmask 130048
        %v1154 = vsel %vm1153, %v1148, -inf
        %1155 = vmax.xlane.f32.xlu0 %v1154
        %v1156 = vpop.xlane.xlu0 %1155
        %v1157 = vsub.f32 %v1148, %v1156
        %v1158 = vmul.f32 %v1157, 1.442695
        %v1159 = vpow.pop %v1158
        %v1160 = vsel %vm1153, %v1159, 0.0
        %1161 = vadd.xlane.f32.xlu0 %v1160
        %v1162 = vpop.xlane.xlu0 %1161
        %v1163 = vrcp.pop %v1162
        %v1164 = vmul.f32 %v1159, %v1163
        %v1165 = vpack.c.bf16 %v1164, %v1164
        %v1167 = vsel %vm1153, %v1165, 0
        %1169 = vmatprep.subr.bf16.mxu0 0
        %1170 = vmatpush1.bf16.msra.mxu0 %v751
        %1171 = vmatprep.subr.bf16.mxu0 0
        %1172 = vmatpush1.bf16.msra.mxu0 0
        %1173 = vmatprep.subr.bf16.mxu0 0
        %1174 = vmatpush1.bf16.msra.mxu0 0
        %1175 = vmatprep.subr.bf16.mxu0 0
        %1176 = vmatpush1.bf16.msra.mxu0 0
        %1177 = vmatprep.subr.bf16.mxu0 0
        %1178 = vmatpush1.bf16.msra.mxu0 0
        %1179 = vmatprep.subr.bf16.mxu0 0
        %1180 = vmatpush1.bf16.msra.mxu0 0
        %1181 = vmatprep.subr.bf16.mxu0 0
        %1182 = vmatpush1.bf16.msra.mxu0 0
        %1183 = vmatprep.subr.bf16.mxu0 0
        %1184 = vmatpush1.bf16.msra.mxu0 0
        %1185 = vmatprep.subr.bf16.mxu0 0
        %1186 = vmatpush1.bf16.msra.mxu0 0
        %1187 = vmatprep.subr.bf16.mxu0 0
        %1188 = vmatpush1.bf16.msra.mxu0 0
        %1189 = vmatprep.subr.bf16.mxu0 0
        %1190 = vmatpush1.bf16.msra.mxu0 0
        %1191 = vmatprep.subr.bf16.mxu0 0
        %1192 = vmatpush1.bf16.msra.mxu0 0
        %1193 = vmatprep.subr.bf16.mxu0 0
        %1194 = vmatpush1.bf16.msra.mxu0 0
        %1195 = vmatprep.subr.bf16.mxu0 0
        %1196 = vmatpush1.bf16.msra.mxu0 0
        %1197 = vmatprep.subr.bf16.mxu0 0
        %1198 = vmatpush1.bf16.msra.mxu0 0
        %1199 = vmatprep.subr.bf16.mxu0 0
        %1200 = vmatpush1.bf16.msra.mxu0 0
        %1201 = vmatprep.mubr.bf16.mxu0 0
        %1202 = vmatmul.mubr.bf16.gmra.mrb[0].mxu0 %v1167
        %v1203 = vpop.f32.mrb[0].mxu0
        %v1204 = vadd.f32 0.0, %v1203
        %v1205 = vpop.f32.mrb[0].mxu0
        %v1206 = vpop.f32.mrb[0].mxu0
        %v1207 = vpop.f32.mrb[0].mxu0
        %1208 = vdwg.mxu0
        %v1210 = vsel %vm817, %v757, 0
        %1212 = vmatprep.subr.bf16.mxu0 0
        %1213 = vmatpush1.bf16.xpose.msra.mxu0 %v1210
        %1214 = vmatprep.subr.bf16.mxu0 0
        %1215 = vmatpush1.bf16.xpose.msra.mxu0 0
        %1216 = vmatprep.subr.bf16.mxu0 0
        %1217 = vmatpush1.bf16.xpose.msra.mxu0 0
        %1218 = vmatprep.subr.bf16.mxu0 0
        %1219 = vmatpush1.bf16.xpose.msra.mxu0 0
        %1220 = vmatprep.subr.bf16.mxu0 0
        %1221 = vmatpush1.bf16.xpose.msra.mxu0 0
        %1222 = vmatprep.subr.bf16.mxu0 0
        %1223 = vmatpush1.bf16.xpose.msra.mxu0 0
        %1224 = vmatprep.subr.bf16.mxu0 0
        %1225 = vmatpush1.bf16.xpose.msra.mxu0 0
        %1226 = vmatprep.subr.bf16.mxu0 0
        %1227 = vmatpush1.bf16.xpose.msra.mxu0 0
        %1228 = vmatprep.subr.bf16.mxu0 0
        %1229 = vmatpush1.bf16.xpose.msra.mxu0 0
        %1230 = vmatprep.subr.bf16.mxu0 0
        %1231 = vmatpush1.bf16.xpose.msra.mxu0 0
        %1232 = vmatprep.subr.bf16.mxu0 0
        %1233 = vmatpush1.bf16.xpose.msra.mxu0 0
        %1234 = vmatprep.subr.bf16.mxu0 0
        %1235 = vmatpush1.bf16.xpose.msra.mxu0 0
        %1236 = vmatprep.subr.bf16.mxu0 0
        %1237 = vmatpush1.bf16.xpose.msra.mxu0 0
        %1238 = vmatprep.subr.bf16.mxu0 0
        %1239 = vmatpush1.bf16.xpose.msra.mxu0 0
        %1240 = vmatprep.subr.bf16.mxu0 0
        %1241 = vmatpush1.bf16.xpose.msra.mxu0 0
        %1242 = vmatprep.subr.bf16.mxu0 0
        %1243 = vmatpush1.bf16.xpose.msra.mxu0 0
        %1244 = vmatprep.mubr.bf16.mxu0 0
        %1245 = vmatmul.mubr.bf16.gmra.mrb[0].mxu0 %v1108
        %v1246 = vpop.f32.mrb[0].mxu0
        %v1247 = vadd.f32 0.0, %v1246
        %v1248 = vpop.f32.mrb[0].mxu0
        %v1249 = vpop.f32.mrb[0].mxu0
        %v1250 = vpop.f32.mrb[0].mxu0
        %1251 = vdwg.mxu0
        %vm1252 = vcmask 64512
        %v1253 = vsel %vm1252, %v1247, -inf
        %1254 = vmax.xlane.f32.xlu0 %v1253
        %v1255 = vpop.xlane.xlu0 %1254
        %v1256 = vsub.f32 %v1247, %v1255
        %v1257 = vmul.f32 %v1256, 1.442695
        %v1258 = vpow.pop %v1257
        %v1259 = vsel %vm1252, %v1258, 0.0
        %1260 = vadd.xlane.f32.xlu0 %v1259
        %v1261 = vpop.xlane.xlu0 %1260
        %v1262 = vrcp.pop %v1261
        %v1263 = vmul.f32 %v1258, %v1262
        %v1264 = vpack.c.bf16 %v1263, %v1263
        %v1266 = vsel %vm1252, %v1264, 0
        %vm1268 = vcmask 1043456
        %v1270 = vsel %vm1268, %v762, 0
        %1272 = vmatprep.subr.bf16.mxu0 0
        %1273 = vmatpush1.bf16.msra.mxu0 %v1270
        %1274 = vmatprep.subr.bf16.mxu0 0
        %1275 = vmatpush1.bf16.msra.mxu0 0
        %1276 = vmatprep.subr.bf16.mxu0 0
        %1277 = vmatpush1.bf16.msra.mxu0 0
        %1278 = vmatprep.subr.bf16.mxu0 0
        %1279 = vmatpush1.bf16.msra.mxu0 0
        %1280 = vmatprep.subr.bf16.mxu0 0
        %1281 = vmatpush1.bf16.msra.mxu0 0
        %1282 = vmatprep.subr.bf16.mxu0 0
        %1283 = vmatpush1.bf16.msra.mxu0 0
        %1284 = vmatprep.subr.bf16.mxu0 0
        %1285 = vmatpush1.bf16.msra.mxu0 0
        %1286 = vmatprep.subr.bf16.mxu0 0
        %1287 = vmatpush1.bf16.msra.mxu0 0
        %1288 = vmatprep.subr.bf16.mxu0 0
        %1289 = vmatpush1.bf16.msra.mxu0 0
        %1290 = vmatprep.subr.bf16.mxu0 0
        %1291 = vmatpush1.bf16.msra.mxu0 0
        %1292 = vmatprep.subr.bf16.mxu0 0
        %1293 = vmatpush1.bf16.msra.mxu0 0
        %1294 = vmatprep.subr.bf16.mxu0 0
        %1295 = vmatpush1.bf16.msra.mxu0 0
        %1296 = vmatprep.subr.bf16.mxu0 0
        %1297 = vmatpush1.bf16.msra.mxu0 0
        %1298 = vmatprep.subr.bf16.mxu0 0
        %1299 = vmatpush1.bf16.msra.mxu0 0
        %1300 = vmatprep.subr.bf16.mxu0 0
        %1301 = vmatpush1.bf16.msra.mxu0 0
        %1302 = vmatprep.subr.bf16.mxu0 0
        %1303 = vmatpush1.bf16.msra.mxu0 0
        %1304 = vmatprep.mubr.bf16.mxu0 0
        %1305 = vmatmul.mubr.bf16.gmra.mrb[0].mxu0 %v1266
        %v1306 = vpop.f32.mrb[0].mxu0
        %v1307 = vadd.f32 0.0, %v1306
        %v1308 = vpop.f32.mrb[0].mxu0
        %v1309 = vpop.f32.mrb[0].mxu0
        %v1310 = vpop.f32.mrb[0].mxu0
        %1311 = vdwg.mxu0
        %v1312 = vpack.c.bf16 %v1105, %v1105
        %v1314 = vsel %vm817, %v1312, 0
        %v1317 = vsel %vm817, %v748, 0
        %1319 = vmatprep.subr.bf16.mxu0 0
        %1320 = vmatpush1.bf16.xpose.msra.mxu0 %v1317
        %1321 = vmatprep.subr.bf16.mxu0 0
        %1322 = vmatpush1.bf16.xpose.msra.mxu0 0
        %1323 = vmatprep.subr.bf16.mxu0 0
        %1324 = vmatpush1.bf16.xpose.msra.mxu0 0
        %1325 = vmatprep.subr.bf16.mxu0 0
        %1326 = vmatpush1.bf16.xpose.msra.mxu0 0
        %1327 = vmatprep.subr.bf16.mxu0 0
        %1328 = vmatpush1.bf16.xpose.msra.mxu0 0
        %1329 = vmatprep.subr.bf16.mxu0 0
        %1330 = vmatpush1.bf16.xpose.msra.mxu0 0
        %1331 = vmatprep.subr.bf16.mxu0 0
        %1332 = vmatpush1.bf16.xpose.msra.mxu0 0
        %1333 = vmatprep.subr.bf16.mxu0 0
        %1334 = vmatpush1.bf16.xpose.msra.mxu0 0
        %1335 = vmatprep.subr.bf16.mxu0 0
        %1336 = vmatpush1.bf16.xpose.msra.mxu0 0
        %1337 = vmatprep.subr.bf16.mxu0 0
        %1338 = vmatpush1.bf16.xpose.msra.mxu0 0
        %1339 = vmatprep.subr.bf16.mxu0 0
        %1340 = vmatpush1.bf16.xpose.msra.mxu0 0
        %1341 = vmatprep.subr.bf16.mxu0 0
        %1342 = vmatpush1.bf16.xpose.msra.mxu0 0
        %1343 = vmatprep.subr.bf16.mxu0 0
        %1344 = vmatpush1.bf16.xpose.msra.mxu0 0
        %1345 = vmatprep.subr.bf16.mxu0 0
        %1346 = vmatpush1.bf16.xpose.msra.mxu0 0
        %1347 = vmatprep.subr.bf16.mxu0 0
        %1348 = vmatpush1.bf16.xpose.msra.mxu0 0
        %1349 = vmatprep.subr.bf16.mxu0 0
        %1350 = vmatpush1.bf16.xpose.msra.mxu0 0
        %1351 = vmatprep.mubr.bf16.mxu0 0
        %1352 = vmatmul.mubr.bf16.gmra.mrb[0].mxu0 %v1314
        %v1353 = vpop.f32.mrb[0].mxu0
        %v1354 = vadd.f32 0.0, %v1353
        %v1355 = vpop.f32.mrb[0].mxu0
        %v1356 = vpop.f32.mrb[0].mxu0
        %v1357 = vpop.f32.mrb[0].mxu0
        %1358 = vdwg.mxu0
        %v1359 = vsel %vm1153, %v1354, -inf
        %1360 = vmax.xlane.f32.xlu0 %v1359
        %v1361 = vpop.xlane.xlu0 %1360
        %v1362 = vsub.f32 %v1354, %v1361
        %v1363 = vmul.f32 %v1362, 1.442695
        %v1364 = vpow.pop %v1363
        %v1365 = vsel %vm1153, %v1364, 0.0
        %1366 = vadd.xlane.f32.xlu0 %v1365
        %v1367 = vpop.xlane.xlu0 %1366
        %v1368 = vrcp.pop %v1367
        %v1369 = vmul.f32 %v1364, %v1368
        %v1370 = vpack.c.bf16 %v1369, %v1369
        %v1372 = vsel %vm1153, %v1370, 0
        %1374 = vmatprep.subr.bf16.mxu0 0
        %1375 = vmatpush1.bf16.msra.mxu0 %v755
        %1376 = vmatprep.subr.bf16.mxu0 0
        %1377 = vmatpush1.bf16.msra.mxu0 0
        %1378 = vmatprep.subr.bf16.mxu0 0
        %1379 = vmatpush1.bf16.msra.mxu0 0
        %1380 = vmatprep.subr.bf16.mxu0 0
        %1381 = vmatpush1.bf16.msra.mxu0 0
        %1382 = vmatprep.subr.bf16.mxu0 0
        %1383 = vmatpush1.bf16.msra.mxu0 0
        %1384 = vmatprep.subr.bf16.mxu0 0
        %1385 = vmatpush1.bf16.msra.mxu0 0
        %1386 = vmatprep.subr.bf16.mxu0 0
        %1387 = vmatpush1.bf16.msra.mxu0 0
        %1388 = vmatprep.subr.bf16.mxu0 0
        %1389 = vmatpush1.bf16.msra.mxu0 0
        %1390 = vmatprep.subr.bf16.mxu0 0
        %1391 = vmatpush1.bf16.msra.mxu0 0
        %1392 = vmatprep.subr.bf16.mxu0 0
        %1393 = vmatpush1.bf16.msra.mxu0 0
        %1394 = vmatprep.subr.bf16.mxu0 0
        %1395 = vmatpush1.bf16.msra.mxu0 0
        %1396 = vmatprep.subr.bf16.mxu0 0
        %1397 = vmatpush1.bf16.msra.mxu0 0
        %1398 = vmatprep.subr.bf16.mxu0 0
        %1399 = vmatpush1.bf16.msra.mxu0 0
        %1400 = vmatprep.subr.bf16.mxu0 0
        %1401 = vmatpush1.bf16.msra.mxu0 0
        %1402 = vmatprep.subr.bf16.mxu0 0
        %1403 = vmatpush1.bf16.msra.mxu0 0
        %1404 = vmatprep.subr.bf16.mxu0 0
        %1405 = vmatpush1.bf16.msra.mxu0 0
        %1406 = vmatprep.mubr.bf16.mxu0 0
        %1407 = vmatmul.mubr.bf16.gmra.mrb[0].mxu0 %v1372
        %v1408 = vpop.f32.mrb[0].mxu0
        %v1409 = vadd.f32 0.0, %v1408
        %v1410 = vpop.f32.mrb[0].mxu0
        %v1411 = vpop.f32.mrb[0].mxu0
        %v1412 = vpop.f32.mrb[0].mxu0
        %1413 = vdwg.mxu0
        %v1415 = vsel %vm817, %v760, 0
        %1417 = vmatprep.subr.bf16.mxu0 0
        %1418 = vmatpush1.bf16.xpose.msra.mxu0 %v1415
        %1419 = vmatprep.subr.bf16.mxu0 0
        %1420 = vmatpush1.bf16.xpose.msra.mxu0 0
        %1421 = vmatprep.subr.bf16.mxu0 0
        %1422 = vmatpush1.bf16.xpose.msra.mxu0 0
        %1423 = vmatprep.subr.bf16.mxu0 0
        %1424 = vmatpush1.bf16.xpose.msra.mxu0 0
        %1425 = vmatprep.subr.bf16.mxu0 0
        %1426 = vmatpush1.bf16.xpose.msra.mxu0 0
        %1427 = vmatprep.subr.bf16.mxu0 0
        %1428 = vmatpush1.bf16.xpose.msra.mxu0 0
        %1429 = vmatprep.subr.bf16.mxu0 0
        %1430 = vmatpush1.bf16.xpose.msra.mxu0 0
        %1431 = vmatprep.subr.bf16.mxu0 0
        %1432 = vmatpush1.bf16.xpose.msra.mxu0 0
        %1433 = vmatprep.subr.bf16.mxu0 0
        %1434 = vmatpush1.bf16.xpose.msra.mxu0 0
        %1435 = vmatprep.subr.bf16.mxu0 0
        %1436 = vmatpush1.bf16.xpose.msra.mxu0 0
        %1437 = vmatprep.subr.bf16.mxu0 0
        %1438 = vmatpush1.bf16.xpose.msra.mxu0 0
        %1439 = vmatprep.subr.bf16.mxu0 0
        %1440 = vmatpush1.bf16.xpose.msra.mxu0 0
        %1441 = vmatprep.subr.bf16.mxu0 0
        %1442 = vmatpush1.bf16.xpose.msra.mxu0 0
        %1443 = vmatprep.subr.bf16.mxu0 0
        %1444 = vmatpush1.bf16.xpose.msra.mxu0 0
        %1445 = vmatprep.subr.bf16.mxu0 0
        %1446 = vmatpush1.bf16.xpose.msra.mxu0 0
        %1447 = vmatprep.subr.bf16.mxu0 0
        %1448 = vmatpush1.bf16.xpose.msra.mxu0 0
        %1449 = vmatprep.mubr.bf16.mxu0 0
        %1450 = vmatmul.mubr.bf16.gmra.mrb[0].mxu0 %v1314
        %v1451 = vpop.f32.mrb[0].mxu0
        %v1452 = vadd.f32 0.0, %v1451
        %v1453 = vpop.f32.mrb[0].mxu0
        %v1454 = vpop.f32.mrb[0].mxu0
        %v1455 = vpop.f32.mrb[0].mxu0
        %1456 = vdwg.mxu0
        %v1457 = vsel %vm1252, %v1452, -inf
        %1458 = vmax.xlane.f32.xlu0 %v1457
        %v1459 = vpop.xlane.xlu0 %1458
        %v1460 = vsub.f32 %v1452, %v1459
        %v1461 = vmul.f32 %v1460, 1.442695
        %v1462 = vpow.pop %v1461
        %v1463 = vsel %vm1252, %v1462, 0.0
        %1464 = vadd.xlane.f32.xlu0 %v1463
        %v1465 = vpop.xlane.xlu0 %1464
        %v1466 = vrcp.pop %v1465
        %v1467 = vmul.f32 %v1462, %v1466
        %v1468 = vpack.c.bf16 %v1467, %v1467
        %v1470 = vsel %vm1252, %v1468, 0
        %v1473 = vsel %vm1268, %v765, 0
        %1475 = vmatprep.subr.bf16.mxu0 0
        %1476 = vmatpush1.bf16.msra.mxu0 %v1473
        %1477 = vmatprep.subr.bf16.mxu0 0
        %1478 = vmatpush1.bf16.msra.mxu0 0
        %1479 = vmatprep.subr.bf16.mxu0 0
        %1480 = vmatpush1.bf16.msra.mxu0 0
        %1481 = vmatprep.subr.bf16.mxu0 0
        %1482 = vmatpush1.bf16.msra.mxu0 0
        %1483 = vmatprep.subr.bf16.mxu0 0
        %1484 = vmatpush1.bf16.msra.mxu0 0
        %1485 = vmatprep.subr.bf16.mxu0 0
        %1486 = vmatpush1.bf16.msra.mxu0 0
        %1487 = vmatprep.subr.bf16.mxu0 0
        %1488 = vmatpush1.bf16.msra.mxu0 0
        %1489 = vmatprep.subr.bf16.mxu0 0
        %1490 = vmatpush1.bf16.msra.mxu0 0
        %1491 = vmatprep.subr.bf16.mxu0 0
        %1492 = vmatpush1.bf16.msra.mxu0 0
        %1493 = vmatprep.subr.bf16.mxu0 0
        %1494 = vmatpush1.bf16.msra.mxu0 0
        %1495 = vmatprep.subr.bf16.mxu0 0
        %1496 = vmatpush1.bf16.msra.mxu0 0
        %1497 = vmatprep.subr.bf16.mxu0 0
        %1498 = vmatpush1.bf16.msra.mxu0 0
        %1499 = vmatprep.subr.bf16.mxu0 0
        %1500 = vmatpush1.bf16.msra.mxu0 0
        %1501 = vmatprep.subr.bf16.mxu0 0
        %1502 = vmatpush1.bf16.msra.mxu0 0
        %1503 = vmatprep.subr.bf16.mxu0 0
        %1504 = vmatpush1.bf16.msra.mxu0 0
        %1505 = vmatprep.subr.bf16.mxu0 0
        %1506 = vmatpush1.bf16.msra.mxu0 0
        %1507 = vmatprep.mubr.bf16.mxu0 0
        %1508 = vmatmul.mubr.bf16.gmra.mrb[0].mxu0 %v1470
        %v1509 = vpop.f32.mrb[0].mxu0
        %v1510 = vadd.f32 0.0, %v1509
        %v1511 = vpop.f32.mrb[0].mxu0
        %v1512 = vpop.f32.mrb[0].mxu0
        %v1513 = vpop.f32.mrb[0].mxu0
        %1514 = vdwg.mxu0
        %v1515 = vld [vmem:[%s11] sm:$0xf]
        %v1516 = vld [vmem:[%s11 + $0x4] sm:$0xf]
        %v1517 = vld [vmem:[%s11 + $0x8] sm:$0xf]
        %v1518 = vld [vmem:[%s11 + $0xc] sm:$0xf]
        %v1519 = vpack.c.bf16 %v1409, %v1204
        %v1520 = vld [vmem:[%s12] sm:$0x1]
        %v1522 = vlaneseq
        %v1523 = vshrl.u32 %v1522, 7
        %v1524 = vsub.s32 0, %v1523
        %v1525 = vrot.slane %v1520, %v1524
        %v1531 = vunpack.c.l.b16 %v1515
        %v1532 = vunpack.c.l.b16 %v1516
        %v1533 = vunpack.c.l.b16 %v1517
        %v1534 = vunpack.c.l.b16 %v1518
        %v1535 = vpack.c.b16 %v1532, %v1531
        %v1536 = vpack.c.b16 %v1534, %v1533
        %v1540 = vsel %vm817, %v1519, 0
        %1542 = vmatprep.subr.bf16.mxu0 0
        %1543 = vmatpush1.bf16.msra.mxu0 %v1535
        %1544 = vmatprep.subr.bf16.mxu0 0
        %1545 = vmatpush1.bf16.msra.mxu0 %v1536
        %1546 = vmatprep.subr.bf16.mxu0 0
        %1547 = vmatpush1.bf16.msra.mxu0 0
        %1548 = vmatprep.subr.bf16.mxu0 0
        %1549 = vmatpush1.bf16.msra.mxu0 0
        %1550 = vmatprep.subr.bf16.mxu0 0
        %1551 = vmatpush1.bf16.msra.mxu0 0
        %1552 = vmatprep.subr.bf16.mxu0 0
        %1553 = vmatpush1.bf16.msra.mxu0 0
        %1554 = vmatprep.subr.bf16.mxu0 0
        %1555 = vmatpush1.bf16.msra.mxu0 0
        %1556 = vmatprep.subr.bf16.mxu0 0
        %1557 = vmatpush1.bf16.msra.mxu0 0
        %1558 = vmatprep.subr.bf16.mxu0 0
        %1559 = vmatpush1.bf16.msra.mxu0 0
        %1560 = vmatprep.subr.bf16.mxu0 0
        %1561 = vmatpush1.bf16.msra.mxu0 0
        %1562 = vmatprep.subr.bf16.mxu0 0
        %1563 = vmatpush1.bf16.msra.mxu0 0
        %1564 = vmatprep.subr.bf16.mxu0 0
        %1565 = vmatpush1.bf16.msra.mxu0 0
        %1566 = vmatprep.subr.bf16.mxu0 0
        %1567 = vmatpush1.bf16.msra.mxu0 0
        %1568 = vmatprep.subr.bf16.mxu0 0
        %1569 = vmatpush1.bf16.msra.mxu0 0
        %1570 = vmatprep.subr.bf16.mxu0 0
        %1571 = vmatpush1.bf16.msra.mxu0 0
        %1572 = vmatprep.subr.bf16.mxu0 0
        %1573 = vmatpush1.bf16.msra.mxu0 0
        %1574 = vmatprep.mubr.bf16.mxu0 0
        %1575 = vmatmul.mubr.bf16.gmra.mrb[0].mxu0 %v1540
        %v1576 = vpop.f32.mrb[0].mxu0
        %v1577 = vadd.f32 %v1525, %v1576
        %v1578 = vpop.f32.mrb[0].mxu0
        %v1579 = vpop.f32.mrb[0].mxu0
        %v1580 = vadd.f32 %v1525, %v1579
        %v1581 = vpop.f32.mrb[0].mxu0
        %1582 = vdwg.mxu0
        %v1583 = vadd.f32 %v1032, %v1577
        %v1584 = vadd.f32 %v1033, %v1580
        %v1585 = vmul.f32 %v1583, 0.70710677
        %v1586 = vmul.f32 %v1584, 0.70710677
        %v1587 = vld [vmem:[%s13] sm:$0xf]
        %v1588 = vld [vmem:[%s13 + $0x4] sm:$0xf]
        %v1589 = vld [vmem:[%s13 + $0x8] sm:$0xf]
        %v1590 = vld [vmem:[%s13 + $0xc] sm:$0xf]
        %v1591 = vpack.c.bf16 %v1510, %v1307
        %v1592 = vld [vmem:[%s14] sm:$0x1]
        %v1594 = vlaneseq
        %v1595 = vshrl.u32 %v1594, 7
        %v1596 = vsub.s32 0, %v1595
        %v1597 = vrot.slane %v1592, %v1596
        %v1603 = vunpack.c.l.b16 %v1587
        %v1604 = vunpack.c.l.b16 %v1588
        %v1605 = vunpack.c.l.b16 %v1589
        %v1606 = vunpack.c.l.b16 %v1590
        %v1607 = vpack.c.b16 %v1604, %v1603
        %v1608 = vpack.c.b16 %v1606, %v1605
        %v1612 = vsel %vm817, %v1591, 0
        %1614 = vmatprep.subr.bf16.mxu0 0
        %1615 = vmatpush1.bf16.msra.mxu0 %v1607
        %1616 = vmatprep.subr.bf16.mxu0 0
        %1617 = vmatpush1.bf16.msra.mxu0 %v1608
        %1618 = vmatprep.subr.bf16.mxu0 0
        %1619 = vmatpush1.bf16.msra.mxu0 0
        %1620 = vmatprep.subr.bf16.mxu0 0
        %1621 = vmatpush1.bf16.msra.mxu0 0
        %1622 = vmatprep.subr.bf16.mxu0 0
        %1623 = vmatpush1.bf16.msra.mxu0 0
        %1624 = vmatprep.subr.bf16.mxu0 0
        %1625 = vmatpush1.bf16.msra.mxu0 0
        %1626 = vmatprep.subr.bf16.mxu0 0
        %1627 = vmatpush1.bf16.msra.mxu0 0
        %1628 = vmatprep.subr.bf16.mxu0 0
        %1629 = vmatpush1.bf16.msra.mxu0 0
        %1630 = vmatprep.subr.bf16.mxu0 0
        %1631 = vmatpush1.bf16.msra.mxu0 0
        %1632 = vmatprep.subr.bf16.mxu0 0
        %1633 = vmatpush1.bf16.msra.mxu0 0
        %1634 = vmatprep.subr.bf16.mxu0 0
        %1635 = vmatpush1.bf16.msra.mxu0 0
        %1636 = vmatprep.subr.bf16.mxu0 0
        %1637 = vmatpush1.bf16.msra.mxu0 0
        %1638 = vmatprep.subr.bf16.mxu0 0
        %1639 = vmatpush1.bf16.msra.mxu0 0
        %1640 = vmatprep.subr.bf16.mxu0 0
        %1641 = vmatpush1.bf16.msra.mxu0 0
        %1642 = vmatprep.subr.bf16.mxu0 0
        %1643 = vmatpush1.bf16.msra.mxu0 0
        %1644 = vmatprep.subr.bf16.mxu0 0
        %1645 = vmatpush1.bf16.msra.mxu0 0
        %1646 = vmatprep.mubr.bf16.mxu0 0
        %1647 = vmatmul.mubr.bf16.gmra.mrb[0].mxu0 %v1612
        %v1648 = vpop.f32.mrb[0].mxu0
        %v1649 = vadd.f32 %v1597, %v1648
        %v1650 = vpop.f32.mrb[0].mxu0
        %v1651 = vpop.f32.mrb[0].mxu0
        %v1652 = vadd.f32 %v1597, %v1651
        %v1653 = vpop.f32.mrb[0].mxu0
        %1654 = vdwg.mxu0
        %v1655 = vadd.f32 %v1032, %v1649
        %v1656 = vadd.f32 %v1033, %v1652
        %v1657 = vmul.f32 %v1655, 0.70710677
        %v1658 = vmul.f32 %v1656, 0.70710677
        %v1659 = vadd.f32 %v1585, %v1657
        %v1660 = vadd.f32 %v1586, %v1658
        %v1661 = vadd.f32 %v1659, %v856
        %v1662 = vadd.f32 %v1660, %v859
        %v1663 = vmul.f32 %v1661, 0.70710677
        %v1664 = vmul.f32 %v1662, 0.70710677
        %v1667 = vrot.slane %v1663, 6
        %v1668 = vrot.slane %v1664, 6
        %v1669 = vsel %vm864, %v1667, %v1668
        %v1672 = vsel %vm864, 0.0, %v1667
        %v1673 = vsel %vm871, 0.0, %v1672
        %v1674 = vsel %vm872, 0.0, %v1669
        %v1676 = vrot.slane %v1672, 1
        %v1677 = vrot.slane %v1669, 1
        %v1678 = vsel %vm878, %v1676, %v1677
        %v1679 = vrot.slane %v1668, 1
        %v1680 = vsel %vm878, %v1677, %v1679
        %v1683 = vsel %vm875, 0.0, %v1678
        %v1684 = vsel %vm876, 0.0, %v1680
        %1687 = vrot.lane.b32.xlu0 %v1683, 32
        %v1688 = vpop.permute.xlu0 %1687
        %1689 = vrot.lane.b32.xlu0 %v1684, 32
        %v1690 = vpop.permute.xlu0 %1689
        %v1693 = vrot.slane %v1672, 2
        %v1694 = vrot.slane %v1669, 2
        %v1695 = vsel %vm896, %v1693, %v1694
        %v1696 = vrot.slane %v1668, 2
        %v1697 = vsel %vm896, %v1694, %v1696
        %1698 = vrot.lane.b32.xlu0 %v1695, 64
        %v1699 = vpop.permute.xlu0 %1698
        %1700 = vrot.lane.b32.xlu0 %v1697, 64
        %v1701 = vpop.permute.xlu0 %1700
        %v1704 = vsel %vm817, %v1673, %v1688
        %v1705 = vsel %vm817, %v1674, %v1690
        %v1706 = vsel %vm910, %v1704, %v1699
        %v1707 = vsel %vm910, %v1705, %v1701
        %s1708 = scalar_lea.vmem %s7, 48
        %v1709 = vld [vmem:[%s1708] sm:$0xf]
        %v1710 = vld [vmem:[%s1708 + $0x4] sm:$0xf]
        %v1711 = vld [vmem:[%s1708 + $0x8] sm:$0xf]
        %v1712 = vld [vmem:[%s1708 + $0xc] sm:$0xf]
        %v1713 = vld [vmem:[%s1708 + $0x10] sm:$0xf]
        %v1714 = vld [vmem:[%s1708 + $0x14] sm:$0xf]
        %v1715 = vld [vmem:[%s1708 + $0x18] sm:$0xf]
        %v1716 = vld [vmem:[%s1708 + $0x1c] sm:$0xf]
        %v1717 = vld [vmem:[%s1708 + $0x20] sm:$0xf]
        %v1718 = vld [vmem:[%s1708 + $0x24] sm:$0xf]
        %v1719 = vld [vmem:[%s1708 + $0x28] sm:$0xf]
        %v1720 = vld [vmem:[%s1708 + $0x2c] sm:$0xf]
        %v1721 = vpack.c.bf16 %v1707, %v1706
        %s1722 = scalar_lea.vmem %s8, 1
        %v1723 = vld [vmem:[%s1722] sm:$0x1]
        %v1725 = vlaneseq
        %v1726 = vshrl.u32 %v1725, 7
        %v1727 = vsub.s32 0, %v1726
        %v1728 = vrot.slane %v1723, %v1727
        %v1742 = vunpack.c.l.b16 %v1709
        %v1743 = vunpack.c.l.b16 %v1710
        %v1744 = vunpack.c.l.b16 %v1711
        %v1745 = vunpack.c.l.b16 %v1712
        %v1746 = vunpack.c.l.b16 %v1713
        %v1747 = vunpack.c.l.b16 %v1714
        %v1748 = vunpack.c.l.b16 %v1715
        %v1749 = vunpack.c.l.b16 %v1716
        %v1750 = vunpack.c.l.b16 %v1717
        %v1751 = vunpack.c.l.b16 %v1718
        %v1752 = vunpack.c.l.b16 %v1719
        %v1753 = vunpack.c.l.b16 %v1720
        %v1754 = vpack.c.b16 %v1743, %v1742
        %v1755 = vpack.c.b16 %v1745, %v1744
        %v1756 = vpack.c.b16 %v1747, %v1746
        %v1757 = vpack.c.b16 %v1749, %v1748
        %v1758 = vpack.c.b16 %v1751, %v1750
        %v1759 = vpack.c.b16 %v1753, %v1752
        %v1767 = vsel %vm969, %v1721, 0
        %1769 = vmatprep.subr.bf16.mxu0 0
        %1770 = vmatpush1.bf16.msra.mxu0 %v1754
        %1771 = vmatprep.subr.bf16.mxu0 0
        %1772 = vmatpush1.bf16.msra.mxu0 %v1755
        %1773 = vmatprep.subr.bf16.mxu0 0
        %1774 = vmatpush1.bf16.msra.mxu0 %v1756
        %1775 = vmatprep.subr.bf16.mxu0 0
        %1776 = vmatpush1.bf16.msra.mxu0 %v1757
        %1777 = vmatprep.subr.bf16.mxu0 0
        %1778 = vmatpush1.bf16.msra.mxu0 %v1758
        %1779 = vmatprep.subr.bf16.mxu0 0
        %1780 = vmatpush1.bf16.msra.mxu0 %v1759
        %1781 = vmatprep.subr.bf16.mxu0 0
        %1782 = vmatpush1.bf16.msra.mxu0 0
        %1783 = vmatprep.subr.bf16.mxu0 0
        %1784 = vmatpush1.bf16.msra.mxu0 0
        %1785 = vmatprep.subr.bf16.mxu0 0
        %1786 = vmatpush1.bf16.msra.mxu0 0
        %1787 = vmatprep.subr.bf16.mxu0 0
        %1788 = vmatpush1.bf16.msra.mxu0 0
        %1789 = vmatprep.subr.bf16.mxu0 0
        %1790 = vmatpush1.bf16.msra.mxu0 0
        %1791 = vmatprep.subr.bf16.mxu0 0
        %1792 = vmatpush1.bf16.msra.mxu0 0
        %1793 = vmatprep.subr.bf16.mxu0 0
        %1794 = vmatpush1.bf16.msra.mxu0 0
        %1795 = vmatprep.subr.bf16.mxu0 0
        %1796 = vmatpush1.bf16.msra.mxu0 0
        %1797 = vmatprep.subr.bf16.mxu0 0
        %1798 = vmatpush1.bf16.msra.mxu0 0
        %1799 = vmatprep.subr.bf16.mxu0 0
        %1800 = vmatpush1.bf16.msra.mxu0 0
        %1801 = vmatprep.mubr.bf16.mxu0 0
        %1802 = vmatmul.mubr.bf16.gmra.mrb[0].mxu0 %v1767
        %v1803 = vpop.f32.mrb[0].mxu0
        %v1804 = vadd.f32 %v1728, %v1803
        %v1805 = vpop.f32.mrb[0].mxu0
        %v1806 = vpop.f32.mrb[0].mxu0
        %v1807 = vadd.f32 %v1728, %v1806
        %v1808 = vpop.f32.mrb[0].mxu0
        %1809 = vdwg.mxu0
        %v1810 = vsub.f32 0.0, %v1804
        %v1811 = vsub.f32 0.0, %v1807
        %v1812 = vmul.f32 %v1810, 1.442695
        %v1813 = vpow.pop %v1812
        %v1814 = vmul.f32 %v1811, 1.442695
        %v1815 = vpow.pop %v1814
        %v1816 = vadd.f32 %v1813, 1.0
        %v1817 = vadd.f32 %v1815, 1.0
        %v1818 = vrcp.pop %v1816
        %v1819 = vrcp.pop %v1817
        %1822 = vrot.lane.b32.xlu0 %v1818, 96
        %v1823 = vpop.permute.xlu0 %1822
        %1824 = vrot.lane.b32.xlu0 %v1819, 96
        %v1825 = vpop.permute.xlu0 %1824
        %v1828 = vmul.f32 %v1804, %v1823
        %v1829 = vmul.f32 %v1807, %v1825
        %s1830 = scalar_lea.vmem %s9, 16
        %v1831 = vld [vmem:[%s1830] sm:$0xf]
        %v1832 = vld [vmem:[%s1830 + $0x4] sm:$0xf]
        %v1833 = vld [vmem:[%s1830 + $0x8] sm:$0xf]
        %v1834 = vld [vmem:[%s1830 + $0xc] sm:$0xf]
        %v1835 = vpack.c.bf16 %v1829, %v1828
        %s1836 = scalar_lea.vmem %s10, 1
        %v1837 = vld [vmem:[%s1836] sm:$0x1]
        %v1839 = vlaneseq
        %v1840 = vshrl.u32 %v1839, 7
        %v1841 = vsub.s32 0, %v1840
        %v1842 = vrot.slane %v1837, %v1841
        %v1848 = vunpack.c.l.b16 %v1831
        %v1849 = vunpack.c.l.b16 %v1832
        %v1850 = vunpack.c.l.b16 %v1833
        %v1851 = vunpack.c.l.b16 %v1834
        %v1852 = vpack.c.b16 %v1849, %v1848
        %v1853 = vpack.c.b16 %v1851, %v1850
        %v1857 = vsel %vm817, %v1835, 0
        %1859 = vmatprep.subr.bf16.mxu0 0
        %1860 = vmatpush1.bf16.msra.mxu0 %v1852
        %1861 = vmatprep.subr.bf16.mxu0 0
        %1862 = vmatpush1.bf16.msra.mxu0 %v1853
        %1863 = vmatprep.subr.bf16.mxu0 0
        %1864 = vmatpush1.bf16.msra.mxu0 0
        %1865 = vmatprep.subr.bf16.mxu0 0
        %1866 = vmatpush1.bf16.msra.mxu0 0
        %1867 = vmatprep.subr.bf16.mxu0 0
        %1868 = vmatpush1.bf16.msra.mxu0 0
        %1869 = vmatprep.subr.bf16.mxu0 0
        %1870 = vmatpush1.bf16.msra.mxu0 0
        %1871 = vmatprep.subr.bf16.mxu0 0
        %1872 = vmatpush1.bf16.msra.mxu0 0
        %1873 = vmatprep.subr.bf16.mxu0 0
        %1874 = vmatpush1.bf16.msra.mxu0 0
        %1875 = vmatprep.subr.bf16.mxu0 0
        %1876 = vmatpush1.bf16.msra.mxu0 0
        %1877 = vmatprep.subr.bf16.mxu0 0
        %1878 = vmatpush1.bf16.msra.mxu0 0
        %1879 = vmatprep.subr.bf16.mxu0 0
        %1880 = vmatpush1.bf16.msra.mxu0 0
        %1881 = vmatprep.subr.bf16.mxu0 0
        %1882 = vmatpush1.bf16.msra.mxu0 0
        %1883 = vmatprep.subr.bf16.mxu0 0
        %1884 = vmatpush1.bf16.msra.mxu0 0
        %1885 = vmatprep.subr.bf16.mxu0 0
        %1886 = vmatpush1.bf16.msra.mxu0 0
        %1887 = vmatprep.subr.bf16.mxu0 0
        %1888 = vmatpush1.bf16.msra.mxu0 0
        %1889 = vmatprep.subr.bf16.mxu0 0
        %1890 = vmatpush1.bf16.msra.mxu0 0
        %1891 = vmatprep.mubr.bf16.mxu0 0
        %1892 = vmatmul.mubr.bf16.gmra.mrb[0].mxu0 %v1857
        %v1893 = vpop.f32.mrb[0].mxu0
        %v1894 = vadd.f32 %v1842, %v1893
        %v1895 = vpop.f32.mrb[0].mxu0
        %v1896 = vpop.f32.mrb[0].mxu0
        %v1897 = vadd.f32 %v1842, %v1896
        %v1898 = vpop.f32.mrb[0].mxu0
        %1899 = vdwg.mxu0
        %v1900 = vadd.f32 %v740, %v1894
        %v1901 = vadd.f32 %v741, %v1897
        %v1902 = vmul.f32 %v1900, 0.70710677
        %v1903 = vmul.f32 %v1901, 0.70710677
        %v1904 = vpack.c.bf16 %v1902, %v1902
        %v1906 = vsel %vm817, %v1904, 0
        %1908 = vmatprep.subr.bf16.mxu0 0
        %1909 = vmatpush1.bf16.xpose.msra.mxu0 %v1111
        %1910 = vmatprep.subr.bf16.mxu0 0
        %1911 = vmatpush1.bf16.xpose.msra.mxu0 0
        %1912 = vmatprep.subr.bf16.mxu0 0
        %1913 = vmatpush1.bf16.xpose.msra.mxu0 0
        %1914 = vmatprep.subr.bf16.mxu0 0
        %1915 = vmatpush1.bf16.xpose.msra.mxu0 0
        %1916 = vmatprep.subr.bf16.mxu0 0
        %1917 = vmatpush1.bf16.xpose.msra.mxu0 0
        %1918 = vmatprep.subr.bf16.mxu0 0
        %1919 = vmatpush1.bf16.xpose.msra.mxu0 0
        %1920 = vmatprep.subr.bf16.mxu0 0
        %1921 = vmatpush1.bf16.xpose.msra.mxu0 0
        %1922 = vmatprep.subr.bf16.mxu0 0
        %1923 = vmatpush1.bf16.xpose.msra.mxu0 0
        %1924 = vmatprep.subr.bf16.mxu0 0
        %1925 = vmatpush1.bf16.xpose.msra.mxu0 0
        %1926 = vmatprep.subr.bf16.mxu0 0
        %1927 = vmatpush1.bf16.xpose.msra.mxu0 0
        %1928 = vmatprep.subr.bf16.mxu0 0
        %1929 = vmatpush1.bf16.xpose.msra.mxu0 0
        %1930 = vmatprep.subr.bf16.mxu0 0
        %1931 = vmatpush1.bf16.xpose.msra.mxu0 0
        %1932 = vmatprep.subr.bf16.mxu0 0
        %1933 = vmatpush1.bf16.xpose.msra.mxu0 0
        %1934 = vmatprep.subr.bf16.mxu0 0
        %1935 = vmatpush1.bf16.xpose.msra.mxu0 0
        %1936 = vmatprep.subr.bf16.mxu0 0
        %1937 = vmatpush1.bf16.xpose.msra.mxu0 0
        %1938 = vmatprep.subr.bf16.mxu0 0
        %1939 = vmatpush1.bf16.xpose.msra.mxu0 0
        %1940 = vmatprep.mubr.bf16.mxu0 0
        %1941 = vmatmul.mubr.bf16.gmra.mrb[0].mxu0 %v1906
        %v1942 = vpop.f32.mrb[0].mxu0
        %v1943 = vadd.f32 0.0, %v1942
        %v1944 = vpop.f32.mrb[0].mxu0
        %v1945 = vpop.f32.mrb[0].mxu0
        %v1946 = vpop.f32.mrb[0].mxu0
        %1947 = vdwg.mxu0
        %v1948 = vsel %vm1153, %v1943, -inf
        %1949 = vmax.xlane.f32.xlu0 %v1948
        %v1950 = vpop.xlane.xlu0 %1949
        %v1951 = vsub.f32 %v1943, %v1950
        %v1952 = vmul.f32 %v1951, 1.442695
        %v1953 = vpow.pop %v1952
        %v1954 = vsel %vm1153, %v1953, 0.0
        %1955 = vadd.xlane.f32.xlu0 %v1954
        %v1956 = vpop.xlane.xlu0 %1955
        %v1957 = vrcp.pop %v1956
        %v1958 = vmul.f32 %v1953, %v1957
        %v1959 = vpack.c.bf16 %v1958, %v1958
        %v1961 = vsel %vm1153, %v1959, 0
        %1963 = vmatprep.subr.bf16.mxu0 0
        %1964 = vmatpush1.bf16.msra.mxu0 %v751
        %1965 = vmatprep.subr.bf16.mxu0 0
        %1966 = vmatpush1.bf16.msra.mxu0 0
        %1967 = vmatprep.subr.bf16.mxu0 0
        %1968 = vmatpush1.bf16.msra.mxu0 0
        %1969 = vmatprep.subr.bf16.mxu0 0
        %1970 = vmatpush1.bf16.msra.mxu0 0
        %1971 = vmatprep.subr.bf16.mxu0 0
        %1972 = vmatpush1.bf16.msra.mxu0 0
        %1973 = vmatprep.subr.bf16.mxu0 0
        %1974 = vmatpush1.bf16.msra.mxu0 0
        %1975 = vmatprep.subr.bf16.mxu0 0
        %1976 = vmatpush1.bf16.msra.mxu0 0
        %1977 = vmatprep.subr.bf16.mxu0 0
        %1978 = vmatpush1.bf16.msra.mxu0 0
        %1979 = vmatprep.subr.bf16.mxu0 0
        %1980 = vmatpush1.bf16.msra.mxu0 0
        %1981 = vmatprep.subr.bf16.mxu0 0
        %1982 = vmatpush1.bf16.msra.mxu0 0
        %1983 = vmatprep.subr.bf16.mxu0 0
        %1984 = vmatpush1.bf16.msra.mxu0 0
        %1985 = vmatprep.subr.bf16.mxu0 0
        %1986 = vmatpush1.bf16.msra.mxu0 0
        %1987 = vmatprep.subr.bf16.mxu0 0
        %1988 = vmatpush1.bf16.msra.mxu0 0
        %1989 = vmatprep.subr.bf16.mxu0 0
        %1990 = vmatpush1.bf16.msra.mxu0 0
        %1991 = vmatprep.subr.bf16.mxu0 0
        %1992 = vmatpush1.bf16.msra.mxu0 0
        %1993 = vmatprep.subr.bf16.mxu0 0
        %1994 = vmatpush1.bf16.msra.mxu0 0
        %1995 = vmatprep.mubr.bf16.mxu0 0
        %1996 = vmatmul.mubr.bf16.gmra.mrb[0].mxu0 %v1961
        %v1997 = vpop.f32.mrb[0].mxu0
        %v1998 = vadd.f32 0.0, %v1997
        %v1999 = vpop.f32.mrb[0].mxu0
        %v2000 = vpop.f32.mrb[0].mxu0
        %v2001 = vpop.f32.mrb[0].mxu0
        %2002 = vdwg.mxu0
        %2003 = vmatprep.subr.bf16.mxu0 0
        %2004 = vmatpush1.bf16.xpose.msra.mxu0 %v1210
        %2005 = vmatprep.subr.bf16.mxu0 0
        %2006 = vmatpush1.bf16.xpose.msra.mxu0 0
        %2007 = vmatprep.subr.bf16.mxu0 0
        %2008 = vmatpush1.bf16.xpose.msra.mxu0 0
        %2009 = vmatprep.subr.bf16.mxu0 0
        %2010 = vmatpush1.bf16.xpose.msra.mxu0 0
        %2011 = vmatprep.subr.bf16.mxu0 0
        %2012 = vmatpush1.bf16.xpose.msra.mxu0 0
        %2013 = vmatprep.subr.bf16.mxu0 0
        %2014 = vmatpush1.bf16.xpose.msra.mxu0 0
        %2015 = vmatprep.subr.bf16.mxu0 0
        %2016 = vmatpush1.bf16.xpose.msra.mxu0 0
        %2017 = vmatprep.subr.bf16.mxu0 0
        %2018 = vmatpush1.bf16.xpose.msra.mxu0 0
        %2019 = vmatprep.subr.bf16.mxu0 0
        %2020 = vmatpush1.bf16.xpose.msra.mxu0 0
        %2021 = vmatprep.subr.bf16.mxu0 0
        %2022 = vmatpush1.bf16.xpose.msra.mxu0 0
        %2023 = vmatprep.subr.bf16.mxu0 0
        %2024 = vmatpush1.bf16.xpose.msra.mxu0 0
        %2025 = vmatprep.subr.bf16.mxu0 0
        %2026 = vmatpush1.bf16.xpose.msra.mxu0 0
        %2027 = vmatprep.subr.bf16.mxu0 0
        %2028 = vmatpush1.bf16.xpose.msra.mxu0 0
        %2029 = vmatprep.subr.bf16.mxu0 0
        %2030 = vmatpush1.bf16.xpose.msra.mxu0 0
        %2031 = vmatprep.subr.bf16.mxu0 0
        %2032 = vmatpush1.bf16.xpose.msra.mxu0 0
        %2033 = vmatprep.subr.bf16.mxu0 0
        %2034 = vmatpush1.bf16.xpose.msra.mxu0 0
        %2035 = vmatprep.mubr.bf16.mxu0 0
        %2036 = vmatmul.mubr.bf16.gmra.mrb[0].mxu0 %v1906
        %v2037 = vpop.f32.mrb[0].mxu0
        %v2038 = vadd.f32 0.0, %v2037
        %v2039 = vpop.f32.mrb[0].mxu0
        %v2040 = vpop.f32.mrb[0].mxu0
        %v2041 = vpop.f32.mrb[0].mxu0
        %2042 = vdwg.mxu0
        %v2043 = vsel %vm1252, %v2038, -inf
        %2044 = vmax.xlane.f32.xlu0 %v2043
        %v2045 = vpop.xlane.xlu0 %2044
        %v2046 = vsub.f32 %v2038, %v2045
        %v2047 = vmul.f32 %v2046, 1.442695
        %v2048 = vpow.pop %v2047
        %v2049 = vsel %vm1252, %v2048, 0.0
        %2050 = vadd.xlane.f32.xlu0 %v2049
        %v2051 = vpop.xlane.xlu0 %2050
        %v2052 = vrcp.pop %v2051
        %v2053 = vmul.f32 %v2048, %v2052
        %v2054 = vpack.c.bf16 %v2053, %v2053
        %v2056 = vsel %vm1252, %v2054, 0
        %2058 = vmatprep.subr.bf16.mxu0 0
        %2059 = vmatpush1.bf16.msra.mxu0 %v1270
        %2060 = vmatprep.subr.bf16.mxu0 0
        %2061 = vmatpush1.bf16.msra.mxu0 0
        %2062 = vmatprep.subr.bf16.mxu0 0
        %2063 = vmatpush1.bf16.msra.mxu0 0
        %2064 = vmatprep.subr.bf16.mxu0 0
        %2065 = vmatpush1.bf16.msra.mxu0 0
        %2066 = vmatprep.subr.bf16.mxu0 0
        %2067 = vmatpush1.bf16.msra.mxu0 0
        %2068 = vmatprep.subr.bf16.mxu0 0
        %2069 = vmatpush1.bf16.msra.mxu0 0
        %2070 = vmatprep.subr.bf16.mxu0 0
        %2071 = vmatpush1.bf16.msra.mxu0 0
        %2072 = vmatprep.subr.bf16.mxu0 0
        %2073 = vmatpush1.bf16.msra.mxu0 0
        %2074 = vmatprep.subr.bf16.mxu0 0
        %2075 = vmatpush1.bf16.msra.mxu0 0
        %2076 = vmatprep.subr.bf16.mxu0 0
        %2077 = vmatpush1.bf16.msra.mxu0 0
        %2078 = vmatprep.subr.bf16.mxu0 0
        %2079 = vmatpush1.bf16.msra.mxu0 0
        %2080 = vmatprep.subr.bf16.mxu0 0
        %2081 = vmatpush1.bf16.msra.mxu0 0
        %2082 = vmatprep.subr.bf16.mxu0 0
        %2083 = vmatpush1.bf16.msra.mxu0 0
        %2084 = vmatprep.subr.bf16.mxu0 0
        %2085 = vmatpush1.bf16.msra.mxu0 0
        %2086 = vmatprep.subr.bf16.mxu0 0
        %2087 = vmatpush1.bf16.msra.mxu0 0
        %2088 = vmatprep.subr.bf16.mxu0 0
        %2089 = vmatpush1.bf16.msra.mxu0 0
        %2090 = vmatprep.mubr.bf16.mxu0 0
        %2091 = vmatmul.mubr.bf16.gmra.mrb[0].mxu0 %v2056
        %v2092 = vpop.f32.mrb[0].mxu0
        %v2093 = vadd.f32 0.0, %v2092
        %v2094 = vpop.f32.mrb[0].mxu0
        %v2095 = vpop.f32.mrb[0].mxu0
        %v2096 = vpop.f32.mrb[0].mxu0
        %2097 = vdwg.mxu0
        %v2098 = vsel %vm1252, %v2053, 0.0
        %2099 = vst [vmem:[%s699] sm:$0xff] %v2098
        %v2100 = vpack.c.bf16 %v1903, %v1903
        %v2102 = vsel %vm817, %v2100, 0
        %2104 = vmatprep.subr.bf16.mxu0 0
        %2105 = vmatpush1.bf16.xpose.msra.mxu0 %v1317
        %2106 = vmatprep.subr.bf16.mxu0 0
        %2107 = vmatpush1.bf16.xpose.msra.mxu0 0
        %2108 = vmatprep.subr.bf16.mxu0 0
        %2109 = vmatpush1.bf16.xpose.msra.mxu0 0
        %2110 = vmatprep.subr.bf16.mxu0 0
        %2111 = vmatpush1.bf16.xpose.msra.mxu0 0
        %2112 = vmatprep.subr.bf16.mxu0 0
        %2113 = vmatpush1.bf16.xpose.msra.mxu0 0
        %2114 = vmatprep.subr.bf16.mxu0 0
        %2115 = vmatpush1.bf16.xpose.msra.mxu0 0
        %2116 = vmatprep.subr.bf16.mxu0 0
        %2117 = vmatpush1.bf16.xpose.msra.mxu0 0
        %2118 = vmatprep.subr.bf16.mxu0 0
        %2119 = vmatpush1.bf16.xpose.msra.mxu0 0
        %2120 = vmatprep.subr.bf16.mxu0 0
        %2121 = vmatpush1.bf16.xpose.msra.mxu0 0
        %2122 = vmatprep.subr.bf16.mxu0 0
        %2123 = vmatpush1.bf16.xpose.msra.mxu0 0
        %2124 = vmatprep.subr.bf16.mxu0 0
        %2125 = vmatpush1.bf16.xpose.msra.mxu0 0
        %2126 = vmatprep.subr.bf16.mxu0 0
        %2127 = vmatpush1.bf16.xpose.msra.mxu0 0
        %2128 = vmatprep.subr.bf16.mxu0 0
        %2129 = vmatpush1.bf16.xpose.msra.mxu0 0
        %2130 = vmatprep.subr.bf16.mxu0 0
        %2131 = vmatpush1.bf16.xpose.msra.mxu0 0
        %2132 = vmatprep.subr.bf16.mxu0 0
        %2133 = vmatpush1.bf16.xpose.msra.mxu0 0
        %2134 = vmatprep.subr.bf16.mxu0 0
        %2135 = vmatpush1.bf16.xpose.msra.mxu0 0
        %2136 = vmatprep.mubr.bf16.mxu0 0
        %2137 = vmatmul.mubr.bf16.gmra.mrb[0].mxu0 %v2102
        %v2138 = vpop.f32.mrb[0].mxu0
        %v2139 = vadd.f32 0.0, %v2138
        %v2140 = vpop.f32.mrb[0].mxu0
        %v2141 = vpop.f32.mrb[0].mxu0
        %v2142 = vpop.f32.mrb[0].mxu0
        %2143 = vdwg.mxu0
        %v2144 = vsel %vm1153, %v2139, -inf
        %2145 = vmax.xlane.f32.xlu0 %v2144
        %v2146 = vpop.xlane.xlu0 %2145
        %v2147 = vsub.f32 %v2139, %v2146
        %v2148 = vmul.f32 %v2147, 1.442695
        %v2149 = vpow.pop %v2148
        %v2150 = vsel %vm1153, %v2149, 0.0
        %2151 = vadd.xlane.f32.xlu0 %v2150
        %v2152 = vpop.xlane.xlu0 %2151
        %v2153 = vrcp.pop %v2152
        %v2154 = vmul.f32 %v2149, %v2153
        %v2155 = vpack.c.bf16 %v2154, %v2154
        %v2157 = vsel %vm1153, %v2155, 0
        %2159 = vmatprep.subr.bf16.mxu0 0
        %2160 = vmatpush1.bf16.msra.mxu0 %v755
        %2161 = vmatprep.subr.bf16.mxu0 0
        %2162 = vmatpush1.bf16.msra.mxu0 0
        %2163 = vmatprep.subr.bf16.mxu0 0
        %2164 = vmatpush1.bf16.msra.mxu0 0
        %2165 = vmatprep.subr.bf16.mxu0 0
        %2166 = vmatpush1.bf16.msra.mxu0 0
        %2167 = vmatprep.subr.bf16.mxu0 0
        %2168 = vmatpush1.bf16.msra.mxu0 0
        %2169 = vmatprep.subr.bf16.mxu0 0
        %2170 = vmatpush1.bf16.msra.mxu0 0
        %2171 = vmatprep.subr.bf16.mxu0 0
        %2172 = vmatpush1.bf16.msra.mxu0 0
        %2173 = vmatprep.subr.bf16.mxu0 0
        %2174 = vmatpush1.bf16.msra.mxu0 0
        %2175 = vmatprep.subr.bf16.mxu0 0
        %2176 = vmatpush1.bf16.msra.mxu0 0
        %2177 = vmatprep.subr.bf16.mxu0 0
        %2178 = vmatpush1.bf16.msra.mxu0 0
        %2179 = vmatprep.subr.bf16.mxu0 0
        %2180 = vmatpush1.bf16.msra.mxu0 0
        %2181 = vmatprep.subr.bf16.mxu0 0
        %2182 = vmatpush1.bf16.msra.mxu0 0
        %2183 = vmatprep.subr.bf16.mxu0 0
        %2184 = vmatpush1.bf16.msra.mxu0 0
        %2185 = vmatprep.subr.bf16.mxu0 0
        %2186 = vmatpush1.bf16.msra.mxu0 0
        %2187 = vmatprep.subr.bf16.mxu0 0
        %2188 = vmatpush1.bf16.msra.mxu0 0
        %2189 = vmatprep.subr.bf16.mxu0 0
        %2190 = vmatpush1.bf16.msra.mxu0 0
        %2191 = vmatprep.mubr.bf16.mxu0 0
        %2192 = vmatmul.mubr.bf16.gmra.mrb[0].mxu0 %v2157
        %v2193 = vpop.f32.mrb[0].mxu0
        %v2194 = vadd.f32 0.0, %v2193
        %v2195 = vpop.f32.mrb[0].mxu0
        %v2196 = vpop.f32.mrb[0].mxu0
        %v2197 = vpop.f32.mrb[0].mxu0
        %2198 = vdwg.mxu0
        %2199 = vmatprep.subr.bf16.mxu0 0
        %2200 = vmatpush1.bf16.xpose.msra.mxu0 %v1415
        %2201 = vmatprep.subr.bf16.mxu0 0
        %2202 = vmatpush1.bf16.xpose.msra.mxu0 0
        %2203 = vmatprep.subr.bf16.mxu0 0
        %2204 = vmatpush1.bf16.xpose.msra.mxu0 0
        %2205 = vmatprep.subr.bf16.mxu0 0
        %2206 = vmatpush1.bf16.xpose.msra.mxu0 0
        %2207 = vmatprep.subr.bf16.mxu0 0
        %2208 = vmatpush1.bf16.xpose.msra.mxu0 0
        %2209 = vmatprep.subr.bf16.mxu0 0
        %2210 = vmatpush1.bf16.xpose.msra.mxu0 0
        %2211 = vmatprep.subr.bf16.mxu0 0
        %2212 = vmatpush1.bf16.xpose.msra.mxu0 0
        %2213 = vmatprep.subr.bf16.mxu0 0
        %2214 = vmatpush1.bf16.xpose.msra.mxu0 0
        %2215 = vmatprep.subr.bf16.mxu0 0
        %2216 = vmatpush1.bf16.xpose.msra.mxu0 0
        %2217 = vmatprep.subr.bf16.mxu0 0
        %2218 = vmatpush1.bf16.xpose.msra.mxu0 0
        %2219 = vmatprep.subr.bf16.mxu0 0
        %2220 = vmatpush1.bf16.xpose.msra.mxu0 0
        %2221 = vmatprep.subr.bf16.mxu0 0
        %2222 = vmatpush1.bf16.xpose.msra.mxu0 0
        %2223 = vmatprep.subr.bf16.mxu0 0
        %2224 = vmatpush1.bf16.xpose.msra.mxu0 0
        %2225 = vmatprep.subr.bf16.mxu0 0
        %2226 = vmatpush1.bf16.xpose.msra.mxu0 0
        %2227 = vmatprep.subr.bf16.mxu0 0
        %2228 = vmatpush1.bf16.xpose.msra.mxu0 0
        %2229 = vmatprep.subr.bf16.mxu0 0
        %2230 = vmatpush1.bf16.xpose.msra.mxu0 0
        %2231 = vmatprep.mubr.bf16.mxu0 0
        %2232 = vmatmul.mubr.bf16.gmra.mrb[0].mxu0 %v2102
        %v2233 = vpop.f32.mrb[0].mxu0
        %v2234 = vadd.f32 0.0, %v2233
        %v2235 = vpop.f32.mrb[0].mxu0
        %v2236 = vpop.f32.mrb[0].mxu0
        %v2237 = vpop.f32.mrb[0].mxu0
        %2238 = vdwg.mxu0
        %v2239 = vsel %vm1252, %v2234, -inf
        %2240 = vmax.xlane.f32.xlu0 %v2239
        %v2241 = vpop.xlane.xlu0 %2240
        %v2242 = vsub.f32 %v2234, %v2241
        %v2243 = vmul.f32 %v2242, 1.442695
        %v2244 = vpow.pop %v2243
        %v2245 = vsel %vm1252, %v2244, 0.0
        %2246 = vadd.xlane.f32.xlu0 %v2245
        %v2247 = vpop.xlane.xlu0 %2246
        %v2248 = vrcp.pop %v2247
        %v2249 = vmul.f32 %v2244, %v2248
        %v2250 = vpack.c.bf16 %v2249, %v2249
        %v2252 = vsel %vm1252, %v2250, 0
        %2254 = vmatprep.subr.bf16.mxu0 0
        %2255 = vmatpush1.bf16.msra.mxu0 %v1473
        %2256 = vmatprep.subr.bf16.mxu0 0
        %2257 = vmatpush1.bf16.msra.mxu0 0
        %2258 = vmatprep.subr.bf16.mxu0 0
        %2259 = vmatpush1.bf16.msra.mxu0 0
        %2260 = vmatprep.subr.bf16.mxu0 0
        %2261 = vmatpush1.bf16.msra.mxu0 0
        %2262 = vmatprep.subr.bf16.mxu0 0
        %2263 = vmatpush1.bf16.msra.mxu0 0
        %2264 = vmatprep.subr.bf16.mxu0 0
        %2265 = vmatpush1.bf16.msra.mxu0 0
        %2266 = vmatprep.subr.bf16.mxu0 0
        %2267 = vmatpush1.bf16.msra.mxu0 0
        %2268 = vmatprep.subr.bf16.mxu0 0
        %2269 = vmatpush1.bf16.msra.mxu0 0
        %2270 = vmatprep.subr.bf16.mxu0 0
        %2271 = vmatpush1.bf16.msra.mxu0 0
        %2272 = vmatprep.subr.bf16.mxu0 0
        %2273 = vmatpush1.bf16.msra.mxu0 0
        %2274 = vmatprep.subr.bf16.mxu0 0
        %2275 = vmatpush1.bf16.msra.mxu0 0
        %2276 = vmatprep.subr.bf16.mxu0 0
        %2277 = vmatpush1.bf16.msra.mxu0 0
        %2278 = vmatprep.subr.bf16.mxu0 0
        %2279 = vmatpush1.bf16.msra.mxu0 0
        %2280 = vmatprep.subr.bf16.mxu0 0
        %2281 = vmatpush1.bf16.msra.mxu0 0
        %2282 = vmatprep.subr.bf16.mxu0 0
        %2283 = vmatpush1.bf16.msra.mxu0 0
        %2284 = vmatprep.subr.bf16.mxu0 0
        %2285 = vmatpush1.bf16.msra.mxu0 0
        %2286 = vmatprep.mubr.bf16.mxu0 0
        %2287 = vmatmul.mubr.bf16.gmra.mrb[0].mxu0 %v2252
        %v2288 = vpop.f32.mrb[0].mxu0
        %v2289 = vadd.f32 0.0, %v2288
        %v2290 = vpop.f32.mrb[0].mxu0
        %v2291 = vpop.f32.mrb[0].mxu0
        %v2292 = vpop.f32.mrb[0].mxu0
        %2293 = vdwg.mxu0
        %v2294 = vsel %vm1252, %v2249, 0.0
        %s2295 = scalar_lea.vmem %s699, 8 [#allocation2]
        %2296 = vst [vmem:[%s2295] sm:$0xff] %v2294
        %s2297 = scalar_lea.vmem %s11, 16
        %v2298 = vld [vmem:[%s2297] sm:$0xf]
        %v2299 = vld [vmem:[%s2297 + $0x4] sm:$0xf]
        %v2300 = vld [vmem:[%s2297 + $0x8] sm:$0xf]
        %v2301 = vld [vmem:[%s2297 + $0xc] sm:$0xf]
        %v2302 = vpack.c.bf16 %v2194, %v1998
        %s2303 = scalar_lea.vmem %s12, 1
        %v2304 = vld [vmem:[%s2303] sm:$0x1]
        %v2306 = vlaneseq
        %v2307 = vshrl.u32 %v2306, 7
        %v2308 = vsub.s32 0, %v2307
        %v2309 = vrot.slane %v2304, %v2308
        %v2315 = vunpack.c.l.b16 %v2298
        %v2316 = vunpack.c.l.b16 %v2299
        %v2317 = vunpack.c.l.b16 %v2300
        %v2318 = vunpack.c.l.b16 %v2301
        %v2319 = vpack.c.b16 %v2316, %v2315
        %v2320 = vpack.c.b16 %v2318, %v2317
        %v2324 = vsel %vm817, %v2302, 0
        %2326 = vmatprep.subr.bf16.mxu0 0
        %2327 = vmatpush1.bf16.msra.mxu0 %v2319
        %2328 = vmatprep.subr.bf16.mxu0 0
        %2329 = vmatpush1.bf16.msra.mxu0 %v2320
        %2330 = vmatprep.subr.bf16.mxu0 0
        %2331 = vmatpush1.bf16.msra.mxu0 0
        %2332 = vmatprep.subr.bf16.mxu0 0
        %2333 = vmatpush1.bf16.msra.mxu0 0
        %2334 = vmatprep.subr.bf16.mxu0 0
        %2335 = vmatpush1.bf16.msra.mxu0 0
        %2336 = vmatprep.subr.bf16.mxu0 0
        %2337 = vmatpush1.bf16.msra.mxu0 0
        %2338 = vmatprep.subr.bf16.mxu0 0
        %2339 = vmatpush1.bf16.msra.mxu0 0
        %2340 = vmatprep.subr.bf16.mxu0 0
        %2341 = vmatpush1.bf16.msra.mxu0 0
        %2342 = vmatprep.subr.bf16.mxu0 0
        %2343 = vmatpush1.bf16.msra.mxu0 0
        %2344 = vmatprep.subr.bf16.mxu0 0
        %2345 = vmatpush1.bf16.msra.mxu0 0
        %2346 = vmatprep.subr.bf16.mxu0 0
        %2347 = vmatpush1.bf16.msra.mxu0 0
        %2348 = vmatprep.subr.bf16.mxu0 0
        %2349 = vmatpush1.bf16.msra.mxu0 0
        %2350 = vmatprep.subr.bf16.mxu0 0
        %2351 = vmatpush1.bf16.msra.mxu0 0
        %2352 = vmatprep.subr.bf16.mxu0 0
        %2353 = vmatpush1.bf16.msra.mxu0 0
        %2354 = vmatprep.subr.bf16.mxu0 0
        %2355 = vmatpush1.bf16.msra.mxu0 0
        %2356 = vmatprep.subr.bf16.mxu0 0
        %2357 = vmatpush1.bf16.msra.mxu0 0
        %2358 = vmatprep.mubr.bf16.mxu0 0
        %2359 = vmatmul.mubr.bf16.gmra.mrb[0].mxu0 %v2324
        %v2360 = vpop.f32.mrb[0].mxu0
        %v2361 = vadd.f32 %v2309, %v2360
        %v2362 = vpop.f32.mrb[0].mxu0
        %v2363 = vpop.f32.mrb[0].mxu0
        %v2364 = vadd.f32 %v2309, %v2363
        %v2365 = vpop.f32.mrb[0].mxu0
        %2366 = vdwg.mxu0
        %v2367 = vadd.f32 %v1828, %v2361
        %v2368 = vadd.f32 %v1829, %v2364
        %v2369 = vmul.f32 %v2367, 0.70710677
        %v2370 = vmul.f32 %v2368, 0.70710677
        %s2371 = scalar_lea.vmem %s13, 16
        %v2372 = vld [vmem:[%s2371] sm:$0xf]
        %v2373 = vld [vmem:[%s2371 + $0x4] sm:$0xf]
        %v2374 = vld [vmem:[%s2371 + $0x8] sm:$0xf]
        %v2375 = vld [vmem:[%s2371 + $0xc] sm:$0xf]
        %v2376 = vpack.c.bf16 %v2289, %v2093
        %s2377 = scalar_lea.vmem %s14, 1
        %v2378 = vld [vmem:[%s2377] sm:$0x1]
        %v2380 = vlaneseq
        %v2381 = vshrl.u32 %v2380, 7
        %v2382 = vsub.s32 0, %v2381
        %v2383 = vrot.slane %v2378, %v2382
        %v2389 = vunpack.c.l.b16 %v2372
        %v2390 = vunpack.c.l.b16 %v2373
        %v2391 = vunpack.c.l.b16 %v2374
        %v2392 = vunpack.c.l.b16 %v2375
        %v2393 = vpack.c.b16 %v2390, %v2389
        %v2394 = vpack.c.b16 %v2392, %v2391
        %v2398 = vsel %vm817, %v2376, 0
        %2400 = vmatprep.subr.bf16.mxu0 0
        %2401 = vmatpush1.bf16.msra.mxu0 %v2393
        %2402 = vmatprep.subr.bf16.mxu0 0
        %2403 = vmatpush1.bf16.msra.mxu0 %v2394
        %2404 = vmatprep.subr.bf16.mxu0 0
        %2405 = vmatpush1.bf16.msra.mxu0 0
        %2406 = vmatprep.subr.bf16.mxu0 0
        %2407 = vmatpush1.bf16.msra.mxu0 0
        %2408 = vmatprep.subr.bf16.mxu0 0
        %2409 = vmatpush1.bf16.msra.mxu0 0
        %2410 = vmatprep.subr.bf16.mxu0 0
        %2411 = vmatpush1.bf16.msra.mxu0 0
        %2412 = vmatprep.subr.bf16.mxu0 0
        %2413 = vmatpush1.bf16.msra.mxu0 0
        %2414 = vmatprep.subr.bf16.mxu0 0
        %2415 = vmatpush1.bf16.msra.mxu0 0
        %2416 = vmatprep.subr.bf16.mxu0 0
        %2417 = vmatpush1.bf16.msra.mxu0 0
        %2418 = vmatprep.subr.bf16.mxu0 0
        %2419 = vmatpush1.bf16.msra.mxu0 0
        %2420 = vmatprep.subr.bf16.mxu0 0
        %2421 = vmatpush1.bf16.msra.mxu0 0
        %2422 = vmatprep.subr.bf16.mxu0 0
        %2423 = vmatpush1.bf16.msra.mxu0 0
        %2424 = vmatprep.subr.bf16.mxu0 0
        %2425 = vmatpush1.bf16.msra.mxu0 0
        %2426 = vmatprep.subr.bf16.mxu0 0
        %2427 = vmatpush1.bf16.msra.mxu0 0
        %2428 = vmatprep.subr.bf16.mxu0 0
        %2429 = vmatpush1.bf16.msra.mxu0 0
        %2430 = vmatprep.subr.bf16.mxu0 0
        %2431 = vmatpush1.bf16.msra.mxu0 0
        %2432 = vmatprep.mubr.bf16.mxu0 0
        %2433 = vmatmul.mubr.bf16.gmra.mrb[0].mxu0 %v2398
        %v2434 = vpop.f32.mrb[0].mxu0
        %v2435 = vadd.f32 %v2383, %v2434
        %v2436 = vpop.f32.mrb[0].mxu0
        %v2437 = vpop.f32.mrb[0].mxu0
        %v2438 = vadd.f32 %v2383, %v2437
        %v2439 = vpop.f32.mrb[0].mxu0
        %2440 = vdwg.mxu0
        %v2441 = vadd.f32 %v1828, %v2435
        %v2442 = vadd.f32 %v1829, %v2438
        %v2443 = vmul.f32 %v2441, 0.70710677
        %v2444 = vmul.f32 %v2442, 0.70710677
        %v2445 = vadd.f32 %v2369, %v2443
        %v2446 = vadd.f32 %v2370, %v2444
        %v2447 = vadd.f32 %v2445, %v1663
        %v2448 = vadd.f32 %v2446, %v1664
        %v2449 = vmul.f32 %v2447, 0.70710677
        %v2450 = vmul.f32 %v2448, 0.70710677
        %v2451 = vld [vmem:[%s15] sm:$0xf]
        %v2452 = vld [vmem:[%s15 + $0x4] sm:$0xf]
        %v2453 = vld [vmem:[%s15 + $0x8] sm:$0xf]
        %v2454 = vld [vmem:[%s15 + $0xc] sm:$0xf]
        %v2455 = vpack.c.bf16 %v2450, %v2449
        %v2456 = vld [vmem:[%s16] sm:$0x1]
        %v2458 = vlaneseq
        %v2459 = vshrl.u32 %v2458, 7
        %v2460 = vsub.s32 0, %v2459
        %v2461 = vrot.slane %v2456, %v2460
        %v2467 = vunpack.c.l.b16 %v2451
        %v2468 = vunpack.c.l.b16 %v2452
        %v2469 = vunpack.c.l.b16 %v2453
        %v2470 = vunpack.c.l.b16 %v2454
        %v2471 = vpack.c.b16 %v2468, %v2467
        %v2472 = vpack.c.b16 %v2470, %v2469
        %v2476 = vsel %vm817, %v2455, 0
        %2478 = vmatprep.subr.bf16.mxu0 0
        %2479 = vmatpush1.bf16.msra.mxu0 %v2471
        %2480 = vmatprep.subr.bf16.mxu0 0
        %2481 = vmatpush1.bf16.msra.mxu0 %v2472
        %2482 = vmatprep.subr.bf16.mxu0 0
        %2483 = vmatpush1.bf16.msra.mxu0 0
        %2484 = vmatprep.subr.bf16.mxu0 0
        %2485 = vmatpush1.bf16.msra.mxu0 0
        %2486 = vmatprep.subr.bf16.mxu0 0
        %2487 = vmatpush1.bf16.msra.mxu0 0
        %2488 = vmatprep.subr.bf16.mxu0 0
        %2489 = vmatpush1.bf16.msra.mxu0 0
        %2490 = vmatprep.subr.bf16.mxu0 0
        %2491 = vmatpush1.bf16.msra.mxu0 0
        %2492 = vmatprep.subr.bf16.mxu0 0
        %2493 = vmatpush1.bf16.msra.mxu0 0
        %2494 = vmatprep.subr.bf16.mxu0 0
        %2495 = vmatpush1.bf16.msra.mxu0 0
        %2496 = vmatprep.subr.bf16.mxu0 0
        %2497 = vmatpush1.bf16.msra.mxu0 0
        %2498 = vmatprep.subr.bf16.mxu0 0
        %2499 = vmatpush1.bf16.msra.mxu0 0
        %2500 = vmatprep.subr.bf16.mxu0 0
        %2501 = vmatpush1.bf16.msra.mxu0 0
        %2502 = vmatprep.subr.bf16.mxu0 0
        %2503 = vmatpush1.bf16.msra.mxu0 0
        %2504 = vmatprep.subr.bf16.mxu0 0
        %2505 = vmatpush1.bf16.msra.mxu0 0
        %2506 = vmatprep.subr.bf16.mxu0 0
        %2507 = vmatpush1.bf16.msra.mxu0 0
        %2508 = vmatprep.subr.bf16.mxu0 0
        %2509 = vmatpush1.bf16.msra.mxu0 0
        %2510 = vmatprep.mubr.bf16.mxu0 0
        %2511 = vmatmul.mubr.bf16.gmra.mrb[0].mxu0 %v2476
        %v2512 = vpop.f32.mrb[0].mxu0
        %v2513 = vadd.f32 %v2461, %v2512
        %v2514 = vpop.f32.mrb[0].mxu0
        %v2515 = vpop.f32.mrb[0].mxu0
        %v2516 = vadd.f32 %v2461, %v2515
        %v2517 = vpop.f32.mrb[0].mxu0
        %2518 = vdwg.mxu0
        %v2519 = vld [vmem:[%s17] sm:$0xf]
        %v2520 = vld [vmem:[%s17 + $0x4] sm:$0xf]
        %v2521 = vld [vmem:[%s17 + $0x8] sm:$0xf]
        %v2522 = vld [vmem:[%s17 + $0xc] sm:$0xf]
        %v2523 = vpack.c.bf16 %v2516, %v2513
        %v2524 = vld [vmem:[%s18] sm:$0x1]
        %v2526 = vlaneseq
        %v2527 = vshrl.u32 %v2526, 7
        %v2528 = vsub.s32 0, %v2527
        %v2529 = vrot.slane %v2524, %v2528
        %v2535 = vunpack.c.l.b16 %v2519
        %v2536 = vunpack.c.l.b16 %v2520
        %v2537 = vunpack.c.l.b16 %v2521
        %v2538 = vunpack.c.l.b16 %v2522
        %v2539 = vpack.c.b16 %v2536, %v2535
        %v2540 = vpack.c.b16 %v2538, %v2537
        %v2544 = vsel %vm817, %v2523, 0
        %2546 = vmatprep.subr.bf16.mxu0 0
        %2547 = vmatpush1.bf16.msra.mxu0 %v2539
        %2548 = vmatprep.subr.bf16.mxu0 0
        %2549 = vmatpush1.bf16.msra.mxu0 %v2540
        %2550 = vmatprep.subr.bf16.mxu0 0
        %2551 = vmatpush1.bf16.msra.mxu0 0
        %2552 = vmatprep.subr.bf16.mxu0 0
        %2553 = vmatpush1.bf16.msra.mxu0 0
        %2554 = vmatprep.subr.bf16.mxu0 0
        %2555 = vmatpush1.bf16.msra.mxu0 0
        %2556 = vmatprep.subr.bf16.mxu0 0
        %2557 = vmatpush1.bf16.msra.mxu0 0
        %2558 = vmatprep.subr.bf16.mxu0 0
        %2559 = vmatpush1.bf16.msra.mxu0 0
        %2560 = vmatprep.subr.bf16.mxu0 0
        %2561 = vmatpush1.bf16.msra.mxu0 0
        %2562 = vmatprep.subr.bf16.mxu0 0
        %2563 = vmatpush1.bf16.msra.mxu0 0
        %2564 = vmatprep.subr.bf16.mxu0 0
        %2565 = vmatpush1.bf16.msra.mxu0 0
        %2566 = vmatprep.subr.bf16.mxu0 0
        %2567 = vmatpush1.bf16.msra.mxu0 0
        %2568 = vmatprep.subr.bf16.mxu0 0
        %2569 = vmatpush1.bf16.msra.mxu0 0
        %2570 = vmatprep.subr.bf16.mxu0 0
        %2571 = vmatpush1.bf16.msra.mxu0 0
        %2572 = vmatprep.subr.bf16.mxu0 0
        %2573 = vmatpush1.bf16.msra.mxu0 0
        %2574 = vmatprep.subr.bf16.mxu0 0
        %2575 = vmatpush1.bf16.msra.mxu0 0
        %2576 = vmatprep.subr.bf16.mxu0 0
        %2577 = vmatpush1.bf16.msra.mxu0 0
        %2578 = vmatprep.mubr.bf16.mxu0 0
        %2579 = vmatmul.mubr.bf16.gmra.mrb[0].mxu0 %v2544
        %v2580 = vpop.f32.mrb[0].mxu0
        %v2581 = vadd.f32 %v2529, %v2580
        %v2582 = vpop.f32.mrb[0].mxu0
        %v2583 = vpop.f32.mrb[0].mxu0
        %v2584 = vadd.f32 %v2529, %v2583
        %v2585 = vpop.f32.mrb[0].mxu0
        %2586 = vdwg.mxu0
        %2587 = vst [vmem:[%s736] sm:$0xff] %v2581
        %2588 = vst [vmem:[%s736 + $0x8] sm:$0xff] %v2584
        %s2589 = smul.u32 2, %s35
        %p2590 = scmp.lt.s32.totalorder %s2589, 3
        %s2591 = scalar_select %p2590, %s2589, 3
        %s2592 = smul.addr %s2591, 8
        %s2593 = scalar_lea.vmem %s19, %s2592
        %s2594 = sand.u32 %s493, 1
        %s2595 = scalar_lea.sflag [#allocation3], %s2594
        %s2596 = sand.u32 %s493, 1
        %s2597 = smul.addr %s2596, 16
        %s2598 = scalar_lea.vmem [#allocation2], %s2597
        // Predicated region
        $region97: #{decoder_feedback_forward.1} parent=95 // pred_check
          %p2599 = pneg %p477
        $region98: #{decoder_feedback_forward.1} parent=95 // pred_check_branch
          %2601 = sbr.rel (%p2599) target = $region100
        $region99: #{decoder_feedback_forward.1} parent=95 // pred_region
          %s2602 = smul.u32 2, %s35
        $region100: #{decoder_feedback_forward.1} parent=95 // pred_fallthru
          _
        // Predicated region
        $region101: #{decoder_feedback_forward.1} parent=95 // pred_check
          %p2603 = pneg %p503
        $region102: #{decoder_feedback_forward.1} parent=95 // pred_check_branch
          %2605 = sbr.rel (%p2603) target = $region104
        $region103: #{decoder_feedback_forward.1} parent=95 // pred_region
          %s2606 = smul.u32 2, %s35
          %s2608 = ssub.s32 256, 256
          %2609 = vsyncadd %s2595, %s2608
          %s2610 = smul.addr %s2606, 128
          %s2611 = scalar_lea.hbm %s20, %s2610
          %s2612 = sshll.u32 %s2598, 4
          %s2613 = int_to_ptr.vmem [resolvable:$true] %s2612
          %2618 = dma.vmem_to_hbm [thread:$0]  %s2613, 256, %s2611, %s2595, 128, 128, 8
        $region104: #{decoder_feedback_forward.1} parent=95 // pred_fallthru
          _
      $region96: #{decoder_feedback_forward.1} parent=5 // pred_fallthru
        _
      %p2619 = scmp.le.s32.totalorder 2, %s30
      // Predicated region
      $region105: #{decoder_feedback_forward.1} parent=5 // pred_check
        %p2620 = pneg %p2619
      $region106: #{decoder_feedback_forward.1} parent=5 // pred_check_branch
        %2622 = sbr.rel (%p2620) target = $region108
      $region107: #{decoder_feedback_forward.1} parent=5 // pred_region
        %s2623 = ssub.s32 %s30, 2
        // Predicated region
        $region109: #{decoder_feedback_forward.1} parent=107 // pred_check
          %p2624 = pneg %p483
        $region110: #{decoder_feedback_forward.1} parent=107 // pred_check_branch
          %2626 = sbr.rel (%p2624) target = $region112
        $region111: #{decoder_feedback_forward.1} parent=107 // pred_region
          %s2627 = smul.u32 2, %s36
          %p2628 = scmp.lt.s32.totalorder %s2627, 3
          %s2629 = scalar_select %p2628, %s2627, 3
          %s2630 = smul.addr %s2629, 8
          %s2631 = scalar_lea.vmem %s19, %s2630
        $region112: #{decoder_feedback_forward.1} parent=107 // pred_fallthru
          _
        // Predicated region
        $region113: #{decoder_feedback_forward.1} parent=107 // pred_check
          %p2632 = pneg %p509
        $region114: #{decoder_feedback_forward.1} parent=107 // pred_check_branch
          %2634 = sbr.rel (%p2632) target = $region116
        $region115: #{decoder_feedback_forward.1} parent=107 // pred_region
          %s2635 = sand.u32 %s494, 1
          %s2636 = scalar_lea.sflag [#allocation3], %s2635
          %s2637 = sand.u32 %s494, 1
          %s2638 = smul.addr %s2637, 16
          %s2639 = scalar_lea.vmem [#allocation2], %s2638
          %2640 = dma.done %s2636, 256
        $region116: #{decoder_feedback_forward.1} parent=107 // pred_fallthru
          _
      $region108: #{decoder_feedback_forward.1} parent=5 // pred_fallthru
        _
    $region6: #{decoder_feedback_forward.1} parent=1 // loop_footer
      %s34 = sadd.s32 1, %s30
    $region7: #{decoder_feedback_forward.1} parent=1 // loop_footer_branch
      %29 = sbr.rel target = $region3
    $region8: #{decoder_feedback_forward.1} parent=1 // loop_exit
      _
    %2641 = vsyncpa [#allocation3], 1
    %s2642 = scalar_lea.sflag [#allocation3], 1
    %2643 = vsyncpa %s2642, 1

</llo_original>
